<compile_context>
chip_gen: v7x
topology: tpu7x:2x2x1
jax: 0.10.0
libtpu: 0.0.40
codegen_flags: <defaults>
</compile_context>

<pallas_src>
import jax
import jax.numpy as jnp
from jax import lax
from jax.experimental import pallas as pl
from jax.experimental.pallas import tpu as pltpu

LANES = 128        # lane width of the flattened-x tiles
ROW_TILE = 32      # rows of 128 elements per grid step (4096 elements/step)


def _make_bspline_kernel(grid_size: int, spline_order: int):
    """Builds a kernel computing all B-spline bases for one (TR, 128) x tile."""
    h = 2.0 / grid_size                       # uniform knot spacing (exact for 8)
    t_min = -1.0 - h * spline_order           # first knot
    n0 = grid_size + 2 * spline_order         # number of order-0 bases needed
    nb = grid_size + spline_order             # number of output bases

    def kernel(x_ref, o_ref):
        # x_ref: (TR, 128) f32 tile of the flattened input
        # o_ref: (TR, 128, nb) f32 output tile
        tr, lanes = x_ref.shape
        x = jnp.clip(x_ref[...], -0.99, 0.99)                     # (TR, L)

        # Hoisted broadcast: element value replicated across the basis (lane)
        # axis exactly once per grid step.
        xeb = jnp.broadcast_to(x[:, :, None], (tr, lanes, n0))     # (TR, L, n0)

        # Knots as compile-time constants along the basis axis (no DMA).
        i_idx = lax.broadcasted_iota(jnp.int32, (1, 1, n0), 2).astype(jnp.float32)
        t_lo = t_min + h * i_idx                                   # knot_i

        # Order 0: indicator of the half-open knot interval [t_i, t_{i+1}).
        b = ((xeb >= t_lo) & (xeb < t_lo + h)).astype(jnp.float32)  # (TR, L, n0)

        # Cox–de Boor recursion, iteratively raising the order.
        for k in range(1, spline_order + 1):
            n = n0 - k
            tk = t_lo[..., :n]                  # knot_i for the surviving bases
            xk = xeb[..., :n]
            denom = float(k) * h                # grid[i+k] - grid[i] (uniform)
            left = (xk - tk) / denom * b[..., :n]
            right = ((tk + (k + 1) * h) - xk) / denom * b[..., 1:n + 1]
            b = left + right                    # (TR, L, n0 - k)

        o_ref[...] = b                          # (TR, L, nb)

    return kernel, nb


def bspline_forward(x: jnp.ndarray, grid_size: int = 8, spline_order: int = 3,
                    row_tile: int = ROW_TILE) -> jnp.ndarray:
    """Returns B-spline bases of shape x.shape + (grid_size + spline_order,)."""
    kernel, nb = _make_bspline_kernel(grid_size, spline_order)

    orig_shape = x.shape
    xf = x.reshape(-1).astype(jnp.float32)
    m = xf.shape[0]

    r = pl.cdiv(m, LANES)
    tr = min(row_tile, 8 * pl.cdiv(r, 8))       # rows/step: >=8 sublanes, <=row_tile
    r_pad = tr * pl.cdiv(r, tr)
    pad = r_pad * LANES - m
    if pad:
        xf = jnp.pad(xf, (0, pad))
    x2 = xf.reshape(r_pad, LANES)               # lane-dense input layout

    out = pl.pallas_call(
        kernel,
        out_shape=jax.ShapeDtypeStruct((r_pad, LANES, nb), jnp.float32),
        grid=(r_pad // tr,),
        in_specs=[pl.BlockSpec((tr, LANES), lambda i: (i, 0))],
        out_specs=pl.BlockSpec((tr, LANES, nb), lambda i: (i, 0, 0)),
        compiler_params=pltpu.CompilerParams(
            dimension_semantics=("parallel",),
            vmem_limit_bytes=32 * 1024 * 1024,
        ),
    )(x2)

    out = out.reshape(r_pad * LANES, nb)[:m]
    return out.reshape(orig_shape + (nb,))


def bspline_reference(x: jnp.ndarray, grid_size: int = 8, spline_order: int = 3):
    """Pure-JAX mirror of the PyTorch BSpline.forward (recursive Cox–de Boor)."""
    h = 2.0 / grid_size
    grid = jnp.linspace(-1 - h * spline_order, 1 + h * spline_order,
                        grid_size + 2 * spline_order + 1)
    xc = jnp.clip(x, -0.99, 0.99)

    def basis(xv, i, k):
        if k == 0:
            return ((xv >= grid[i]) & (xv < grid[i + 1])).astype(jnp.float32)
        c1 = (xv - grid[i]) / (grid[i + k] - grid[i]) * basis(xv, i, k - 1)
        c2 = ((grid[i + k + 1] - xv) / (grid[i + k + 1] - grid[i + 1])
              * basis(xv, i + 1, k - 1))
        return c1 + c2

    bases = [basis(xc, i, spline_order) for i in range(grid_size + spline_order)]
    return jnp.stack(bases, axis=-1)


if __name__ == "__main__":
    grid_size, spline_order = 8, 3
    batch, features = 8, 32                      # small KAN-layer-like input

    key = jax.random.PRNGKey(0)
    x = jax.random.uniform(key, (batch, features), dtype=jnp.float32,
                           minval=-1.2, maxval=1.2)

    out = bspline_forward(x, grid_size, spline_order)
    out = jax.block_until_ready(out)

    ref = bspline_reference(x, grid_size, spline_order)
    assert out.shape == (batch, features, grid_size + spline_order), out.shape
    max_err = float(jnp.max(jnp.abs(out - ref)))
    assert jnp.allclose(out, ref, atol=1e-5), f"mismatch vs reference: {max_err}"

    print("KERNEL_OK")
</pallas_src>

<mosaic_0001>
module attributes {stable_mosaic.version = 11 : i64} {
  func.func @kernel(%arg0: i32, %arg1: memref<8x128xf32, #tpu.memory_space<vmem>>, %arg2: memref<8x128x11xf32, #tpu.memory_space<vmem>>) attributes {dimension_semantics = [#tpu.dimension_semantics<parallel>], iteration_bounds = array<i64: 1>, scalar_prefetch = 0 : i64, scratch_operands = 0 : i64, tpu.core_type = #tpu.core_type<tc>, window_params = [{transform_indices = @transform_0, window_bounds = array<i64: 8, 128>}, {transform_indices = @transform_1, window_bounds = array<i64: 8, 128, 11>}]} {
    %c0 = arith.constant 0 : index
    %c0_0 = arith.constant 0 : index
    %0 = vector.load %arg1[%c0, %c0_0] : memref<8x128xf32, #tpu.memory_space<vmem>>, vector<8x128xf32>
    %cst = arith.constant -9.900000e-01 : f32
    %cst_1 = arith.constant 9.900000e-01 : f32
    %1 = vector.broadcast %cst : f32 to vector<8x128xf32>
    %2 = arith.maximumf %1, %0 : vector<8x128xf32>
    %3 = vector.broadcast %cst_1 : f32 to vector<8x128xf32>
    %4 = arith.minimumf %3, %2 : vector<8x128xf32>
    %5 = vector.shape_cast %4 : vector<8x128xf32> to vector<8x128x1xf32>
    %6 = vector.shape_cast %5 : vector<8x128x1xf32> to vector<8x128x1xf32>
    %7 = vector.broadcast %6 : vector<8x128x1xf32> to vector<8x128x14xf32>
    %8 = tpu.iota {dimensions = array<i32: 2>} : vector<1x1x14xi32>
    %9 = arith.sitofp %8 : vector<1x1x14xi32> to vector<1x1x14xf32>
    %cst_2 = arith.constant 2.500000e-01 : f32
    %10 = vector.broadcast %cst_2 : f32 to vector<1x1x14xf32>
    %11 = arith.mulf %10, %9 : vector<1x1x14xf32>
    %cst_3 = arith.constant -1.750000e+00 : f32
    %12 = vector.broadcast %cst_3 : f32 to vector<1x1x14xf32>
    %13 = arith.addf %12, %11 : vector<1x1x14xf32>
    %14 = vector.broadcast %13 : vector<1x1x14xf32> to vector<8x128x14xf32>
    %15 = arith.cmpf oge, %7, %14 : vector<8x128x14xf32>
    %cst_4 = arith.constant 2.500000e-01 : f32
    %16 = vector.broadcast %cst_4 : f32 to vector<1x1x14xf32>
    %17 = arith.addf %13, %16 : vector<1x1x14xf32>
    %18 = vector.broadcast %17 : vector<1x1x14xf32> to vector<8x128x14xf32>
    %19 = arith.cmpf olt, %7, %18 : vector<8x128x14xf32>
    %20 = arith.andi %15, %19 : vector<8x128x14xi1>
    %21 = arith.extui %20 : vector<8x128x14xi1> to vector<8x128x14xi32>
    %22 = arith.sitofp %21 : vector<8x128x14xi32> to vector<8x128x14xf32>
    %23 = vector.extract_strided_slice %13 {offsets = [0, 0, 0], sizes = [1, 1, 13], strides = [1, 1, 1]} : vector<1x1x14xf32> to vector<1x1x13xf32>
    %24 = vector.extract_strided_slice %7 {offsets = [0, 0, 0], sizes = [8, 128, 13], strides = [1, 1, 1]} : vector<8x128x14xf32> to vector<8x128x13xf32>
    %25 = vector.broadcast %23 : vector<1x1x13xf32> to vector<8x128x13xf32>
    %26 = arith.subf %24, %25 : vector<8x128x13xf32>
    %cst_5 = arith.constant 2.500000e-01 : f32
    %27 = vector.broadcast %cst_5 : f32 to vector<8x128x13xf32>
    %28 = arith.divf %26, %27 : vector<8x128x13xf32>
    %29 = vector.extract_strided_slice %22 {offsets = [0, 0, 0], sizes = [8, 128, 13], strides = [1, 1, 1]} : vector<8x128x14xf32> to vector<8x128x13xf32>
    %30 = arith.mulf %28, %29 : vector<8x128x13xf32>
    %cst_6 = arith.constant 5.000000e-01 : f32
    %31 = vector.broadcast %cst_6 : f32 to vector<1x1x13xf32>
    %32 = arith.addf %23, %31 : vector<1x1x13xf32>
    %33 = vector.broadcast %32 : vector<1x1x13xf32> to vector<8x128x13xf32>
    %34 = arith.subf %33, %24 : vector<8x128x13xf32>
    %cst_7 = arith.constant 2.500000e-01 : f32
    %35 = vector.broadcast %cst_7 : f32 to vector<8x128x13xf32>
    %36 = arith.divf %34, %35 : vector<8x128x13xf32>
    %37 = vector.extract_strided_slice %22 {offsets = [0, 0, 1], sizes = [8, 128, 13], strides = [1, 1, 1]} : vector<8x128x14xf32> to vector<8x128x13xf32>
    %38 = arith.mulf %36, %37 : vector<8x128x13xf32>
    %39 = arith.addf %30, %38 : vector<8x128x13xf32>
    %40 = vector.extract_strided_slice %13 {offsets = [0, 0, 0], sizes = [1, 1, 12], strides = [1, 1, 1]} : vector<1x1x14xf32> to vector<1x1x12xf32>
    %41 = vector.extract_strided_slice %7 {offsets = [0, 0, 0], sizes = [8, 128, 12], strides = [1, 1, 1]} : vector<8x128x14xf32> to vector<8x128x12xf32>
    %42 = vector.broadcast %40 : vector<1x1x12xf32> to vector<8x128x12xf32>
    %43 = arith.subf %41, %42 : vector<8x128x12xf32>
    %cst_8 = arith.constant 5.000000e-01 : f32
    %44 = vector.broadcast %cst_8 : f32 to vector<8x128x12xf32>
    %45 = arith.divf %43, %44 : vector<8x128x12xf32>
    %46 = vector.extract_strided_slice %39 {offsets = [0, 0, 0], sizes = [8, 128, 12], strides = [1, 1, 1]} : vector<8x128x13xf32> to vector<8x128x12xf32>
    %47 = arith.mulf %45, %46 : vector<8x128x12xf32>
    %cst_9 = arith.constant 7.500000e-01 : f32
    %48 = vector.broadcast %cst_9 : f32 to vector<1x1x12xf32>
    %49 = arith.addf %40, %48 : vector<1x1x12xf32>
    %50 = vector.broadcast %49 : vector<1x1x12xf32> to vector<8x128x12xf32>
    %51 = arith.subf %50, %41 : vector<8x128x12xf32>
    %cst_10 = arith.constant 5.000000e-01 : f32
    %52 = vector.broadcast %cst_10 : f32 to vector<8x128x12xf32>
    %53 = arith.divf %51, %52 : vector<8x128x12xf32>
    %54 = vector.extract_strided_slice %39 {offsets = [0, 0, 1], sizes = [8, 128, 12], strides = [1, 1, 1]} : vector<8x128x13xf32> to vector<8x128x12xf32>
    %55 = arith.mulf %53, %54 : vector<8x128x12xf32>
    %56 = arith.addf %47, %55 : vector<8x128x12xf32>
    %57 = vector.extract_strided_slice %13 {offsets = [0, 0, 0], sizes = [1, 1, 11], strides = [1, 1, 1]} : vector<1x1x14xf32> to vector<1x1x11xf32>
    %58 = vector.extract_strided_slice %7 {offsets = [0, 0, 0], sizes = [8, 128, 11], strides = [1, 1, 1]} : vector<8x128x14xf32> to vector<8x128x11xf32>
    %59 = vector.broadcast %57 : vector<1x1x11xf32> to vector<8x128x11xf32>
    %60 = arith.subf %58, %59 : vector<8x128x11xf32>
    %cst_11 = arith.constant 7.500000e-01 : f32
    %61 = vector.broadcast %cst_11 : f32 to vector<8x128x11xf32>
    %62 = arith.divf %60, %61 : vector<8x128x11xf32>
    %63 = vector.extract_strided_slice %56 {offsets = [0, 0, 0], sizes = [8, 128, 11], strides = [1, 1, 1]} : vector<8x128x12xf32> to vector<8x128x11xf32>
    %64 = arith.mulf %62, %63 : vector<8x128x11xf32>
    %cst_12 = arith.constant 1.000000e+00 : f32
    %65 = vector.broadcast %cst_12 : f32 to vector<1x1x11xf32>
    %66 = arith.addf %57, %65 : vector<1x1x11xf32>
    %67 = vector.broadcast %66 : vector<1x1x11xf32> to vector<8x128x11xf32>
    %68 = arith.subf %67, %58 : vector<8x128x11xf32>
    %cst_13 = arith.constant 7.500000e-01 : f32
    %69 = vector.broadcast %cst_13 : f32 to vector<8x128x11xf32>
    %70 = arith.divf %68, %69 : vector<8x128x11xf32>
    %71 = vector.extract_strided_slice %56 {offsets = [0, 0, 1], sizes = [8, 128, 11], strides = [1, 1, 1]} : vector<8x128x12xf32> to vector<8x128x11xf32>
    %72 = arith.mulf %70, %71 : vector<8x128x11xf32>
    %73 = arith.addf %64, %72 : vector<8x128x11xf32>
    %c0_14 = arith.constant 0 : index
    %c0_15 = arith.constant 0 : index
    %c0_16 = arith.constant 0 : index
    %74 = vector.load %arg2[%c0_14, %c0_15, %c0_16] : memref<8x128x11xf32, #tpu.memory_space<vmem>>, vector<8x128x11xf32>
    tpu.vector_store %arg2[%c0_14, %c0_15, %c0_16], %73 {strides = array<i32>} : memref<8x128x11xf32, #tpu.memory_space<vmem>>, vector<8x128x11xf32>,
    return
  }
  func.func @transform_0(%arg0: i32) -> (i32, i32) {
    %c0_i32 = arith.constant 0 : i32
    %c0_i32_0 = arith.constant 0 : i32
    return %arg0, %c0_i32 : i32, i32
  }
  func.func @transform_1(%arg0: i32) -> (i32, i32, i32) {
    %c0_i32 = arith.constant 0 : i32
    %c0_i32_0 = arith.constant 0 : i32
    %c0_i32_1 = arith.constant 0 : i32
    return %arg0, %c0_i32, %c0_i32_0 : i32, i32, i32
  }
}

</mosaic_0001>

<llo_original>
// kernel: tpu_custom_call.1
$region0: #{tpu_custom_call.1}
  #allocation0 [shape = 'u32[]', space=smem, size = 0x4, offset = 0x4, fixed_abs, tag = 'smem constant byte address 0x4 - core index']
  #allocation1 [shape = 'u32[144,128]{1,0:T(1,128)}', space=vmem, size = 0x12000, scoped, tag = 'internal scratch']
  %s0 = inlined_call_operand.hbm [shape: f32[8,128], index: 0, kind: input, shape index: {}]
  %s1 = inlined_call_operand.vmem [shape: f32[8,128,11], index: 1, kind: output, shape index: {}]
  %s2 = sld [smem:[#allocation0]]
  $region18: #{tpu_custom_call.1} parent=0
    _
  %s4 = ssub.s32 1, %s2
  %s5 = scalar_select 0, %s4, %s2
  $region1: #{tpu_custom_call.1} parent=0
    #allocation2 [shape = 'u8[4096]{0}', space=vmem, size = 0x1000, scoped, tag = 'input window, operand 0, single buffered']
    #allocation3 [shape = 's32[1]{0}', space=sflag, size = 0x4, scoped, tag = 'scoped memory for tpu_custom_call.1']
    %6 = vsyncpa [#allocation3], 0
    // Predicated region
    $region2: #{tpu_custom_call.1} parent=1 // pred_check
      _
    $region3: #{tpu_custom_call.1} parent=1 // pred_check_branch
      %8 = sbr.rel (0) target = $region5
    $region4: #{tpu_custom_call.1} parent=1 // pred_region
      %s10 = ssub.s32 128, 128
      %11 = vsyncadd [#allocation3], %s10
      %s13 = sshll.u32 [#allocation2], 4
      %s14 = int_to_ptr.vmem [resolvable:$true] %s13
      %16 = dma.hbm_to_vmem [thread:$0]  %s0, 128, %s14, [#allocation3]
    $region5: #{tpu_custom_call.1} parent=1 // pred_fallthru
      _
    // Predicated region
    $region6: #{tpu_custom_call.1} parent=1 // pred_check
      _
    $region7: #{tpu_custom_call.1} parent=1 // pred_check_branch
      %18 = sbr.rel (0) target = $region9
    $region8: #{tpu_custom_call.1} parent=1 // pred_region
      %19 = dma.done [#allocation3], 128
    $region9: #{tpu_custom_call.1} parent=1 // pred_fallthru
      _
    %v20 = vld [vmem:[#allocation2] sm:$0xff]
    %v21 = vmax.f32 %v20, -0.99
    %v22 = vmin.f32 %v21, 0.99
    %v23 = vlaneseq
    %v24 = vshrl.u32 %v23, 7
    %v25 = vsub.s32 0, %v24
    %v26 = vrot.slane %v22, %v25
    %28 = vbcast.lane.b32.xlu0 %v26, 256
    %v29 = vpop.permute.xlu0 %28
    %s31 = sor.u32 256, 8
    %32 = vbcast.lane.b32.xlu0 %v26, %s31
    %v33 = vpop.permute.xlu0 %32
    %s35 = sor.u32 256, 16
    %36 = vbcast.lane.b32.xlu0 %v26, %s35
    %v37 = vpop.permute.xlu0 %36
    %s39 = sor.u32 256, 24
    %40 = vbcast.lane.b32.xlu0 %v26, %s39
    %v41 = vpop.permute.xlu0 %40
    %s43 = sor.u32 256, 32
    %44 = vbcast.lane.b32.xlu0 %v26, %s43
    %v45 = vpop.permute.xlu0 %44
    %s47 = sor.u32 256, 40
    %48 = vbcast.lane.b32.xlu0 %v26, %s47
    %v49 = vpop.permute.xlu0 %48
    %s51 = sor.u32 256, 48
    %52 = vbcast.lane.b32.xlu0 %v26, %s51
    %v53 = vpop.permute.xlu0 %52
    %s55 = sor.u32 256, 56
    %56 = vbcast.lane.b32.xlu0 %v26, %s55
    %v57 = vpop.permute.xlu0 %56
    %s59 = sor.u32 256, 64
    %60 = vbcast.lane.b32.xlu0 %v26, %s59
    %v61 = vpop.permute.xlu0 %60
    %s63 = sor.u32 256, 72
    %64 = vbcast.lane.b32.xlu0 %v26, %s63
    %v65 = vpop.permute.xlu0 %64
    %s67 = sor.u32 256, 80
    %68 = vbcast.lane.b32.xlu0 %v26, %s67
    %v69 = vpop.permute.xlu0 %68
    %s71 = sor.u32 256, 88
    %72 = vbcast.lane.b32.xlu0 %v26, %s71
    %v73 = vpop.permute.xlu0 %72
    %s75 = sor.u32 256, 96
    %76 = vbcast.lane.b32.xlu0 %v26, %s75
    %v77 = vpop.permute.xlu0 %76
    %s79 = sor.u32 256, 104
    %80 = vbcast.lane.b32.xlu0 %v26, %s79
    %v81 = vpop.permute.xlu0 %80
    %s83 = sor.u32 256, 112
    %84 = vbcast.lane.b32.xlu0 %v26, %s83
    %v85 = vpop.permute.xlu0 %84
    %s87 = sor.u32 256, 120
    %88 = vbcast.lane.b32.xlu0 %v26, %s87
    %v89 = vpop.permute.xlu0 %88
    %v90 = vlaneseq
    %v91 = vshrl.u32 %v90, 7
    %v92 = vsub.s32 1, %v91
    %v93 = vrot.slane %v22, %v92
    %95 = vbcast.lane.b32.xlu0 %v93, 256
    %v96 = vpop.permute.xlu0 %95
    %s98 = sor.u32 256, 8
    %99 = vbcast.lane.b32.xlu0 %v93, %s98
    %v100 = vpop.permute.xlu0 %99
    %s102 = sor.u32 256, 16
    %103 = vbcast.lane.b32.xlu0 %v93, %s102
    %v104 = vpop.permute.xlu0 %103
    %s106 = sor.u32 256, 24
    %107 = vbcast.lane.b32.xlu0 %v93, %s106
    %v108 = vpop.permute.xlu0 %107
    %s110 = sor.u32 256, 32
    %111 = vbcast.lane.b32.xlu0 %v93, %s110
    %v112 = vpop.permute.xlu0 %111
    %s114 = sor.u32 256, 40
    %115 = vbcast.lane.b32.xlu0 %v93, %s114
    %v116 = vpop.permute.xlu0 %115
    %s118 = sor.u32 256, 48
    %119 = vbcast.lane.b32.xlu0 %v93, %s118
    %v120 = vpop.permute.xlu0 %119
    %s122 = sor.u32 256, 56
    %123 = vbcast.lane.b32.xlu0 %v93, %s122
    %v124 = vpop.permute.xlu0 %123
    %s126 = sor.u32 256, 64
    %127 = vbcast.lane.b32.xlu0 %v93, %s126
    %v128 = vpop.permute.xlu0 %127
    %s130 = sor.u32 256, 72
    %131 = vbcast.lane.b32.xlu0 %v93, %s130
    %v132 = vpop.permute.xlu0 %131
    %s134 = sor.u32 256, 80
    %135 = vbcast.lane.b32.xlu0 %v93, %s134
    %v136 = vpop.permute.xlu0 %135
    %s138 = sor.u32 256, 88
    %139 = vbcast.lane.b32.xlu0 %v93, %s138
    %v140 = vpop.permute.xlu0 %139
    %s142 = sor.u32 256, 96
    %143 = vbcast.lane.b32.xlu0 %v93, %s142
    %v144 = vpop.permute.xlu0 %143
    %s146 = sor.u32 256, 104
    %147 = vbcast.lane.b32.xlu0 %v93, %s146
    %v148 = vpop.permute.xlu0 %147
    %s150 = sor.u32 256, 112
    %151 = vbcast.lane.b32.xlu0 %v93, %s150
    %v152 = vpop.permute.xlu0 %151
    %s154 = sor.u32 256, 120
    %155 = vbcast.lane.b32.xlu0 %v93, %s154
    %v156 = vpop.permute.xlu0 %155
    %v157 = vlaneseq
    %v158 = vshrl.u32 %v157, 7
    %v159 = vsub.s32 2, %v158
    %v160 = vrot.slane %v22, %v159
    %162 = vbcast.lane.b32.xlu0 %v160, 256
    %v163 = vpop.permute.xlu0 %162
    %s165 = sor.u32 256, 8
    %166 = vbcast.lane.b32.xlu0 %v160, %s165
    %v167 = vpop.permute.xlu0 %166
    %s169 = sor.u32 256, 16
    %170 = vbcast.lane.b32.xlu0 %v160, %s169
    %v171 = vpop.permute.xlu0 %170
    %s173 = sor.u32 256, 24
    %174 = vbcast.lane.b32.xlu0 %v160, %s173
    %v175 = vpop.permute.xlu0 %174
    %s177 = sor.u32 256, 32
    %178 = vbcast.lane.b32.xlu0 %v160, %s177
    %v179 = vpop.permute.xlu0 %178
    %s181 = sor.u32 256, 40
    %182 = vbcast.lane.b32.xlu0 %v160, %s181
    %v183 = vpop.permute.xlu0 %182
    %s185 = sor.u32 256, 48
    %186 = vbcast.lane.b32.xlu0 %v160, %s185
    %v187 = vpop.permute.xlu0 %186
    %s189 = sor.u32 256, 56
    %190 = vbcast.lane.b32.xlu0 %v160, %s189
    %v191 = vpop.permute.xlu0 %190
    %s193 = sor.u32 256, 64
    %194 = vbcast.lane.b32.xlu0 %v160, %s193
    %v195 = vpop.permute.xlu0 %194
    %s197 = sor.u32 256, 72
    %198 = vbcast.lane.b32.xlu0 %v160, %s197
    %v199 = vpop.permute.xlu0 %198
    %s201 = sor.u32 256, 80
    %202 = vbcast.lane.b32.xlu0 %v160, %s201
    %v203 = vpop.permute.xlu0 %202
    %s205 = sor.u32 256, 88
    %206 = vbcast.lane.b32.xlu0 %v160, %s205
    %v207 = vpop.permute.xlu0 %206
    %s209 = sor.u32 256, 96
    %210 = vbcast.lane.b32.xlu0 %v160, %s209
    %v211 = vpop.permute.xlu0 %210
    %s213 = sor.u32 256, 104
    %214 = vbcast.lane.b32.xlu0 %v160, %s213
    %v215 = vpop.permute.xlu0 %214
    %s217 = sor.u32 256, 112
    %218 = vbcast.lane.b32.xlu0 %v160, %s217
    %v219 = vpop.permute.xlu0 %218
    %s221 = sor.u32 256, 120
    %222 = vbcast.lane.b32.xlu0 %v160, %s221
    %v223 = vpop.permute.xlu0 %222
    %v224 = vlaneseq
    %v225 = vshrl.u32 %v224, 7
    %v226 = vsub.s32 3, %v225
    %v227 = vrot.slane %v22, %v226
    %229 = vbcast.lane.b32.xlu0 %v227, 256
    %v230 = vpop.permute.xlu0 %229
    %s232 = sor.u32 256, 8
    %233 = vbcast.lane.b32.xlu0 %v227, %s232
    %v234 = vpop.permute.xlu0 %233
    %s236 = sor.u32 256, 16
    %237 = vbcast.lane.b32.xlu0 %v227, %s236
    %v238 = vpop.permute.xlu0 %237
    %s240 = sor.u32 256, 24
    %241 = vbcast.lane.b32.xlu0 %v227, %s240
    %v242 = vpop.permute.xlu0 %241
    %s244 = sor.u32 256, 32
    %245 = vbcast.lane.b32.xlu0 %v227, %s244
    %v246 = vpop.permute.xlu0 %245
    %s248 = sor.u32 256, 40
    %249 = vbcast.lane.b32.xlu0 %v227, %s248
    %v250 = vpop.permute.xlu0 %249
    %s252 = sor.u32 256, 48
    %253 = vbcast.lane.b32.xlu0 %v227, %s252
    %v254 = vpop.permute.xlu0 %253
    %s256 = sor.u32 256, 56
    %257 = vbcast.lane.b32.xlu0 %v227, %s256
    %v258 = vpop.permute.xlu0 %257
    %s260 = sor.u32 256, 64
    %261 = vbcast.lane.b32.xlu0 %v227, %s260
    %v262 = vpop.permute.xlu0 %261
    %s264 = sor.u32 256, 72
    %265 = vbcast.lane.b32.xlu0 %v227, %s264
    %v266 = vpop.permute.xlu0 %265
    %s268 = sor.u32 256, 80
    %269 = vbcast.lane.b32.xlu0 %v227, %s268
    %v270 = vpop.permute.xlu0 %269
    %s272 = sor.u32 256, 88
    %273 = vbcast.lane.b32.xlu0 %v227, %s272
    %v274 = vpop.permute.xlu0 %273
    %s276 = sor.u32 256, 96
    %277 = vbcast.lane.b32.xlu0 %v227, %s276
    %v278 = vpop.permute.xlu0 %277
    %s280 = sor.u32 256, 104
    %281 = vbcast.lane.b32.xlu0 %v227, %s280
    %v282 = vpop.permute.xlu0 %281
    %s284 = sor.u32 256, 112
    %285 = vbcast.lane.b32.xlu0 %v227, %s284
    %v286 = vpop.permute.xlu0 %285
    %s288 = sor.u32 256, 120
    %289 = vbcast.lane.b32.xlu0 %v227, %s288
    %v290 = vpop.permute.xlu0 %289
    %v291 = vlaneseq
    %v292 = vshrl.u32 %v291, 7
    %v293 = vsub.s32 4, %v292
    %v294 = vrot.slane %v22, %v293
    %296 = vbcast.lane.b32.xlu0 %v294, 256
    %v297 = vpop.permute.xlu0 %296
    %s299 = sor.u32 256, 8
    %300 = vbcast.lane.b32.xlu0 %v294, %s299
    %v301 = vpop.permute.xlu0 %300
    %s303 = sor.u32 256, 16
    %304 = vbcast.lane.b32.xlu0 %v294, %s303
    %v305 = vpop.permute.xlu0 %304
    %s307 = sor.u32 256, 24
    %308 = vbcast.lane.b32.xlu0 %v294, %s307
    %v309 = vpop.permute.xlu0 %308
    %s311 = sor.u32 256, 32
    %312 = vbcast.lane.b32.xlu0 %v294, %s311
    %v313 = vpop.permute.xlu0 %312
    %s315 = sor.u32 256, 40
    %316 = vbcast.lane.b32.xlu0 %v294, %s315
    %v317 = vpop.permute.xlu0 %316
    %s319 = sor.u32 256, 48
    %320 = vbcast.lane.b32.xlu0 %v294, %s319
    %v321 = vpop.permute.xlu0 %320
    %s323 = sor.u32 256, 56
    %324 = vbcast.lane.b32.xlu0 %v294, %s323
    %v325 = vpop.permute.xlu0 %324
    %s327 = sor.u32 256, 64
    %328 = vbcast.lane.b32.xlu0 %v294, %s327
    %v329 = vpop.permute.xlu0 %328
    %s331 = sor.u32 256, 72
    %332 = vbcast.lane.b32.xlu0 %v294, %s331
    %v333 = vpop.permute.xlu0 %332
    %s335 = sor.u32 256, 80
    %336 = vbcast.lane.b32.xlu0 %v294, %s335
    %v337 = vpop.permute.xlu0 %336
    %s339 = sor.u32 256, 88
    %340 = vbcast.lane.b32.xlu0 %v294, %s339
    %v341 = vpop.permute.xlu0 %340
    %s343 = sor.u32 256, 96
    %344 = vbcast.lane.b32.xlu0 %v294, %s343
    %v345 = vpop.permute.xlu0 %344
    %s347 = sor.u32 256, 104
    %348 = vbcast.lane.b32.xlu0 %v294, %s347
    %v349 = vpop.permute.xlu0 %348
    %s351 = sor.u32 256, 112
    %352 = vbcast.lane.b32.xlu0 %v294, %s351
    %v353 = vpop.permute.xlu0 %352
    %s355 = sor.u32 256, 120
    %356 = vbcast.lane.b32.xlu0 %v294, %s355
    %v357 = vpop.permute.xlu0 %356
    %v358 = vlaneseq
    %v359 = vshrl.u32 %v358, 7
    %v360 = vsub.s32 5, %v359
    %v361 = vrot.slane %v22, %v360
    %363 = vbcast.lane.b32.xlu0 %v361, 256
    %v364 = vpop.permute.xlu0 %363
    %s366 = sor.u32 256, 8
    %367 = vbcast.lane.b32.xlu0 %v361, %s366
    %v368 = vpop.permute.xlu0 %367
    %s370 = sor.u32 256, 16
    %371 = vbcast.lane.b32.xlu0 %v361, %s370
    %v372 = vpop.permute.xlu0 %371
    %s374 = sor.u32 256, 24
    %375 = vbcast.lane.b32.xlu0 %v361, %s374
    %v376 = vpop.permute.xlu0 %375
    %s378 = sor.u32 256, 32
    %379 = vbcast.lane.b32.xlu0 %v361, %s378
    %v380 = vpop.permute.xlu0 %379
    %s382 = sor.u32 256, 40
    %383 = vbcast.lane.b32.xlu0 %v361, %s382
    %v384 = vpop.permute.xlu0 %383
    %s386 = sor.u32 256, 48
    %387 = vbcast.lane.b32.xlu0 %v361, %s386
    %v388 = vpop.permute.xlu0 %387
    %s390 = sor.u32 256, 56
    %391 = vbcast.lane.b32.xlu0 %v361, %s390
    %v392 = vpop.permute.xlu0 %391
    %s394 = sor.u32 256, 64
    %395 = vbcast.lane.b32.xlu0 %v361, %s394
    %v396 = vpop.permute.xlu0 %395
    %s398 = sor.u32 256, 72
    %399 = vbcast.lane.b32.xlu0 %v361, %s398
    %v400 = vpop.permute.xlu0 %399
    %s402 = sor.u32 256, 80
    %403 = vbcast.lane.b32.xlu0 %v361, %s402
    %v404 = vpop.permute.xlu0 %403
    %s406 = sor.u32 256, 88
    %407 = vbcast.lane.b32.xlu0 %v361, %s406
    %v408 = vpop.permute.xlu0 %407
    %s410 = sor.u32 256, 96
    %411 = vbcast.lane.b32.xlu0 %v361, %s410
    %v412 = vpop.permute.xlu0 %411
    %s414 = sor.u32 256, 104
    %415 = vbcast.lane.b32.xlu0 %v361, %s414
    %v416 = vpop.permute.xlu0 %415
    %s418 = sor.u32 256, 112
    %419 = vbcast.lane.b32.xlu0 %v361, %s418
    %v420 = vpop.permute.xlu0 %419
    %s422 = sor.u32 256, 120
    %423 = vbcast.lane.b32.xlu0 %v361, %s422
    %v424 = vpop.permute.xlu0 %423
    %v425 = vlaneseq
    %v426 = vshrl.u32 %v425, 7
    %v427 = vsub.s32 6, %v426
    %v428 = vrot.slane %v22, %v427
    %430 = vbcast.lane.b32.xlu0 %v428, 256
    %v431 = vpop.permute.xlu0 %430
    %s433 = sor.u32 256, 8
    %434 = vbcast.lane.b32.xlu0 %v428, %s433
    %v435 = vpop.permute.xlu0 %434
    %s437 = sor.u32 256, 16
    %438 = vbcast.lane.b32.xlu0 %v428, %s437
    %v439 = vpop.permute.xlu0 %438
    %s441 = sor.u32 256, 24
    %442 = vbcast.lane.b32.xlu0 %v428, %s441
    %v443 = vpop.permute.xlu0 %442
    %s445 = sor.u32 256, 32
    %446 = vbcast.lane.b32.xlu0 %v428, %s445
    %v447 = vpop.permute.xlu0 %446
    %s449 = sor.u32 256, 40
    %450 = vbcast.lane.b32.xlu0 %v428, %s449
    %v451 = vpop.permute.xlu0 %450
    %s453 = sor.u32 256, 48
    %454 = vbcast.lane.b32.xlu0 %v428, %s453
    %v455 = vpop.permute.xlu0 %454
    %s457 = sor.u32 256, 56
    %458 = vbcast.lane.b32.xlu0 %v428, %s457
    %v459 = vpop.permute.xlu0 %458
    %s461 = sor.u32 256, 64
    %462 = vbcast.lane.b32.xlu0 %v428, %s461
    %v463 = vpop.permute.xlu0 %462
    %s465 = sor.u32 256, 72
    %466 = vbcast.lane.b32.xlu0 %v428, %s465
    %v467 = vpop.permute.xlu0 %466
    %s469 = sor.u32 256, 80
    %470 = vbcast.lane.b32.xlu0 %v428, %s469
    %v471 = vpop.permute.xlu0 %470
    %s473 = sor.u32 256, 88
    %474 = vbcast.lane.b32.xlu0 %v428, %s473
    %v475 = vpop.permute.xlu0 %474
    %s477 = sor.u32 256, 96
    %478 = vbcast.lane.b32.xlu0 %v428, %s477
    %v479 = vpop.permute.xlu0 %478
    %s481 = sor.u32 256, 104
    %482 = vbcast.lane.b32.xlu0 %v428, %s481
    %v483 = vpop.permute.xlu0 %482
    %s485 = sor.u32 256, 112
    %486 = vbcast.lane.b32.xlu0 %v428, %s485
    %v487 = vpop.permute.xlu0 %486
    %s489 = sor.u32 256, 120
    %490 = vbcast.lane.b32.xlu0 %v428, %s489
    %v491 = vpop.permute.xlu0 %490
    %v492 = vlaneseq
    %v493 = vshrl.u32 %v492, 7
    %v494 = vsub.s32 7, %v493
    %v495 = vrot.slane %v22, %v494
    %497 = vbcast.lane.b32.xlu0 %v495, 256
    %v498 = vpop.permute.xlu0 %497
    %s500 = sor.u32 256, 8
    %501 = vbcast.lane.b32.xlu0 %v495, %s500
    %v502 = vpop.permute.xlu0 %501
    %s504 = sor.u32 256, 16
    %505 = vbcast.lane.b32.xlu0 %v495, %s504
    %v506 = vpop.permute.xlu0 %505
    %s508 = sor.u32 256, 24
    %509 = vbcast.lane.b32.xlu0 %v495, %s508
    %v510 = vpop.permute.xlu0 %509
    %s512 = sor.u32 256, 32
    %513 = vbcast.lane.b32.xlu0 %v495, %s512
    %v514 = vpop.permute.xlu0 %513
    %s516 = sor.u32 256, 40
    %517 = vbcast.lane.b32.xlu0 %v495, %s516
    %v518 = vpop.permute.xlu0 %517
    %s520 = sor.u32 256, 48
    %521 = vbcast.lane.b32.xlu0 %v495, %s520
    %v522 = vpop.permute.xlu0 %521
    %s524 = sor.u32 256, 56
    %525 = vbcast.lane.b32.xlu0 %v495, %s524
    %v526 = vpop.permute.xlu0 %525
    %s528 = sor.u32 256, 64
    %529 = vbcast.lane.b32.xlu0 %v495, %s528
    %v530 = vpop.permute.xlu0 %529
    %s532 = sor.u32 256, 72
    %533 = vbcast.lane.b32.xlu0 %v495, %s532
    %v534 = vpop.permute.xlu0 %533
    %s536 = sor.u32 256, 80
    %537 = vbcast.lane.b32.xlu0 %v495, %s536
    %v538 = vpop.permute.xlu0 %537
    %s540 = sor.u32 256, 88
    %541 = vbcast.lane.b32.xlu0 %v495, %s540
    %v542 = vpop.permute.xlu0 %541
    %s544 = sor.u32 256, 96
    %545 = vbcast.lane.b32.xlu0 %v495, %s544
    %v546 = vpop.permute.xlu0 %545
    %s548 = sor.u32 256, 104
    %549 = vbcast.lane.b32.xlu0 %v495, %s548
    %v550 = vpop.permute.xlu0 %549
    %s552 = sor.u32 256, 112
    %553 = vbcast.lane.b32.xlu0 %v495, %s552
    %v554 = vpop.permute.xlu0 %553
    %s556 = sor.u32 256, 120
    %557 = vbcast.lane.b32.xlu0 %v495, %s556
    %v558 = vpop.permute.xlu0 %557
    %v559 = vlaneseq
    %v560 = vand.u32 %v559, 127
    %v561 = vcvt.s32.f32 %v560
    %v562 = vmul.f32 %v561, 0.25
    %v563 = vadd.f32 %v562, -1.75
    %vm564 = vcmp.ge.f32.partialorder %v29, %v563
    %vm565 = vcmp.ge.f32.partialorder %v33, %v563
    %vm566 = vcmp.ge.f32.partialorder %v37, %v563
    %vm567 = vcmp.ge.f32.partialorder %v41, %v563
    %vm568 = vcmp.ge.f32.partialorder %v45, %v563
    %vm569 = vcmp.ge.f32.partialorder %v49, %v563
    %vm570 = vcmp.ge.f32.partialorder %v53, %v563
    %vm571 = vcmp.ge.f32.partialorder %v57, %v563
    %vm572 = vcmp.ge.f32.partialorder %v61, %v563
    %vm573 = vcmp.ge.f32.partialorder %v65, %v563
    %vm574 = vcmp.ge.f32.partialorder %v69, %v563
    %vm575 = vcmp.ge.f32.partialorder %v73, %v563
    %vm576 = vcmp.ge.f32.partialorder %v77, %v563
    %vm577 = vcmp.ge.f32.partialorder %v81, %v563
    %vm578 = vcmp.ge.f32.partialorder %v85, %v563
    %vm579 = vcmp.ge.f32.partialorder %v89, %v563
    %vm580 = vcmp.ge.f32.partialorder %v96, %v563
    %vm581 = vcmp.ge.f32.partialorder %v100, %v563
    %vm582 = vcmp.ge.f32.partialorder %v104, %v563
    %vm583 = vcmp.ge.f32.partialorder %v108, %v563
    %vm584 = vcmp.ge.f32.partialorder %v112, %v563
    %vm585 = vcmp.ge.f32.partialorder %v116, %v563
    %vm586 = vcmp.ge.f32.partialorder %v120, %v563
    %vm587 = vcmp.ge.f32.partialorder %v124, %v563
    %vm588 = vcmp.ge.f32.partialorder %v128, %v563
    %vm589 = vcmp.ge.f32.partialorder %v132, %v563
    %vm590 = vcmp.ge.f32.partialorder %v136, %v563
    %vm591 = vcmp.ge.f32.partialorder %v140, %v563
    %vm592 = vcmp.ge.f32.partialorder %v144, %v563
    %vm593 = vcmp.ge.f32.partialorder %v148, %v563
    %vm594 = vcmp.ge.f32.partialorder %v152, %v563
    %vm595 = vcmp.ge.f32.partialorder %v156, %v563
    %vm596 = vcmp.ge.f32.partialorder %v163, %v563
    %vm597 = vcmp.ge.f32.partialorder %v167, %v563
    %vm598 = vcmp.ge.f32.partialorder %v171, %v563
    %vm599 = vcmp.ge.f32.partialorder %v175, %v563
    %vm600 = vcmp.ge.f32.partialorder %v179, %v563
    %vm601 = vcmp.ge.f32.partialorder %v183, %v563
    %vm602 = vcmp.ge.f32.partialorder %v187, %v563
    %vm603 = vcmp.ge.f32.partialorder %v191, %v563
    %vm604 = vcmp.ge.f32.partialorder %v195, %v563
    %vm605 = vcmp.ge.f32.partialorder %v199, %v563
    %vm606 = vcmp.ge.f32.partialorder %v203, %v563
    %vm607 = vcmp.ge.f32.partialorder %v207, %v563
    %vm608 = vcmp.ge.f32.partialorder %v211, %v563
    %vm609 = vcmp.ge.f32.partialorder %v215, %v563
    %vm610 = vcmp.ge.f32.partialorder %v219, %v563
    %vm611 = vcmp.ge.f32.partialorder %v223, %v563
    %vm612 = vcmp.ge.f32.partialorder %v230, %v563
    %vm613 = vcmp.ge.f32.partialorder %v234, %v563
    %vm614 = vcmp.ge.f32.partialorder %v238, %v563
    %vm615 = vcmp.ge.f32.partialorder %v242, %v563
    %vm616 = vcmp.ge.f32.partialorder %v246, %v563
    %vm617 = vcmp.ge.f32.partialorder %v250, %v563
    %vm618 = vcmp.ge.f32.partialorder %v254, %v563
    %vm619 = vcmp.ge.f32.partialorder %v258, %v563
    %vm620 = vcmp.ge.f32.partialorder %v262, %v563
    %vm621 = vcmp.ge.f32.partialorder %v266, %v563
    %vm622 = vcmp.ge.f32.partialorder %v270, %v563
    %vm623 = vcmp.ge.f32.partialorder %v274, %v563
    %vm624 = vcmp.ge.f32.partialorder %v278, %v563
    %vm625 = vcmp.ge.f32.partialorder %v282, %v563
    %vm626 = vcmp.ge.f32.partialorder %v286, %v563
    %vm627 = vcmp.ge.f32.partialorder %v290, %v563
    %vm628 = vcmp.ge.f32.partialorder %v297, %v563
    %vm629 = vcmp.ge.f32.partialorder %v301, %v563
    %vm630 = vcmp.ge.f32.partialorder %v305, %v563
    %vm631 = vcmp.ge.f32.partialorder %v309, %v563
    %vm632 = vcmp.ge.f32.partialorder %v313, %v563
    %vm633 = vcmp.ge.f32.partialorder %v317, %v563
    %vm634 = vcmp.ge.f32.partialorder %v321, %v563
    %vm635 = vcmp.ge.f32.partialorder %v325, %v563
    %vm636 = vcmp.ge.f32.partialorder %v329, %v563
    %vm637 = vcmp.ge.f32.partialorder %v333, %v563
    %vm638 = vcmp.ge.f32.partialorder %v337, %v563
    %vm639 = vcmp.ge.f32.partialorder %v341, %v563
    %vm640 = vcmp.ge.f32.partialorder %v345, %v563
    %vm641 = vcmp.ge.f32.partialorder %v349, %v563
    %vm642 = vcmp.ge.f32.partialorder %v353, %v563
    %vm643 = vcmp.ge.f32.partialorder %v357, %v563
    %vm644 = vcmp.ge.f32.partialorder %v364, %v563
    %vm645 = vcmp.ge.f32.partialorder %v368, %v563
    %vm646 = vcmp.ge.f32.partialorder %v372, %v563
    %vm647 = vcmp.ge.f32.partialorder %v376, %v563
    %vm648 = vcmp.ge.f32.partialorder %v380, %v563
    %vm649 = vcmp.ge.f32.partialorder %v384, %v563
    %vm650 = vcmp.ge.f32.partialorder %v388, %v563
    %vm651 = vcmp.ge.f32.partialorder %v392, %v563
    %vm652 = vcmp.ge.f32.partialorder %v396, %v563
    %vm653 = vcmp.ge.f32.partialorder %v400, %v563
    %vm654 = vcmp.ge.f32.partialorder %v404, %v563
    %vm655 = vcmp.ge.f32.partialorder %v408, %v563
    %vm656 = vcmp.ge.f32.partialorder %v412, %v563
    %vm657 = vcmp.ge.f32.partialorder %v416, %v563
    %vm658 = vcmp.ge.f32.partialorder %v420, %v563
    %vm659 = vcmp.ge.f32.partialorder %v424, %v563
    %vm660 = vcmp.ge.f32.partialorder %v431, %v563
    %vm661 = vcmp.ge.f32.partialorder %v435, %v563
    %vm662 = vcmp.ge.f32.partialorder %v439, %v563
    %vm663 = vcmp.ge.f32.partialorder %v443, %v563
    %vm664 = vcmp.ge.f32.partialorder %v447, %v563
    %vm665 = vcmp.ge.f32.partialorder %v451, %v563
    %vm666 = vcmp.ge.f32.partialorder %v455, %v563
    %vm667 = vcmp.ge.f32.partialorder %v459, %v563
    %vm668 = vcmp.ge.f32.partialorder %v463, %v563
    %vm669 = vcmp.ge.f32.partialorder %v467, %v563
    %vm670 = vcmp.ge.f32.partialorder %v471, %v563
    %vm671 = vcmp.ge.f32.partialorder %v475, %v563
    %vm672 = vcmp.ge.f32.partialorder %v479, %v563
    %vm673 = vcmp.ge.f32.partialorder %v483, %v563
    %vm674 = vcmp.ge.f32.partialorder %v487, %v563
    %vm675 = vcmp.ge.f32.partialorder %v491, %v563
    %vm676 = vcmp.ge.f32.partialorder %v498, %v563
    %vm677 = vcmp.ge.f32.partialorder %v502, %v563
    %vm678 = vcmp.ge.f32.partialorder %v506, %v563
    %vm679 = vcmp.ge.f32.partialorder %v510, %v563
    %vm680 = vcmp.ge.f32.partialorder %v514, %v563
    %vm681 = vcmp.ge.f32.partialorder %v518, %v563
    %vm682 = vcmp.ge.f32.partialorder %v522, %v563
    %vm683 = vcmp.ge.f32.partialorder %v526, %v563
    %vm684 = vcmp.ge.f32.partialorder %v530, %v563
    %vm685 = vcmp.ge.f32.partialorder %v534, %v563
    %vm686 = vcmp.ge.f32.partialorder %v538, %v563
    %vm687 = vcmp.ge.f32.partialorder %v542, %v563
    %vm688 = vcmp.ge.f32.partialorder %v546, %v563
    %vm689 = vcmp.ge.f32.partialorder %v550, %v563
    %vm690 = vcmp.ge.f32.partialorder %v554, %v563
    %vm691 = vcmp.ge.f32.partialorder %v558, %v563
    %v692 = vadd.f32 %v563, 0.25
    %vm693 = vcmp.lt.f32.partialorder %v29, %v692
    %vm694 = vcmp.lt.f32.partialorder %v33, %v692
    %vm695 = vcmp.lt.f32.partialorder %v37, %v692
    %vm696 = vcmp.lt.f32.partialorder %v41, %v692
    %vm697 = vcmp.lt.f32.partialorder %v45, %v692
    %vm698 = vcmp.lt.f32.partialorder %v49, %v692
    %vm699 = vcmp.lt.f32.partialorder %v53, %v692
    %vm700 = vcmp.lt.f32.partialorder %v57, %v692
    %vm701 = vcmp.lt.f32.partialorder %v61, %v692
    %vm702 = vcmp.lt.f32.partialorder %v65, %v692
    %vm703 = vcmp.lt.f32.partialorder %v69, %v692
    %vm704 = vcmp.lt.f32.partialorder %v73, %v692
    %vm705 = vcmp.lt.f32.partialorder %v77, %v692
    %vm706 = vcmp.lt.f32.partialorder %v81, %v692
    %vm707 = vcmp.lt.f32.partialorder %v85, %v692
    %vm708 = vcmp.lt.f32.partialorder %v89, %v692
    %vm709 = vcmp.lt.f32.partialorder %v96, %v692
    %vm710 = vcmp.lt.f32.partialorder %v100, %v692
    %vm711 = vcmp.lt.f32.partialorder %v104, %v692
    %vm712 = vcmp.lt.f32.partialorder %v108, %v692
    %vm713 = vcmp.lt.f32.partialorder %v112, %v692
    %vm714 = vcmp.lt.f32.partialorder %v116, %v692
    %vm715 = vcmp.lt.f32.partialorder %v120, %v692
    %vm716 = vcmp.lt.f32.partialorder %v124, %v692
    %vm717 = vcmp.lt.f32.partialorder %v128, %v692
    %vm718 = vcmp.lt.f32.partialorder %v132, %v692
    %vm719 = vcmp.lt.f32.partialorder %v136, %v692
    %vm720 = vcmp.lt.f32.partialorder %v140, %v692
    %vm721 = vcmp.lt.f32.partialorder %v144, %v692
    %vm722 = vcmp.lt.f32.partialorder %v148, %v692
    %vm723 = vcmp.lt.f32.partialorder %v152, %v692
    %vm724 = vcmp.lt.f32.partialorder %v156, %v692
    %vm725 = vcmp.lt.f32.partialorder %v163, %v692
    %vm726 = vcmp.lt.f32.partialorder %v167, %v692
    %vm727 = vcmp.lt.f32.partialorder %v171, %v692
    %vm728 = vcmp.lt.f32.partialorder %v175, %v692
    %vm729 = vcmp.lt.f32.partialorder %v179, %v692
    %vm730 = vcmp.lt.f32.partialorder %v183, %v692
    %vm731 = vcmp.lt.f32.partialorder %v187, %v692
    %vm732 = vcmp.lt.f32.partialorder %v191, %v692
    %vm733 = vcmp.lt.f32.partialorder %v195, %v692
    %vm734 = vcmp.lt.f32.partialorder %v199, %v692
    %vm735 = vcmp.lt.f32.partialorder %v203, %v692
    %vm736 = vcmp.lt.f32.partialorder %v207, %v692
    %vm737 = vcmp.lt.f32.partialorder %v211, %v692
    %vm738 = vcmp.lt.f32.partialorder %v215, %v692
    %vm739 = vcmp.lt.f32.partialorder %v219, %v692
    %vm740 = vcmp.lt.f32.partialorder %v223, %v692
    %vm741 = vcmp.lt.f32.partialorder %v230, %v692
    %vm742 = vcmp.lt.f32.partialorder %v234, %v692
    %vm743 = vcmp.lt.f32.partialorder %v238, %v692
    %vm744 = vcmp.lt.f32.partialorder %v242, %v692
    %vm745 = vcmp.lt.f32.partialorder %v246, %v692
    %vm746 = vcmp.lt.f32.partialorder %v250, %v692
    %vm747 = vcmp.lt.f32.partialorder %v254, %v692
    %vm748 = vcmp.lt.f32.partialorder %v258, %v692
    %vm749 = vcmp.lt.f32.partialorder %v262, %v692
    %vm750 = vcmp.lt.f32.partialorder %v266, %v692
    %vm751 = vcmp.lt.f32.partialorder %v270, %v692
    %vm752 = vcmp.lt.f32.partialorder %v274, %v692
    %vm753 = vcmp.lt.f32.partialorder %v278, %v692
    %vm754 = vcmp.lt.f32.partialorder %v282, %v692
    %vm755 = vcmp.lt.f32.partialorder %v286, %v692
    %vm756 = vcmp.lt.f32.partialorder %v290, %v692
    %vm757 = vcmp.lt.f32.partialorder %v297, %v692
    %vm758 = vcmp.lt.f32.partialorder %v301, %v692
    %vm759 = vcmp.lt.f32.partialorder %v305, %v692
    %vm760 = vcmp.lt.f32.partialorder %v309, %v692
    %vm761 = vcmp.lt.f32.partialorder %v313, %v692
    %vm762 = vcmp.lt.f32.partialorder %v317, %v692
    %vm763 = vcmp.lt.f32.partialorder %v321, %v692
    %vm764 = vcmp.lt.f32.partialorder %v325, %v692
    %vm765 = vcmp.lt.f32.partialorder %v329, %v692
    %vm766 = vcmp.lt.f32.partialorder %v333, %v692
    %vm767 = vcmp.lt.f32.partialorder %v337, %v692
    %vm768 = vcmp.lt.f32.partialorder %v341, %v692
    %vm769 = vcmp.lt.f32.partialorder %v345, %v692
    %vm770 = vcmp.lt.f32.partialorder %v349, %v692
    %vm771 = vcmp.lt.f32.partialorder %v353, %v692
    %vm772 = vcmp.lt.f32.partialorder %v357, %v692
    %vm773 = vcmp.lt.f32.partialorder %v364, %v692
    %vm774 = vcmp.lt.f32.partialorder %v368, %v692
    %vm775 = vcmp.lt.f32.partialorder %v372, %v692
    %vm776 = vcmp.lt.f32.partialorder %v376, %v692
    %vm777 = vcmp.lt.f32.partialorder %v380, %v692
    %vm778 = vcmp.lt.f32.partialorder %v384, %v692
    %vm779 = vcmp.lt.f32.partialorder %v388, %v692
    %vm780 = vcmp.lt.f32.partialorder %v392, %v692
    %vm781 = vcmp.lt.f32.partialorder %v396, %v692
    %vm782 = vcmp.lt.f32.partialorder %v400, %v692
    %vm783 = vcmp.lt.f32.partialorder %v404, %v692
    %vm784 = vcmp.lt.f32.partialorder %v408, %v692
    %vm785 = vcmp.lt.f32.partialorder %v412, %v692
    %vm786 = vcmp.lt.f32.partialorder %v416, %v692
    %vm787 = vcmp.lt.f32.partialorder %v420, %v692
    %vm788 = vcmp.lt.f32.partialorder %v424, %v692
    %vm789 = vcmp.lt.f32.partialorder %v431, %v692
    %vm790 = vcmp.lt.f32.partialorder %v435, %v692
    %vm791 = vcmp.lt.f32.partialorder %v439, %v692
    %vm792 = vcmp.lt.f32.partialorder %v443, %v692
    %vm793 = vcmp.lt.f32.partialorder %v447, %v692
    %vm794 = vcmp.lt.f32.partialorder %v451, %v692
    %vm795 = vcmp.lt.f32.partialorder %v455, %v692
    %vm796 = vcmp.lt.f32.partialorder %v459, %v692
    %vm797 = vcmp.lt.f32.partialorder %v463, %v692
    %vm798 = vcmp.lt.f32.partialorder %v467, %v692
    %vm799 = vcmp.lt.f32.partialorder %v471, %v692
    %vm800 = vcmp.lt.f32.partialorder %v475, %v692
    %vm801 = vcmp.lt.f32.partialorder %v479, %v692
    %vm802 = vcmp.lt.f32.partialorder %v483, %v692
    %vm803 = vcmp.lt.f32.partialorder %v487, %v692
    %vm804 = vcmp.lt.f32.partialorder %v491, %v692
    %vm805 = vcmp.lt.f32.partialorder %v498, %v692
    %vm806 = vcmp.lt.f32.partialorder %v502, %v692
    %vm807 = vcmp.lt.f32.partialorder %v506, %v692
    %vm808 = vcmp.lt.f32.partialorder %v510, %v692
    %vm809 = vcmp.lt.f32.partialorder %v514, %v692
    %vm810 = vcmp.lt.f32.partialorder %v518, %v692
    %vm811 = vcmp.lt.f32.partialorder %v522, %v692
    %vm812 = vcmp.lt.f32.partialorder %v526, %v692
    %vm813 = vcmp.lt.f32.partialorder %v530, %v692
    %vm814 = vcmp.lt.f32.partialorder %v534, %v692
    %vm815 = vcmp.lt.f32.partialorder %v538, %v692
    %vm816 = vcmp.lt.f32.partialorder %v542, %v692
    %vm817 = vcmp.lt.f32.partialorder %v546, %v692
    %vm818 = vcmp.lt.f32.partialorder %v550, %v692
    %vm819 = vcmp.lt.f32.partialorder %v554, %v692
    %vm820 = vcmp.lt.f32.partialorder %v558, %v692
    %vm821 = vmand %vm564, %vm693
    %vm822 = vmand %vm565, %vm694
    %vm823 = vmand %vm566, %vm695
    %vm824 = vmand %vm567, %vm696
    %vm825 = vmand %vm568, %vm697
    %vm826 = vmand %vm569, %vm698
    %vm827 = vmand %vm570, %vm699
    %vm828 = vmand %vm571, %vm700
    %vm829 = vmand %vm572, %vm701
    %vm830 = vmand %vm573, %vm702
    %vm831 = vmand %vm574, %vm703
    %vm832 = vmand %vm575, %vm704
    %vm833 = vmand %vm576, %vm705
    %vm834 = vmand %vm577, %vm706
    %vm835 = vmand %vm578, %vm707
    %vm836 = vmand %vm579, %vm708
    %vm837 = vmand %vm580, %vm709
    %vm838 = vmand %vm581, %vm710
    %vm839 = vmand %vm582, %vm711
    %vm840 = vmand %vm583, %vm712
    %vm841 = vmand %vm584, %vm713
    %vm842 = vmand %vm585, %vm714
    %vm843 = vmand %vm586, %vm715
    %vm844 = vmand %vm587, %vm716
    %vm845 = vmand %vm588, %vm717
    %vm846 = vmand %vm589, %vm718
    %vm847 = vmand %vm590, %vm719
    %vm848 = vmand %vm591, %vm720
    %vm849 = vmand %vm592, %vm721
    %vm850 = vmand %vm593, %vm722
    %vm851 = vmand %vm594, %vm723
    %vm852 = vmand %vm595, %vm724
    %vm853 = vmand %vm596, %vm725
    %vm854 = vmand %vm597, %vm726
    %vm855 = vmand %vm598, %vm727
    %vm856 = vmand %vm599, %vm728
    %vm857 = vmand %vm600, %vm729
    %vm858 = vmand %vm601, %vm730
    %vm859 = vmand %vm602, %vm731
    %vm860 = vmand %vm603, %vm732
    %vm861 = vmand %vm604, %vm733
    %vm862 = vmand %vm605, %vm734
    %vm863 = vmand %vm606, %vm735
    %vm864 = vmand %vm607, %vm736
    %vm865 = vmand %vm608, %vm737
    %vm866 = vmand %vm609, %vm738
    %vm867 = vmand %vm610, %vm739
    %vm868 = vmand %vm611, %vm740
    %vm869 = vmand %vm612, %vm741
    %vm870 = vmand %vm613, %vm742
    %vm871 = vmand %vm614, %vm743
    %vm872 = vmand %vm615, %vm744
    %vm873 = vmand %vm616, %vm745
    %vm874 = vmand %vm617, %vm746
    %vm875 = vmand %vm618, %vm747
    %vm876 = vmand %vm619, %vm748
    %vm877 = vmand %vm620, %vm749
    %vm878 = vmand %vm621, %vm750
    %vm879 = vmand %vm622, %vm751
    %vm880 = vmand %vm623, %vm752
    %vm881 = vmand %vm624, %vm753
    %vm882 = vmand %vm625, %vm754
    %vm883 = vmand %vm626, %vm755
    %vm884 = vmand %vm627, %vm756
    %vm885 = vmand %vm628, %vm757
    %vm886 = vmand %vm629, %vm758
    %vm887 = vmand %vm630, %vm759
    %vm888 = vmand %vm631, %vm760
    %vm889 = vmand %vm632, %vm761
    %vm890 = vmand %vm633, %vm762
    %vm891 = vmand %vm634, %vm763
    %vm892 = vmand %vm635, %vm764
    %vm893 = vmand %vm636, %vm765
    %vm894 = vmand %vm637, %vm766
    %vm895 = vmand %vm638, %vm767
    %vm896 = vmand %vm639, %vm768
    %vm897 = vmand %vm640, %vm769
    %vm898 = vmand %vm641, %vm770
    %vm899 = vmand %vm642, %vm771
    %vm900 = vmand %vm643, %vm772
    %vm901 = vmand %vm644, %vm773
    %vm902 = vmand %vm645, %vm774
    %vm903 = vmand %vm646, %vm775
    %vm904 = vmand %vm647, %vm776
    %vm905 = vmand %vm648, %vm777
    %vm906 = vmand %vm649, %vm778
    %vm907 = vmand %vm650, %vm779
    %vm908 = vmand %vm651, %vm780
    %vm909 = vmand %vm652, %vm781
    %vm910 = vmand %vm653, %vm782
    %vm911 = vmand %vm654, %vm783
    %vm912 = vmand %vm655, %vm784
    %vm913 = vmand %vm656, %vm785
    %vm914 = vmand %vm657, %vm786
    %vm915 = vmand %vm658, %vm787
    %vm916 = vmand %vm659, %vm788
    %vm917 = vmand %vm660, %vm789
    %vm918 = vmand %vm661, %vm790
    %vm919 = vmand %vm662, %vm791
    %vm920 = vmand %vm663, %vm792
    %vm921 = vmand %vm664, %vm793
    %vm922 = vmand %vm665, %vm794
    %vm923 = vmand %vm666, %vm795
    %vm924 = vmand %vm667, %vm796
    %vm925 = vmand %vm668, %vm797
    %vm926 = vmand %vm669, %vm798
    %vm927 = vmand %vm670, %vm799
    %vm928 = vmand %vm671, %vm800
    %vm929 = vmand %vm672, %vm801
    %vm930 = vmand %vm673, %vm802
    %vm931 = vmand %vm674, %vm803
    %vm932 = vmand %vm675, %vm804
    %vm933 = vmand %vm676, %vm805
    %vm934 = vmand %vm677, %vm806
    %vm935 = vmand %vm678, %vm807
    %vm936 = vmand %vm679, %vm808
    %vm937 = vmand %vm680, %vm809
    %vm938 = vmand %vm681, %vm810
    %vm939 = vmand %vm682, %vm811
    %vm940 = vmand %vm683, %vm812
    %vm941 = vmand %vm684, %vm813
    %vm942 = vmand %vm685, %vm814
    %vm943 = vmand %vm686, %vm815
    %vm944 = vmand %vm687, %vm816
    %vm945 = vmand %vm688, %vm817
    %vm946 = vmand %vm689, %vm818
    %vm947 = vmand %vm690, %vm819
    %vm948 = vmand %vm691, %vm820
    %v949 = vsel %vm821, 1, 0
    %v950 = vsel %vm822, 1, 0
    %v951 = vsel %vm823, 1, 0
    %v952 = vsel %vm824, 1, 0
    %v953 = vsel %vm825, 1, 0
    %v954 = vsel %vm826, 1, 0
    %v955 = vsel %vm827, 1, 0
    %v956 = vsel %vm828, 1, 0
    %v957 = vsel %vm829, 1, 0
    %v958 = vsel %vm830, 1, 0
    %v959 = vsel %vm831, 1, 0
    %v960 = vsel %vm832, 1, 0
    %v961 = vsel %vm833, 1, 0
    %v962 = vsel %vm834, 1, 0
    %v963 = vsel %vm835, 1, 0
    %v964 = vsel %vm836, 1, 0
    %v965 = vsel %vm837, 1, 0
    %v966 = vsel %vm838, 1, 0
    %v967 = vsel %vm839, 1, 0
    %v968 = vsel %vm840, 1, 0
    %v969 = vsel %vm841, 1, 0
    %v970 = vsel %vm842, 1, 0
    %v971 = vsel %vm843, 1, 0
    %v972 = vsel %vm844, 1, 0
    %v973 = vsel %vm845, 1, 0
    %v974 = vsel %vm846, 1, 0
    %v975 = vsel %vm847, 1, 0
    %v976 = vsel %vm848, 1, 0
    %v977 = vsel %vm849, 1, 0
    %v978 = vsel %vm850, 1, 0
    %v979 = vsel %vm851, 1, 0
    %v980 = vsel %vm852, 1, 0
    %v981 = vsel %vm853, 1, 0
    %v982 = vsel %vm854, 1, 0
    %v983 = vsel %vm855, 1, 0
    %v984 = vsel %vm856, 1, 0
    %v985 = vsel %vm857, 1, 0
    %v986 = vsel %vm858, 1, 0
    %v987 = vsel %vm859, 1, 0
    %v988 = vsel %vm860, 1, 0
    %v989 = vsel %vm861, 1, 0
    %v990 = vsel %vm862, 1, 0
    %v991 = vsel %vm863, 1, 0
    %v992 = vsel %vm864, 1, 0
    %v993 = vsel %vm865, 1, 0
    %v994 = vsel %vm866, 1, 0
    %v995 = vsel %vm867, 1, 0
    %v996 = vsel %vm868, 1, 0
    %v997 = vsel %vm869, 1, 0
    %v998 = vsel %vm870, 1, 0
    %v999 = vsel %vm871, 1, 0
    %v1000 = vsel %vm872, 1, 0
    %v1001 = vsel %vm873, 1, 0
    %v1002 = vsel %vm874, 1, 0
    %v1003 = vsel %vm875, 1, 0
    %v1004 = vsel %vm876, 1, 0
    %v1005 = vsel %vm877, 1, 0
    %v1006 = vsel %vm878, 1, 0
    %v1007 = vsel %vm879, 1, 0
    %v1008 = vsel %vm880, 1, 0
    %v1009 = vsel %vm881, 1, 0
    %v1010 = vsel %vm882, 1, 0
    %v1011 = vsel %vm883, 1, 0
    %v1012 = vsel %vm884, 1, 0
    %v1013 = vsel %vm885, 1, 0
    %v1014 = vsel %vm886, 1, 0
    %v1015 = vsel %vm887, 1, 0
    %v1016 = vsel %vm888, 1, 0
    %v1017 = vsel %vm889, 1, 0
    %v1018 = vsel %vm890, 1, 0
    %v1019 = vsel %vm891, 1, 0
    %v1020 = vsel %vm892, 1, 0
    %v1021 = vsel %vm893, 1, 0
    %v1022 = vsel %vm894, 1, 0
    %v1023 = vsel %vm895, 1, 0
    %v1024 = vsel %vm896, 1, 0
    %v1025 = vsel %vm897, 1, 0
    %v1026 = vsel %vm898, 1, 0
    %v1027 = vsel %vm899, 1, 0
    %v1028 = vsel %vm900, 1, 0
    %v1029 = vsel %vm901, 1, 0
    %v1030 = vsel %vm902, 1, 0
    %v1031 = vsel %vm903, 1, 0
    %v1032 = vsel %vm904, 1, 0
    %v1033 = vsel %vm905, 1, 0
    %v1034 = vsel %vm906, 1, 0
    %v1035 = vsel %vm907, 1, 0
    %v1036 = vsel %vm908, 1, 0
    %v1037 = vsel %vm909, 1, 0
    %v1038 = vsel %vm910, 1, 0
    %v1039 = vsel %vm911, 1, 0
    %v1040 = vsel %vm912, 1, 0
    %v1041 = vsel %vm913, 1, 0
    %v1042 = vsel %vm914, 1, 0
    %v1043 = vsel %vm915, 1, 0
    %v1044 = vsel %vm916, 1, 0
    %v1045 = vsel %vm917, 1, 0
    %v1046 = vsel %vm918, 1, 0
    %v1047 = vsel %vm919, 1, 0
    %v1048 = vsel %vm920, 1, 0
    %v1049 = vsel %vm921, 1, 0
    %v1050 = vsel %vm922, 1, 0
    %v1051 = vsel %vm923, 1, 0
    %v1052 = vsel %vm924, 1, 0
    %v1053 = vsel %vm925, 1, 0
    %v1054 = vsel %vm926, 1, 0
    %v1055 = vsel %vm927, 1, 0
    %v1056 = vsel %vm928, 1, 0
    %v1057 = vsel %vm929, 1, 0
    %v1058 = vsel %vm930, 1, 0
    %v1059 = vsel %vm931, 1, 0
    %v1060 = vsel %vm932, 1, 0
    %v1061 = vsel %vm933, 1, 0
    %v1062 = vsel %vm934, 1, 0
    %v1063 = vsel %vm935, 1, 0
    %v1064 = vsel %vm936, 1, 0
    %v1065 = vsel %vm937, 1, 0
    %v1066 = vsel %vm938, 1, 0
    %v1067 = vsel %vm939, 1, 0
    %v1068 = vsel %vm940, 1, 0
    %v1069 = vsel %vm941, 1, 0
    %v1070 = vsel %vm942, 1, 0
    %v1071 = vsel %vm943, 1, 0
    %v1072 = vsel %vm944, 1, 0
    %v1073 = vsel %vm945, 1, 0
    %v1074 = vsel %vm946, 1, 0
    %v1075 = vsel %vm947, 1, 0
    %v1076 = vsel %vm948, 1, 0
    %v1077 = vcvt.s32.f32 %v949
    %v1078 = vcvt.s32.f32 %v950
    %v1079 = vcvt.s32.f32 %v951
    %v1080 = vcvt.s32.f32 %v952
    %v1081 = vcvt.s32.f32 %v953
    %v1082 = vcvt.s32.f32 %v954
    %v1083 = vcvt.s32.f32 %v955
    %v1084 = vcvt.s32.f32 %v956
    %v1085 = vcvt.s32.f32 %v957
    %v1086 = vcvt.s32.f32 %v958
    %v1087 = vcvt.s32.f32 %v959
    %v1088 = vcvt.s32.f32 %v960
    %v1089 = vcvt.s32.f32 %v961
    %v1090 = vcvt.s32.f32 %v962
    %v1091 = vcvt.s32.f32 %v963
    %v1092 = vcvt.s32.f32 %v964
    %v1093 = vcvt.s32.f32 %v965
    %v1094 = vcvt.s32.f32 %v966
    %v1095 = vcvt.s32.f32 %v967
    %v1096 = vcvt.s32.f32 %v968
    %v1097 = vcvt.s32.f32 %v969
    %v1098 = vcvt.s32.f32 %v970
    %v1099 = vcvt.s32.f32 %v971
    %v1100 = vcvt.s32.f32 %v972
    %v1101 = vcvt.s32.f32 %v973
    %v1102 = vcvt.s32.f32 %v974
    %v1103 = vcvt.s32.f32 %v975
    %v1104 = vcvt.s32.f32 %v976
    %v1105 = vcvt.s32.f32 %v977
    %v1106 = vcvt.s32.f32 %v978
    %v1107 = vcvt.s32.f32 %v979
    %v1108 = vcvt.s32.f32 %v980
    %v1109 = vcvt.s32.f32 %v981
    %v1110 = vcvt.s32.f32 %v982
    %v1111 = vcvt.s32.f32 %v983
    %v1112 = vcvt.s32.f32 %v984
    %v1113 = vcvt.s32.f32 %v985
    %v1114 = vcvt.s32.f32 %v986
    %v1115 = vcvt.s32.f32 %v987
    %v1116 = vcvt.s32.f32 %v988
    %v1117 = vcvt.s32.f32 %v989
    %v1118 = vcvt.s32.f32 %v990
    %v1119 = vcvt.s32.f32 %v991
    %v1120 = vcvt.s32.f32 %v992
    %v1121 = vcvt.s32.f32 %v993
    %v1122 = vcvt.s32.f32 %v994
    %v1123 = vcvt.s32.f32 %v995
    %v1124 = vcvt.s32.f32 %v996
    %v1125 = vcvt.s32.f32 %v997
    %v1126 = vcvt.s32.f32 %v998
    %v1127 = vcvt.s32.f32 %v999
    %v1128 = vcvt.s32.f32 %v1000
    %v1129 = vcvt.s32.f32 %v1001
    %v1130 = vcvt.s32.f32 %v1002
    %v1131 = vcvt.s32.f32 %v1003
    %v1132 = vcvt.s32.f32 %v1004
    %v1133 = vcvt.s32.f32 %v1005
    %v1134 = vcvt.s32.f32 %v1006
    %v1135 = vcvt.s32.f32 %v1007
    %v1136 = vcvt.s32.f32 %v1008
    %v1137 = vcvt.s32.f32 %v1009
    %v1138 = vcvt.s32.f32 %v1010
    %v1139 = vcvt.s32.f32 %v1011
    %v1140 = vcvt.s32.f32 %v1012
    %v1141 = vcvt.s32.f32 %v1013
    %v1142 = vcvt.s32.f32 %v1014
    %v1143 = vcvt.s32.f32 %v1015
    %v1144 = vcvt.s32.f32 %v1016
    %v1145 = vcvt.s32.f32 %v1017
    %v1146 = vcvt.s32.f32 %v1018
    %v1147 = vcvt.s32.f32 %v1019
    %v1148 = vcvt.s32.f32 %v1020
    %v1149 = vcvt.s32.f32 %v1021
    %v1150 = vcvt.s32.f32 %v1022
    %v1151 = vcvt.s32.f32 %v1023
    %v1152 = vcvt.s32.f32 %v1024
    %v1153 = vcvt.s32.f32 %v1025
    %v1154 = vcvt.s32.f32 %v1026
    %v1155 = vcvt.s32.f32 %v1027
    %v1156 = vcvt.s32.f32 %v1028
    %v1157 = vcvt.s32.f32 %v1029
    %v1158 = vcvt.s32.f32 %v1030
    %v1159 = vcvt.s32.f32 %v1031
    %v1160 = vcvt.s32.f32 %v1032
    %v1161 = vcvt.s32.f32 %v1033
    %v1162 = vcvt.s32.f32 %v1034
    %v1163 = vcvt.s32.f32 %v1035
    %v1164 = vcvt.s32.f32 %v1036
    %v1165 = vcvt.s32.f32 %v1037
    %v1166 = vcvt.s32.f32 %v1038
    %v1167 = vcvt.s32.f32 %v1039
    %v1168 = vcvt.s32.f32 %v1040
    %v1169 = vcvt.s32.f32 %v1041
    %v1170 = vcvt.s32.f32 %v1042
    %v1171 = vcvt.s32.f32 %v1043
    %v1172 = vcvt.s32.f32 %v1044
    %v1173 = vcvt.s32.f32 %v1045
    %v1174 = vcvt.s32.f32 %v1046
    %v1175 = vcvt.s32.f32 %v1047
    %v1176 = vcvt.s32.f32 %v1048
    %v1177 = vcvt.s32.f32 %v1049
    %v1178 = vcvt.s32.f32 %v1050
    %v1179 = vcvt.s32.f32 %v1051
    %v1180 = vcvt.s32.f32 %v1052
    %v1181 = vcvt.s32.f32 %v1053
    %v1182 = vcvt.s32.f32 %v1054
    %v1183 = vcvt.s32.f32 %v1055
    %v1184 = vcvt.s32.f32 %v1056
    %v1185 = vcvt.s32.f32 %v1057
    %v1186 = vcvt.s32.f32 %v1058
    %v1187 = vcvt.s32.f32 %v1059
    %v1188 = vcvt.s32.f32 %v1060
    %v1189 = vcvt.s32.f32 %v1061
    %v1190 = vcvt.s32.f32 %v1062
    %v1191 = vcvt.s32.f32 %v1063
    %v1192 = vcvt.s32.f32 %v1064
    %v1193 = vcvt.s32.f32 %v1065
    %v1194 = vcvt.s32.f32 %v1066
    %v1195 = vcvt.s32.f32 %v1067
    %v1196 = vcvt.s32.f32 %v1068
    %v1197 = vcvt.s32.f32 %v1069
    %v1198 = vcvt.s32.f32 %v1070
    %v1199 = vcvt.s32.f32 %v1071
    %v1200 = vcvt.s32.f32 %v1072
    %v1201 = vcvt.s32.f32 %v1073
    %v1202 = vcvt.s32.f32 %v1074
    %v1203 = vcvt.s32.f32 %v1075
    %v1204 = vcvt.s32.f32 %v1076
    %v1205 = vsub.f32 %v29, %v563
    %v1206 = vsub.f32 %v33, %v563
    %v1207 = vsub.f32 %v37, %v563
    %v1208 = vsub.f32 %v41, %v563
    %v1209 = vsub.f32 %v45, %v563
    %v1210 = vsub.f32 %v49, %v563
    %v1211 = vsub.f32 %v53, %v563
    %v1212 = vsub.f32 %v57, %v563
    %v1213 = vsub.f32 %v61, %v563
    %v1214 = vsub.f32 %v65, %v563
    %v1215 = vsub.f32 %v69, %v563
    %v1216 = vsub.f32 %v73, %v563
    %v1217 = vsub.f32 %v77, %v563
    %v1218 = vsub.f32 %v81, %v563
    %v1219 = vsub.f32 %v85, %v563
    %v1220 = vsub.f32 %v89, %v563
    %v1221 = vsub.f32 %v96, %v563
    %v1222 = vsub.f32 %v100, %v563
    %v1223 = vsub.f32 %v104, %v563
    %v1224 = vsub.f32 %v108, %v563
    %v1225 = vsub.f32 %v112, %v563
    %v1226 = vsub.f32 %v116, %v563
    %v1227 = vsub.f32 %v120, %v563
    %v1228 = vsub.f32 %v124, %v563
    %v1229 = vsub.f32 %v128, %v563
    %v1230 = vsub.f32 %v132, %v563
    %v1231 = vsub.f32 %v136, %v563
    %v1232 = vsub.f32 %v140, %v563
    %v1233 = vsub.f32 %v144, %v563
    %v1234 = vsub.f32 %v148, %v563
    %v1235 = vsub.f32 %v152, %v563
    %v1236 = vsub.f32 %v156, %v563
    %v1237 = vsub.f32 %v163, %v563
    %v1238 = vsub.f32 %v167, %v563
    %v1239 = vsub.f32 %v171, %v563
    %v1240 = vsub.f32 %v175, %v563
    %v1241 = vsub.f32 %v179, %v563
    %v1242 = vsub.f32 %v183, %v563
    %v1243 = vsub.f32 %v187, %v563
    %v1244 = vsub.f32 %v191, %v563
    %v1245 = vsub.f32 %v195, %v563
    %v1246 = vsub.f32 %v199, %v563
    %v1247 = vsub.f32 %v203, %v563
    %v1248 = vsub.f32 %v207, %v563
    %v1249 = vsub.f32 %v211, %v563
    %v1250 = vsub.f32 %v215, %v563
    %v1251 = vsub.f32 %v219, %v563
    %v1252 = vsub.f32 %v223, %v563
    %v1253 = vsub.f32 %v230, %v563
    %v1254 = vsub.f32 %v234, %v563
    %v1255 = vsub.f32 %v238, %v563
    %v1256 = vsub.f32 %v242, %v563
    %v1257 = vsub.f32 %v246, %v563
    %v1258 = vsub.f32 %v250, %v563
    %v1259 = vsub.f32 %v254, %v563
    %v1260 = vsub.f32 %v258, %v563
    %v1261 = vsub.f32 %v262, %v563
    %v1262 = vsub.f32 %v266, %v563
    %v1263 = vsub.f32 %v270, %v563
    %v1264 = vsub.f32 %v274, %v563
    %v1265 = vsub.f32 %v278, %v563
    %v1266 = vsub.f32 %v282, %v563
    %v1267 = vsub.f32 %v286, %v563
    %v1268 = vsub.f32 %v290, %v563
    %v1269 = vsub.f32 %v297, %v563
    %v1270 = vsub.f32 %v301, %v563
    %v1271 = vsub.f32 %v305, %v563
    %v1272 = vsub.f32 %v309, %v563
    %v1273 = vsub.f32 %v313, %v563
    %v1274 = vsub.f32 %v317, %v563
    %v1275 = vsub.f32 %v321, %v563
    %v1276 = vsub.f32 %v325, %v563
    %v1277 = vsub.f32 %v329, %v563
    %v1278 = vsub.f32 %v333, %v563
    %v1279 = vsub.f32 %v337, %v563
    %v1280 = vsub.f32 %v341, %v563
    %v1281 = vsub.f32 %v345, %v563
    %v1282 = vsub.f32 %v349, %v563
    %v1283 = vsub.f32 %v353, %v563
    %v1284 = vsub.f32 %v357, %v563
    %v1285 = vsub.f32 %v364, %v563
    %v1286 = vsub.f32 %v368, %v563
    %v1287 = vsub.f32 %v372, %v563
    %v1288 = vsub.f32 %v376, %v563
    %v1289 = vsub.f32 %v380, %v563
    %v1290 = vsub.f32 %v384, %v563
    %v1291 = vsub.f32 %v388, %v563
    %v1292 = vsub.f32 %v392, %v563
    %v1293 = vsub.f32 %v396, %v563
    %v1294 = vsub.f32 %v400, %v563
    %v1295 = vsub.f32 %v404, %v563
    %v1296 = vsub.f32 %v408, %v563
    %v1297 = vsub.f32 %v412, %v563
    %v1298 = vsub.f32 %v416, %v563
    %v1299 = vsub.f32 %v420, %v563
    %v1300 = vsub.f32 %v424, %v563
    %v1301 = vsub.f32 %v431, %v563
    %v1302 = vsub.f32 %v435, %v563
    %v1303 = vsub.f32 %v439, %v563
    %v1304 = vsub.f32 %v443, %v563
    %v1305 = vsub.f32 %v447, %v563
    %v1306 = vsub.f32 %v451, %v563
    %v1307 = vsub.f32 %v455, %v563
    %v1308 = vsub.f32 %v459, %v563
    %v1309 = vsub.f32 %v463, %v563
    %v1310 = vsub.f32 %v467, %v563
    %v1311 = vsub.f32 %v471, %v563
    %v1312 = vsub.f32 %v475, %v563
    %v1313 = vsub.f32 %v479, %v563
    %v1314 = vsub.f32 %v483, %v563
    %v1315 = vsub.f32 %v487, %v563
    %v1316 = vsub.f32 %v491, %v563
    %v1317 = vsub.f32 %v498, %v563
    %v1318 = vsub.f32 %v502, %v563
    %v1319 = vsub.f32 %v506, %v563
    %v1320 = vsub.f32 %v510, %v563
    %v1321 = vsub.f32 %v514, %v563
    %v1322 = vsub.f32 %v518, %v563
    %v1323 = vsub.f32 %v522, %v563
    %v1324 = vsub.f32 %v526, %v563
    %v1325 = vsub.f32 %v530, %v563
    %v1326 = vsub.f32 %v534, %v563
    %v1327 = vsub.f32 %v538, %v563
    %v1328 = vsub.f32 %v542, %v563
    %v1329 = vsub.f32 %v546, %v563
    %v1330 = vsub.f32 %v550, %v563
    %v1331 = vsub.f32 %v554, %v563
    %v1332 = vsub.f32 %v558, %v563
    %v1333 = vrcp.pop 0.25
    %v1334 = vmul.f32 %v1205, %v1333
    %v1335 = vmul.f32 %v1206, %v1333
    %v1336 = vmul.f32 %v1207, %v1333
    %v1337 = vmul.f32 %v1208, %v1333
    %v1338 = vmul.f32 %v1209, %v1333
    %v1339 = vmul.f32 %v1210, %v1333
    %v1340 = vmul.f32 %v1211, %v1333
    %v1341 = vmul.f32 %v1212, %v1333
    %v1342 = vmul.f32 %v1213, %v1333
    %v1343 = vmul.f32 %v1214, %v1333
    %v1344 = vmul.f32 %v1215, %v1333
    %v1345 = vmul.f32 %v1216, %v1333
    %v1346 = vmul.f32 %v1217, %v1333
    %v1347 = vmul.f32 %v1218, %v1333
    %v1348 = vmul.f32 %v1219, %v1333
    %v1349 = vmul.f32 %v1220, %v1333
    %v1350 = vmul.f32 %v1221, %v1333
    %v1351 = vmul.f32 %v1222, %v1333
    %v1352 = vmul.f32 %v1223, %v1333
    %v1353 = vmul.f32 %v1224, %v1333
    %v1354 = vmul.f32 %v1225, %v1333
    %v1355 = vmul.f32 %v1226, %v1333
    %v1356 = vmul.f32 %v1227, %v1333
    %v1357 = vmul.f32 %v1228, %v1333
    %v1358 = vmul.f32 %v1229, %v1333
    %v1359 = vmul.f32 %v1230, %v1333
    %v1360 = vmul.f32 %v1231, %v1333
    %v1361 = vmul.f32 %v1232, %v1333
    %v1362 = vmul.f32 %v1233, %v1333
    %v1363 = vmul.f32 %v1234, %v1333
    %v1364 = vmul.f32 %v1235, %v1333
    %v1365 = vmul.f32 %v1236, %v1333
    %v1366 = vmul.f32 %v1237, %v1333
    %v1367 = vmul.f32 %v1238, %v1333
    %v1368 = vmul.f32 %v1239, %v1333
    %v1369 = vmul.f32 %v1240, %v1333
    %v1370 = vmul.f32 %v1241, %v1333
    %v1371 = vmul.f32 %v1242, %v1333
    %v1372 = vmul.f32 %v1243, %v1333
    %v1373 = vmul.f32 %v1244, %v1333
    %v1374 = vmul.f32 %v1245, %v1333
    %v1375 = vmul.f32 %v1246, %v1333
    %v1376 = vmul.f32 %v1247, %v1333
    %v1377 = vmul.f32 %v1248, %v1333
    %v1378 = vmul.f32 %v1249, %v1333
    %v1379 = vmul.f32 %v1250, %v1333
    %v1380 = vmul.f32 %v1251, %v1333
    %v1381 = vmul.f32 %v1252, %v1333
    %v1382 = vmul.f32 %v1253, %v1333
    %v1383 = vmul.f32 %v1254, %v1333
    %v1384 = vmul.f32 %v1255, %v1333
    %v1385 = vmul.f32 %v1256, %v1333
    %v1386 = vmul.f32 %v1257, %v1333
    %v1387 = vmul.f32 %v1258, %v1333
    %v1388 = vmul.f32 %v1259, %v1333
    %v1389 = vmul.f32 %v1260, %v1333
    %v1390 = vmul.f32 %v1261, %v1333
    %v1391 = vmul.f32 %v1262, %v1333
    %v1392 = vmul.f32 %v1263, %v1333
    %v1393 = vmul.f32 %v1264, %v1333
    %v1394 = vmul.f32 %v1265, %v1333
    %v1395 = vmul.f32 %v1266, %v1333
    %v1396 = vmul.f32 %v1267, %v1333
    %v1397 = vmul.f32 %v1268, %v1333
    %v1398 = vmul.f32 %v1269, %v1333
    %v1399 = vmul.f32 %v1270, %v1333
    %v1400 = vmul.f32 %v1271, %v1333
    %v1401 = vmul.f32 %v1272, %v1333
    %v1402 = vmul.f32 %v1273, %v1333
    %v1403 = vmul.f32 %v1274, %v1333
    %v1404 = vmul.f32 %v1275, %v1333
    %v1405 = vmul.f32 %v1276, %v1333
    %v1406 = vmul.f32 %v1277, %v1333
    %v1407 = vmul.f32 %v1278, %v1333
    %v1408 = vmul.f32 %v1279, %v1333
    %v1409 = vmul.f32 %v1280, %v1333
    %v1410 = vmul.f32 %v1281, %v1333
    %v1411 = vmul.f32 %v1282, %v1333
    %v1412 = vmul.f32 %v1283, %v1333
    %v1413 = vmul.f32 %v1284, %v1333
    %v1414 = vmul.f32 %v1285, %v1333
    %v1415 = vmul.f32 %v1286, %v1333
    %v1416 = vmul.f32 %v1287, %v1333
    %v1417 = vmul.f32 %v1288, %v1333
    %v1418 = vmul.f32 %v1289, %v1333
    %v1419 = vmul.f32 %v1290, %v1333
    %v1420 = vmul.f32 %v1291, %v1333
    %v1421 = vmul.f32 %v1292, %v1333
    %v1422 = vmul.f32 %v1293, %v1333
    %v1423 = vmul.f32 %v1294, %v1333
    %v1424 = vmul.f32 %v1295, %v1333
    %v1425 = vmul.f32 %v1296, %v1333
    %v1426 = vmul.f32 %v1297, %v1333
    %v1427 = vmul.f32 %v1298, %v1333
    %v1428 = vmul.f32 %v1299, %v1333
    %v1429 = vmul.f32 %v1300, %v1333
    %v1430 = vmul.f32 %v1301, %v1333
    %v1431 = vmul.f32 %v1302, %v1333
    %v1432 = vmul.f32 %v1303, %v1333
    %v1433 = vmul.f32 %v1304, %v1333
    %v1434 = vmul.f32 %v1305, %v1333
    %v1435 = vmul.f32 %v1306, %v1333
    %v1436 = vmul.f32 %v1307, %v1333
    %v1437 = vmul.f32 %v1308, %v1333
    %v1438 = vmul.f32 %v1309, %v1333
    %v1439 = vmul.f32 %v1310, %v1333
    %v1440 = vmul.f32 %v1311, %v1333
    %v1441 = vmul.f32 %v1312, %v1333
    %v1442 = vmul.f32 %v1313, %v1333
    %v1443 = vmul.f32 %v1314, %v1333
    %v1444 = vmul.f32 %v1315, %v1333
    %v1445 = vmul.f32 %v1316, %v1333
    %v1446 = vmul.f32 %v1317, %v1333
    %v1447 = vmul.f32 %v1318, %v1333
    %v1448 = vmul.f32 %v1319, %v1333
    %v1449 = vmul.f32 %v1320, %v1333
    %v1450 = vmul.f32 %v1321, %v1333
    %v1451 = vmul.f32 %v1322, %v1333
    %v1452 = vmul.f32 %v1323, %v1333
    %v1453 = vmul.f32 %v1324, %v1333
    %v1454 = vmul.f32 %v1325, %v1333
    %v1455 = vmul.f32 %v1326, %v1333
    %v1456 = vmul.f32 %v1327, %v1333
    %v1457 = vmul.f32 %v1328, %v1333
    %v1458 = vmul.f32 %v1329, %v1333
    %v1459 = vmul.f32 %v1330, %v1333
    %v1460 = vmul.f32 %v1331, %v1333
    %v1461 = vmul.f32 %v1332, %v1333
    %v1462 = vmul.f32 %v1334, %v1077
    %v1463 = vmul.f32 %v1335, %v1078
    %v1464 = vmul.f32 %v1336, %v1079
    %v1465 = vmul.f32 %v1337, %v1080
    %v1466 = vmul.f32 %v1338, %v1081
    %v1467 = vmul.f32 %v1339, %v1082
    %v1468 = vmul.f32 %v1340, %v1083
    %v1469 = vmul.f32 %v1341, %v1084
    %v1470 = vmul.f32 %v1342, %v1085
    %v1471 = vmul.f32 %v1343, %v1086
    %v1472 = vmul.f32 %v1344, %v1087
    %v1473 = vmul.f32 %v1345, %v1088
    %v1474 = vmul.f32 %v1346, %v1089
    %v1475 = vmul.f32 %v1347, %v1090
    %v1476 = vmul.f32 %v1348, %v1091
    %v1477 = vmul.f32 %v1349, %v1092
    %v1478 = vmul.f32 %v1350, %v1093
    %v1479 = vmul.f32 %v1351, %v1094
    %v1480 = vmul.f32 %v1352, %v1095
    %v1481 = vmul.f32 %v1353, %v1096
    %v1482 = vmul.f32 %v1354, %v1097
    %v1483 = vmul.f32 %v1355, %v1098
    %v1484 = vmul.f32 %v1356, %v1099
    %v1485 = vmul.f32 %v1357, %v1100
    %v1486 = vmul.f32 %v1358, %v1101
    %v1487 = vmul.f32 %v1359, %v1102
    %v1488 = vmul.f32 %v1360, %v1103
    %v1489 = vmul.f32 %v1361, %v1104
    %v1490 = vmul.f32 %v1362, %v1105
    %v1491 = vmul.f32 %v1363, %v1106
    %v1492 = vmul.f32 %v1364, %v1107
    %v1493 = vmul.f32 %v1365, %v1108
    %v1494 = vmul.f32 %v1366, %v1109
    %v1495 = vmul.f32 %v1367, %v1110
    %v1496 = vmul.f32 %v1368, %v1111
    %v1497 = vmul.f32 %v1369, %v1112
    %v1498 = vmul.f32 %v1370, %v1113
    %v1499 = vmul.f32 %v1371, %v1114
    %v1500 = vmul.f32 %v1372, %v1115
    %v1501 = vmul.f32 %v1373, %v1116
    %v1502 = vmul.f32 %v1374, %v1117
    %v1503 = vmul.f32 %v1375, %v1118
    %v1504 = vmul.f32 %v1376, %v1119
    %v1505 = vmul.f32 %v1377, %v1120
    %v1506 = vmul.f32 %v1378, %v1121
    %v1507 = vmul.f32 %v1379, %v1122
    %v1508 = vmul.f32 %v1380, %v1123
    %v1509 = vmul.f32 %v1381, %v1124
    %v1510 = vmul.f32 %v1382, %v1125
    %v1511 = vmul.f32 %v1383, %v1126
    %v1512 = vmul.f32 %v1384, %v1127
    %v1513 = vmul.f32 %v1385, %v1128
    %v1514 = vmul.f32 %v1386, %v1129
    %v1515 = vmul.f32 %v1387, %v1130
    %v1516 = vmul.f32 %v1388, %v1131
    %v1517 = vmul.f32 %v1389, %v1132
    %v1518 = vmul.f32 %v1390, %v1133
    %v1519 = vmul.f32 %v1391, %v1134
    %v1520 = vmul.f32 %v1392, %v1135
    %v1521 = vmul.f32 %v1393, %v1136
    %v1522 = vmul.f32 %v1394, %v1137
    %v1523 = vmul.f32 %v1395, %v1138
    %v1524 = vmul.f32 %v1396, %v1139
    %v1525 = vmul.f32 %v1397, %v1140
    %v1526 = vmul.f32 %v1398, %v1141
    %v1527 = vmul.f32 %v1399, %v1142
    %v1528 = vmul.f32 %v1400, %v1143
    %v1529 = vmul.f32 %v1401, %v1144
    %v1530 = vmul.f32 %v1402, %v1145
    %v1531 = vmul.f32 %v1403, %v1146
    %v1532 = vmul.f32 %v1404, %v1147
    %v1533 = vmul.f32 %v1405, %v1148
    %v1534 = vmul.f32 %v1406, %v1149
    %v1535 = vmul.f32 %v1407, %v1150
    %v1536 = vmul.f32 %v1408, %v1151
    %v1537 = vmul.f32 %v1409, %v1152
    %v1538 = vmul.f32 %v1410, %v1153
    %v1539 = vmul.f32 %v1411, %v1154
    %v1540 = vmul.f32 %v1412, %v1155
    %v1541 = vmul.f32 %v1413, %v1156
    %v1542 = vmul.f32 %v1414, %v1157
    %v1543 = vmul.f32 %v1415, %v1158
    %v1544 = vmul.f32 %v1416, %v1159
    %v1545 = vmul.f32 %v1417, %v1160
    %v1546 = vmul.f32 %v1418, %v1161
    %v1547 = vmul.f32 %v1419, %v1162
    %v1548 = vmul.f32 %v1420, %v1163
    %v1549 = vmul.f32 %v1421, %v1164
    %v1550 = vmul.f32 %v1422, %v1165
    %v1551 = vmul.f32 %v1423, %v1166
    %v1552 = vmul.f32 %v1424, %v1167
    %v1553 = vmul.f32 %v1425, %v1168
    %v1554 = vmul.f32 %v1426, %v1169
    %v1555 = vmul.f32 %v1427, %v1170
    %v1556 = vmul.f32 %v1428, %v1171
    %v1557 = vmul.f32 %v1429, %v1172
    %v1558 = vmul.f32 %v1430, %v1173
    %v1559 = vmul.f32 %v1431, %v1174
    %v1560 = vmul.f32 %v1432, %v1175
    %v1561 = vmul.f32 %v1433, %v1176
    %v1562 = vmul.f32 %v1434, %v1177
    %v1563 = vmul.f32 %v1435, %v1178
    %v1564 = vmul.f32 %v1436, %v1179
    %v1565 = vmul.f32 %v1437, %v1180
    %v1566 = vmul.f32 %v1438, %v1181
    %v1567 = vmul.f32 %v1439, %v1182
    %v1568 = vmul.f32 %v1440, %v1183
    %v1569 = vmul.f32 %v1441, %v1184
    %v1570 = vmul.f32 %v1442, %v1185
    %v1571 = vmul.f32 %v1443, %v1186
    %v1572 = vmul.f32 %v1444, %v1187
    %v1573 = vmul.f32 %v1445, %v1188
    %v1574 = vmul.f32 %v1446, %v1189
    %v1575 = vmul.f32 %v1447, %v1190
    %v1576 = vmul.f32 %v1448, %v1191
    %v1577 = vmul.f32 %v1449, %v1192
    %v1578 = vmul.f32 %v1450, %v1193
    %v1579 = vmul.f32 %v1451, %v1194
    %v1580 = vmul.f32 %v1452, %v1195
    %v1581 = vmul.f32 %v1453, %v1196
    %v1582 = vmul.f32 %v1454, %v1197
    %v1583 = vmul.f32 %v1455, %v1198
    %v1584 = vmul.f32 %v1456, %v1199
    %v1585 = vmul.f32 %v1457, %v1200
    %v1586 = vmul.f32 %v1458, %v1201
    %v1587 = vmul.f32 %v1459, %v1202
    %v1588 = vmul.f32 %v1460, %v1203
    %v1589 = vmul.f32 %v1461, %v1204
    %v1590 = vadd.f32 %v563, 0.5
    %v1591 = vsub.f32 %v1590, %v29
    %v1592 = vsub.f32 %v1590, %v33
    %v1593 = vsub.f32 %v1590, %v37
    %v1594 = vsub.f32 %v1590, %v41
    %v1595 = vsub.f32 %v1590, %v45
    %v1596 = vsub.f32 %v1590, %v49
    %v1597 = vsub.f32 %v1590, %v53
    %v1598 = vsub.f32 %v1590, %v57
    %v1599 = vsub.f32 %v1590, %v61
    %v1600 = vsub.f32 %v1590, %v65
    %v1601 = vsub.f32 %v1590, %v69
    %v1602 = vsub.f32 %v1590, %v73
    %v1603 = vsub.f32 %v1590, %v77
    %v1604 = vsub.f32 %v1590, %v81
    %v1605 = vsub.f32 %v1590, %v85
    %v1606 = vsub.f32 %v1590, %v89
    %v1607 = vsub.f32 %v1590, %v96
    %v1608 = vsub.f32 %v1590, %v100
    %v1609 = vsub.f32 %v1590, %v104
    %v1610 = vsub.f32 %v1590, %v108
    %v1611 = vsub.f32 %v1590, %v112
    %v1612 = vsub.f32 %v1590, %v116
    %v1613 = vsub.f32 %v1590, %v120
    %v1614 = vsub.f32 %v1590, %v124
    %v1615 = vsub.f32 %v1590, %v128
    %v1616 = vsub.f32 %v1590, %v132
    %v1617 = vsub.f32 %v1590, %v136
    %v1618 = vsub.f32 %v1590, %v140
    %v1619 = vsub.f32 %v1590, %v144
    %v1620 = vsub.f32 %v1590, %v148
    %v1621 = vsub.f32 %v1590, %v152
    %v1622 = vsub.f32 %v1590, %v156
    %v1623 = vsub.f32 %v1590, %v163
    %v1624 = vsub.f32 %v1590, %v167
    %v1625 = vsub.f32 %v1590, %v171
    %v1626 = vsub.f32 %v1590, %v175
    %v1627 = vsub.f32 %v1590, %v179
    %v1628 = vsub.f32 %v1590, %v183
    %v1629 = vsub.f32 %v1590, %v187
    %v1630 = vsub.f32 %v1590, %v191
    %v1631 = vsub.f32 %v1590, %v195
    %v1632 = vsub.f32 %v1590, %v199
    %v1633 = vsub.f32 %v1590, %v203
    %v1634 = vsub.f32 %v1590, %v207
    %v1635 = vsub.f32 %v1590, %v211
    %v1636 = vsub.f32 %v1590, %v215
    %v1637 = vsub.f32 %v1590, %v219
    %v1638 = vsub.f32 %v1590, %v223
    %v1639 = vsub.f32 %v1590, %v230
    %v1640 = vsub.f32 %v1590, %v234
    %v1641 = vsub.f32 %v1590, %v238
    %v1642 = vsub.f32 %v1590, %v242
    %v1643 = vsub.f32 %v1590, %v246
    %v1644 = vsub.f32 %v1590, %v250
    %v1645 = vsub.f32 %v1590, %v254
    %v1646 = vsub.f32 %v1590, %v258
    %v1647 = vsub.f32 %v1590, %v262
    %v1648 = vsub.f32 %v1590, %v266
    %v1649 = vsub.f32 %v1590, %v270
    %v1650 = vsub.f32 %v1590, %v274
    %v1651 = vsub.f32 %v1590, %v278
    %v1652 = vsub.f32 %v1590, %v282
    %v1653 = vsub.f32 %v1590, %v286
    %v1654 = vsub.f32 %v1590, %v290
    %v1655 = vsub.f32 %v1590, %v297
    %v1656 = vsub.f32 %v1590, %v301
    %v1657 = vsub.f32 %v1590, %v305
    %v1658 = vsub.f32 %v1590, %v309
    %v1659 = vsub.f32 %v1590, %v313
    %v1660 = vsub.f32 %v1590, %v317
    %v1661 = vsub.f32 %v1590, %v321
    %v1662 = vsub.f32 %v1590, %v325
    %v1663 = vsub.f32 %v1590, %v329
    %v1664 = vsub.f32 %v1590, %v333
    %v1665 = vsub.f32 %v1590, %v337
    %v1666 = vsub.f32 %v1590, %v341
    %v1667 = vsub.f32 %v1590, %v345
    %v1668 = vsub.f32 %v1590, %v349
    %v1669 = vsub.f32 %v1590, %v353
    %v1670 = vsub.f32 %v1590, %v357
    %v1671 = vsub.f32 %v1590, %v364
    %v1672 = vsub.f32 %v1590, %v368
    %v1673 = vsub.f32 %v1590, %v372
    %v1674 = vsub.f32 %v1590, %v376
    %v1675 = vsub.f32 %v1590, %v380
    %v1676 = vsub.f32 %v1590, %v384
    %v1677 = vsub.f32 %v1590, %v388
    %v1678 = vsub.f32 %v1590, %v392
    %v1679 = vsub.f32 %v1590, %v396
    %v1680 = vsub.f32 %v1590, %v400
    %v1681 = vsub.f32 %v1590, %v404
    %v1682 = vsub.f32 %v1590, %v408
    %v1683 = vsub.f32 %v1590, %v412
    %v1684 = vsub.f32 %v1590, %v416
    %v1685 = vsub.f32 %v1590, %v420
    %v1686 = vsub.f32 %v1590, %v424
    %v1687 = vsub.f32 %v1590, %v431
    %v1688 = vsub.f32 %v1590, %v435
    %v1689 = vsub.f32 %v1590, %v439
    %v1690 = vsub.f32 %v1590, %v443
    %v1691 = vsub.f32 %v1590, %v447
    %v1692 = vsub.f32 %v1590, %v451
    %v1693 = vsub.f32 %v1590, %v455
    %v1694 = vsub.f32 %v1590, %v459
    %v1695 = vsub.f32 %v1590, %v463
    %v1696 = vsub.f32 %v1590, %v467
    %v1697 = vsub.f32 %v1590, %v471
    %v1698 = vsub.f32 %v1590, %v475
    %v1699 = vsub.f32 %v1590, %v479
    %v1700 = vsub.f32 %v1590, %v483
    %v1701 = vsub.f32 %v1590, %v487
    %v1702 = vsub.f32 %v1590, %v491
    %v1703 = vsub.f32 %v1590, %v498
    %v1704 = vsub.f32 %v1590, %v502
    %v1705 = vsub.f32 %v1590, %v506
    %v1706 = vsub.f32 %v1590, %v510
    %v1707 = vsub.f32 %v1590, %v514
    %v1708 = vsub.f32 %v1590, %v518
    %v1709 = vsub.f32 %v1590, %v522
    %v1710 = vsub.f32 %v1590, %v526
    %v1711 = vsub.f32 %v1590, %v530
    %v1712 = vsub.f32 %v1590, %v534
    %v1713 = vsub.f32 %v1590, %v538
    %v1714 = vsub.f32 %v1590, %v542
    %v1715 = vsub.f32 %v1590, %v546
    %v1716 = vsub.f32 %v1590, %v550
    %v1717 = vsub.f32 %v1590, %v554
    %v1718 = vsub.f32 %v1590, %v558
    %v1719 = vmul.f32 %v1591, %v1333
    %v1720 = vmul.f32 %v1592, %v1333
    %v1721 = vmul.f32 %v1593, %v1333
    %v1722 = vmul.f32 %v1594, %v1333
    %v1723 = vmul.f32 %v1595, %v1333
    %v1724 = vmul.f32 %v1596, %v1333
    %v1725 = vmul.f32 %v1597, %v1333
    %v1726 = vmul.f32 %v1598, %v1333
    %v1727 = vmul.f32 %v1599, %v1333
    %v1728 = vmul.f32 %v1600, %v1333
    %v1729 = vmul.f32 %v1601, %v1333
    %v1730 = vmul.f32 %v1602, %v1333
    %v1731 = vmul.f32 %v1603, %v1333
    %v1732 = vmul.f32 %v1604, %v1333
    %v1733 = vmul.f32 %v1605, %v1333
    %v1734 = vmul.f32 %v1606, %v1333
    %v1735 = vmul.f32 %v1607, %v1333
    %v1736 = vmul.f32 %v1608, %v1333
    %v1737 = vmul.f32 %v1609, %v1333
    %v1738 = vmul.f32 %v1610, %v1333
    %v1739 = vmul.f32 %v1611, %v1333
    %v1740 = vmul.f32 %v1612, %v1333
    %v1741 = vmul.f32 %v1613, %v1333
    %v1742 = vmul.f32 %v1614, %v1333
    %v1743 = vmul.f32 %v1615, %v1333
    %v1744 = vmul.f32 %v1616, %v1333
    %v1745 = vmul.f32 %v1617, %v1333
    %v1746 = vmul.f32 %v1618, %v1333
    %v1747 = vmul.f32 %v1619, %v1333
    %v1748 = vmul.f32 %v1620, %v1333
    %v1749 = vmul.f32 %v1621, %v1333
    %v1750 = vmul.f32 %v1622, %v1333
    %v1751 = vmul.f32 %v1623, %v1333
    %v1752 = vmul.f32 %v1624, %v1333
    %v1753 = vmul.f32 %v1625, %v1333
    %v1754 = vmul.f32 %v1626, %v1333
    %v1755 = vmul.f32 %v1627, %v1333
    %v1756 = vmul.f32 %v1628, %v1333
    %v1757 = vmul.f32 %v1629, %v1333
    %v1758 = vmul.f32 %v1630, %v1333
    %v1759 = vmul.f32 %v1631, %v1333
    %v1760 = vmul.f32 %v1632, %v1333
    %v1761 = vmul.f32 %v1633, %v1333
    %v1762 = vmul.f32 %v1634, %v1333
    %v1763 = vmul.f32 %v1635, %v1333
    %v1764 = vmul.f32 %v1636, %v1333
    %v1765 = vmul.f32 %v1637, %v1333
    %v1766 = vmul.f32 %v1638, %v1333
    %v1767 = vmul.f32 %v1639, %v1333
    %v1768 = vmul.f32 %v1640, %v1333
    %v1769 = vmul.f32 %v1641, %v1333
    %v1770 = vmul.f32 %v1642, %v1333
    %v1771 = vmul.f32 %v1643, %v1333
    %v1772 = vmul.f32 %v1644, %v1333
    %v1773 = vmul.f32 %v1645, %v1333
    %v1774 = vmul.f32 %v1646, %v1333
    %v1775 = vmul.f32 %v1647, %v1333
    %v1776 = vmul.f32 %v1648, %v1333
    %v1777 = vmul.f32 %v1649, %v1333
    %v1778 = vmul.f32 %v1650, %v1333
    %v1779 = vmul.f32 %v1651, %v1333
    %v1780 = vmul.f32 %v1652, %v1333
    %v1781 = vmul.f32 %v1653, %v1333
    %v1782 = vmul.f32 %v1654, %v1333
    %v1783 = vmul.f32 %v1655, %v1333
    %v1784 = vmul.f32 %v1656, %v1333
    %v1785 = vmul.f32 %v1657, %v1333
    %v1786 = vmul.f32 %v1658, %v1333
    %v1787 = vmul.f32 %v1659, %v1333
    %v1788 = vmul.f32 %v1660, %v1333
    %v1789 = vmul.f32 %v1661, %v1333
    %v1790 = vmul.f32 %v1662, %v1333
    %v1791 = vmul.f32 %v1663, %v1333
    %v1792 = vmul.f32 %v1664, %v1333
    %v1793 = vmul.f32 %v1665, %v1333
    %v1794 = vmul.f32 %v1666, %v1333
    %v1795 = vmul.f32 %v1667, %v1333
    %v1796 = vmul.f32 %v1668, %v1333
    %v1797 = vmul.f32 %v1669, %v1333
    %v1798 = vmul.f32 %v1670, %v1333
    %v1799 = vmul.f32 %v1671, %v1333
    %v1800 = vmul.f32 %v1672, %v1333
    %v1801 = vmul.f32 %v1673, %v1333
    %v1802 = vmul.f32 %v1674, %v1333
    %v1803 = vmul.f32 %v1675, %v1333
    %v1804 = vmul.f32 %v1676, %v1333
    %v1805 = vmul.f32 %v1677, %v1333
    %v1806 = vmul.f32 %v1678, %v1333
    %v1807 = vmul.f32 %v1679, %v1333
    %v1808 = vmul.f32 %v1680, %v1333
    %v1809 = vmul.f32 %v1681, %v1333
    %v1810 = vmul.f32 %v1682, %v1333
    %v1811 = vmul.f32 %v1683, %v1333
    %v1812 = vmul.f32 %v1684, %v1333
    %v1813 = vmul.f32 %v1685, %v1333
    %v1814 = vmul.f32 %v1686, %v1333
    %v1815 = vmul.f32 %v1687, %v1333
    %v1816 = vmul.f32 %v1688, %v1333
    %v1817 = vmul.f32 %v1689, %v1333
    %v1818 = vmul.f32 %v1690, %v1333
    %v1819 = vmul.f32 %v1691, %v1333
    %v1820 = vmul.f32 %v1692, %v1333
    %v1821 = vmul.f32 %v1693, %v1333
    %v1822 = vmul.f32 %v1694, %v1333
    %v1823 = vmul.f32 %v1695, %v1333
    %v1824 = vmul.f32 %v1696, %v1333
    %v1825 = vmul.f32 %v1697, %v1333
    %v1826 = vmul.f32 %v1698, %v1333
    %v1827 = vmul.f32 %v1699, %v1333
    %v1828 = vmul.f32 %v1700, %v1333
    %v1829 = vmul.f32 %v1701, %v1333
    %v1830 = vmul.f32 %v1702, %v1333
    %v1831 = vmul.f32 %v1703, %v1333
    %v1832 = vmul.f32 %v1704, %v1333
    %v1833 = vmul.f32 %v1705, %v1333
    %v1834 = vmul.f32 %v1706, %v1333
    %v1835 = vmul.f32 %v1707, %v1333
    %v1836 = vmul.f32 %v1708, %v1333
    %v1837 = vmul.f32 %v1709, %v1333
    %v1838 = vmul.f32 %v1710, %v1333
    %v1839 = vmul.f32 %v1711, %v1333
    %v1840 = vmul.f32 %v1712, %v1333
    %v1841 = vmul.f32 %v1713, %v1333
    %v1842 = vmul.f32 %v1714, %v1333
    %v1843 = vmul.f32 %v1715, %v1333
    %v1844 = vmul.f32 %v1716, %v1333
    %v1845 = vmul.f32 %v1717, %v1333
    %v1846 = vmul.f32 %v1718, %v1333
    %1975 = vrot.lane.b32.xlu0 %v1077, 127
    %v1976 = vpop.permute.xlu0 %1975
    %1977 = vrot.lane.b32.xlu0 %v1078, 127
    %v1978 = vpop.permute.xlu0 %1977
    %1979 = vrot.lane.b32.xlu0 %v1079, 127
    %v1980 = vpop.permute.xlu0 %1979
    %1981 = vrot.lane.b32.xlu0 %v1080, 127
    %v1982 = vpop.permute.xlu0 %1981
    %1983 = vrot.lane.b32.xlu0 %v1081, 127
    %v1984 = vpop.permute.xlu0 %1983
    %1985 = vrot.lane.b32.xlu0 %v1082, 127
    %v1986 = vpop.permute.xlu0 %1985
    %1987 = vrot.lane.b32.xlu0 %v1083, 127
    %v1988 = vpop.permute.xlu0 %1987
    %1989 = vrot.lane.b32.xlu0 %v1084, 127
    %v1990 = vpop.permute.xlu0 %1989
    %1991 = vrot.lane.b32.xlu0 %v1085, 127
    %v1992 = vpop.permute.xlu0 %1991
    %1993 = vrot.lane.b32.xlu0 %v1086, 127
    %v1994 = vpop.permute.xlu0 %1993
    %1995 = vrot.lane.b32.xlu0 %v1087, 127
    %v1996 = vpop.permute.xlu0 %1995
    %1997 = vrot.lane.b32.xlu0 %v1088, 127
    %v1998 = vpop.permute.xlu0 %1997
    %1999 = vrot.lane.b32.xlu0 %v1089, 127
    %v2000 = vpop.permute.xlu0 %1999
    %2001 = vrot.lane.b32.xlu0 %v1090, 127
    %v2002 = vpop.permute.xlu0 %2001
    %2003 = vrot.lane.b32.xlu0 %v1091, 127
    %v2004 = vpop.permute.xlu0 %2003
    %2005 = vrot.lane.b32.xlu0 %v1092, 127
    %v2006 = vpop.permute.xlu0 %2005
    %2007 = vrot.lane.b32.xlu0 %v1093, 127
    %v2008 = vpop.permute.xlu0 %2007
    %2009 = vrot.lane.b32.xlu0 %v1094, 127
    %v2010 = vpop.permute.xlu0 %2009
    %2011 = vrot.lane.b32.xlu0 %v1095, 127
    %v2012 = vpop.permute.xlu0 %2011
    %2013 = vrot.lane.b32.xlu0 %v1096, 127
    %v2014 = vpop.permute.xlu0 %2013
    %2015 = vrot.lane.b32.xlu0 %v1097, 127
    %v2016 = vpop.permute.xlu0 %2015
    %2017 = vrot.lane.b32.xlu0 %v1098, 127
    %v2018 = vpop.permute.xlu0 %2017
    %2019 = vrot.lane.b32.xlu0 %v1099, 127
    %v2020 = vpop.permute.xlu0 %2019
    %2021 = vrot.lane.b32.xlu0 %v1100, 127
    %v2022 = vpop.permute.xlu0 %2021
    %2023 = vrot.lane.b32.xlu0 %v1101, 127
    %v2024 = vpop.permute.xlu0 %2023
    %2025 = vrot.lane.b32.xlu0 %v1102, 127
    %v2026 = vpop.permute.xlu0 %2025
    %2027 = vrot.lane.b32.xlu0 %v1103, 127
    %v2028 = vpop.permute.xlu0 %2027
    %2029 = vrot.lane.b32.xlu0 %v1104, 127
    %v2030 = vpop.permute.xlu0 %2029
    %2031 = vrot.lane.b32.xlu0 %v1105, 127
    %v2032 = vpop.permute.xlu0 %2031
    %2033 = vrot.lane.b32.xlu0 %v1106, 127
    %v2034 = vpop.permute.xlu0 %2033
    %2035 = vrot.lane.b32.xlu0 %v1107, 127
    %v2036 = vpop.permute.xlu0 %2035
    %2037 = vrot.lane.b32.xlu0 %v1108, 127
    %v2038 = vpop.permute.xlu0 %2037
    %2039 = vrot.lane.b32.xlu0 %v1109, 127
    %v2040 = vpop.permute.xlu0 %2039
    %2041 = vrot.lane.b32.xlu0 %v1110, 127
    %v2042 = vpop.permute.xlu0 %2041
    %2043 = vrot.lane.b32.xlu0 %v1111, 127
    %v2044 = vpop.permute.xlu0 %2043
    %2045 = vrot.lane.b32.xlu0 %v1112, 127
    %v2046 = vpop.permute.xlu0 %2045
    %2047 = vrot.lane.b32.xlu0 %v1113, 127
    %v2048 = vpop.permute.xlu0 %2047
    %2049 = vrot.lane.b32.xlu0 %v1114, 127
    %v2050 = vpop.permute.xlu0 %2049
    %2051 = vrot.lane.b32.xlu0 %v1115, 127
    %v2052 = vpop.permute.xlu0 %2051
    %2053 = vrot.lane.b32.xlu0 %v1116, 127
    %v2054 = vpop.permute.xlu0 %2053
    %2055 = vrot.lane.b32.xlu0 %v1117, 127
    %v2056 = vpop.permute.xlu0 %2055
    %2057 = vrot.lane.b32.xlu0 %v1118, 127
    %v2058 = vpop.permute.xlu0 %2057
    %2059 = vrot.lane.b32.xlu0 %v1119, 127
    %v2060 = vpop.permute.xlu0 %2059
    %2061 = vrot.lane.b32.xlu0 %v1120, 127
    %v2062 = vpop.permute.xlu0 %2061
    %2063 = vrot.lane.b32.xlu0 %v1121, 127
    %v2064 = vpop.permute.xlu0 %2063
    %2065 = vrot.lane.b32.xlu0 %v1122, 127
    %v2066 = vpop.permute.xlu0 %2065
    %2067 = vrot.lane.b32.xlu0 %v1123, 127
    %v2068 = vpop.permute.xlu0 %2067
    %2069 = vrot.lane.b32.xlu0 %v1124, 127
    %v2070 = vpop.permute.xlu0 %2069
    %2071 = vrot.lane.b32.xlu0 %v1125, 127
    %v2072 = vpop.permute.xlu0 %2071
    %2073 = vrot.lane.b32.xlu0 %v1126, 127
    %v2074 = vpop.permute.xlu0 %2073
    %2075 = vrot.lane.b32.xlu0 %v1127, 127
    %v2076 = vpop.permute.xlu0 %2075
    %2077 = vrot.lane.b32.xlu0 %v1128, 127
    %v2078 = vpop.permute.xlu0 %2077
    %2079 = vrot.lane.b32.xlu0 %v1129, 127
    %v2080 = vpop.permute.xlu0 %2079
    %2081 = vrot.lane.b32.xlu0 %v1130, 127
    %v2082 = vpop.permute.xlu0 %2081
    %2083 = vrot.lane.b32.xlu0 %v1131, 127
    %v2084 = vpop.permute.xlu0 %2083
    %2085 = vrot.lane.b32.xlu0 %v1132, 127
    %v2086 = vpop.permute.xlu0 %2085
    %2087 = vrot.lane.b32.xlu0 %v1133, 127
    %v2088 = vpop.permute.xlu0 %2087
    %2089 = vrot.lane.b32.xlu0 %v1134, 127
    %v2090 = vpop.permute.xlu0 %2089
    %2091 = vrot.lane.b32.xlu0 %v1135, 127
    %v2092 = vpop.permute.xlu0 %2091
    %2093 = vrot.lane.b32.xlu0 %v1136, 127
    %v2094 = vpop.permute.xlu0 %2093
    %2095 = vrot.lane.b32.xlu0 %v1137, 127
    %v2096 = vpop.permute.xlu0 %2095
    %2097 = vrot.lane.b32.xlu0 %v1138, 127
    %v2098 = vpop.permute.xlu0 %2097
    %2099 = vrot.lane.b32.xlu0 %v1139, 127
    %v2100 = vpop.permute.xlu0 %2099
    %2101 = vrot.lane.b32.xlu0 %v1140, 127
    %v2102 = vpop.permute.xlu0 %2101
    %2103 = vrot.lane.b32.xlu0 %v1141, 127
    %v2104 = vpop.permute.xlu0 %2103
    %2105 = vrot.lane.b32.xlu0 %v1142, 127
    %v2106 = vpop.permute.xlu0 %2105
    %2107 = vrot.lane.b32.xlu0 %v1143, 127
    %v2108 = vpop.permute.xlu0 %2107
    %2109 = vrot.lane.b32.xlu0 %v1144, 127
    %v2110 = vpop.permute.xlu0 %2109
    %2111 = vrot.lane.b32.xlu0 %v1145, 127
    %v2112 = vpop.permute.xlu0 %2111
    %2113 = vrot.lane.b32.xlu0 %v1146, 127
    %v2114 = vpop.permute.xlu0 %2113
    %2115 = vrot.lane.b32.xlu0 %v1147, 127
    %v2116 = vpop.permute.xlu0 %2115
    %2117 = vrot.lane.b32.xlu0 %v1148, 127
    %v2118 = vpop.permute.xlu0 %2117
    %2119 = vrot.lane.b32.xlu0 %v1149, 127
    %v2120 = vpop.permute.xlu0 %2119
    %2121 = vrot.lane.b32.xlu0 %v1150, 127
    %v2122 = vpop.permute.xlu0 %2121
    %2123 = vrot.lane.b32.xlu0 %v1151, 127
    %v2124 = vpop.permute.xlu0 %2123
    %2125 = vrot.lane.b32.xlu0 %v1152, 127
    %v2126 = vpop.permute.xlu0 %2125
    %2127 = vrot.lane.b32.xlu0 %v1153, 127
    %v2128 = vpop.permute.xlu0 %2127
    %2129 = vrot.lane.b32.xlu0 %v1154, 127
    %v2130 = vpop.permute.xlu0 %2129
    %2131 = vrot.lane.b32.xlu0 %v1155, 127
    %v2132 = vpop.permute.xlu0 %2131
    %2133 = vrot.lane.b32.xlu0 %v1156, 127
    %v2134 = vpop.permute.xlu0 %2133
    %2135 = vrot.lane.b32.xlu0 %v1157, 127
    %v2136 = vpop.permute.xlu0 %2135
    %2137 = vrot.lane.b32.xlu0 %v1158, 127
    %v2138 = vpop.permute.xlu0 %2137
    %2139 = vrot.lane.b32.xlu0 %v1159, 127
    %v2140 = vpop.permute.xlu0 %2139
    %2141 = vrot.lane.b32.xlu0 %v1160, 127
    %v2142 = vpop.permute.xlu0 %2141
    %2143 = vrot.lane.b32.xlu0 %v1161, 127
    %v2144 = vpop.permute.xlu0 %2143
    %2145 = vrot.lane.b32.xlu0 %v1162, 127
    %v2146 = vpop.permute.xlu0 %2145
    %2147 = vrot.lane.b32.xlu0 %v1163, 127
    %v2148 = vpop.permute.xlu0 %2147
    %2149 = vrot.lane.b32.xlu0 %v1164, 127
    %v2150 = vpop.permute.xlu0 %2149
    %2151 = vrot.lane.b32.xlu0 %v1165, 127
    %v2152 = vpop.permute.xlu0 %2151
    %2153 = vrot.lane.b32.xlu0 %v1166, 127
    %v2154 = vpop.permute.xlu0 %2153
    %2155 = vrot.lane.b32.xlu0 %v1167, 127
    %v2156 = vpop.permute.xlu0 %2155
    %2157 = vrot.lane.b32.xlu0 %v1168, 127
    %v2158 = vpop.permute.xlu0 %2157
    %2159 = vrot.lane.b32.xlu0 %v1169, 127
    %v2160 = vpop.permute.xlu0 %2159
    %2161 = vrot.lane.b32.xlu0 %v1170, 127
    %v2162 = vpop.permute.xlu0 %2161
    %2163 = vrot.lane.b32.xlu0 %v1171, 127
    %v2164 = vpop.permute.xlu0 %2163
    %2165 = vrot.lane.b32.xlu0 %v1172, 127
    %v2166 = vpop.permute.xlu0 %2165
    %2167 = vrot.lane.b32.xlu0 %v1173, 127
    %v2168 = vpop.permute.xlu0 %2167
    %2169 = vrot.lane.b32.xlu0 %v1174, 127
    %v2170 = vpop.permute.xlu0 %2169
    %2171 = vrot.lane.b32.xlu0 %v1175, 127
    %v2172 = vpop.permute.xlu0 %2171
    %2173 = vrot.lane.b32.xlu0 %v1176, 127
    %v2174 = vpop.permute.xlu0 %2173
    %2175 = vrot.lane.b32.xlu0 %v1177, 127
    %v2176 = vpop.permute.xlu0 %2175
    %2177 = vrot.lane.b32.xlu0 %v1178, 127
    %v2178 = vpop.permute.xlu0 %2177
    %2179 = vrot.lane.b32.xlu0 %v1179, 127
    %v2180 = vpop.permute.xlu0 %2179
    %2181 = vrot.lane.b32.xlu0 %v1180, 127
    %v2182 = vpop.permute.xlu0 %2181
    %2183 = vrot.lane.b32.xlu0 %v1181, 127
    %v2184 = vpop.permute.xlu0 %2183
    %2185 = vrot.lane.b32.xlu0 %v1182, 127
    %v2186 = vpop.permute.xlu0 %2185
    %2187 = vrot.lane.b32.xlu0 %v1183, 127
    %v2188 = vpop.permute.xlu0 %2187
    %2189 = vrot.lane.b32.xlu0 %v1184, 127
    %v2190 = vpop.permute.xlu0 %2189
    %2191 = vrot.lane.b32.xlu0 %v1185, 127
    %v2192 = vpop.permute.xlu0 %2191
    %2193 = vrot.lane.b32.xlu0 %v1186, 127
    %v2194 = vpop.permute.xlu0 %2193
    %2195 = vrot.lane.b32.xlu0 %v1187, 127
    %v2196 = vpop.permute.xlu0 %2195
    %2197 = vrot.lane.b32.xlu0 %v1188, 127
    %v2198 = vpop.permute.xlu0 %2197
    %2199 = vrot.lane.b32.xlu0 %v1189, 127
    %v2200 = vpop.permute.xlu0 %2199
    %2201 = vrot.lane.b32.xlu0 %v1190, 127
    %v2202 = vpop.permute.xlu0 %2201
    %2203 = vrot.lane.b32.xlu0 %v1191, 127
    %v2204 = vpop.permute.xlu0 %2203
    %2205 = vrot.lane.b32.xlu0 %v1192, 127
    %v2206 = vpop.permute.xlu0 %2205
    %2207 = vrot.lane.b32.xlu0 %v1193, 127
    %v2208 = vpop.permute.xlu0 %2207
    %2209 = vrot.lane.b32.xlu0 %v1194, 127
    %v2210 = vpop.permute.xlu0 %2209
    %2211 = vrot.lane.b32.xlu0 %v1195, 127
    %v2212 = vpop.permute.xlu0 %2211
    %2213 = vrot.lane.b32.xlu0 %v1196, 127
    %v2214 = vpop.permute.xlu0 %2213
    %2215 = vrot.lane.b32.xlu0 %v1197, 127
    %v2216 = vpop.permute.xlu0 %2215
    %2217 = vrot.lane.b32.xlu0 %v1198, 127
    %v2218 = vpop.permute.xlu0 %2217
    %2219 = vrot.lane.b32.xlu0 %v1199, 127
    %v2220 = vpop.permute.xlu0 %2219
    %2221 = vrot.lane.b32.xlu0 %v1200, 127
    %v2222 = vpop.permute.xlu0 %2221
    %2223 = vrot.lane.b32.xlu0 %v1201, 127
    %v2224 = vpop.permute.xlu0 %2223
    %2225 = vrot.lane.b32.xlu0 %v1202, 127
    %v2226 = vpop.permute.xlu0 %2225
    %2227 = vrot.lane.b32.xlu0 %v1203, 127
    %v2228 = vpop.permute.xlu0 %2227
    %2229 = vrot.lane.b32.xlu0 %v1204, 127
    %v2230 = vpop.permute.xlu0 %2229
    %v2359 = vmul.f32 %v1719, %v1976
    %v2360 = vmul.f32 %v1720, %v1978
    %v2361 = vmul.f32 %v1721, %v1980
    %v2362 = vmul.f32 %v1722, %v1982
    %v2363 = vmul.f32 %v1723, %v1984
    %v2364 = vmul.f32 %v1724, %v1986
    %v2365 = vmul.f32 %v1725, %v1988
    %v2366 = vmul.f32 %v1726, %v1990
    %v2367 = vmul.f32 %v1727, %v1992
    %v2368 = vmul.f32 %v1728, %v1994
    %v2369 = vmul.f32 %v1729, %v1996
    %v2370 = vmul.f32 %v1730, %v1998
    %v2371 = vmul.f32 %v1731, %v2000
    %v2372 = vmul.f32 %v1732, %v2002
    %v2373 = vmul.f32 %v1733, %v2004
    %v2374 = vmul.f32 %v1734, %v2006
    %v2375 = vmul.f32 %v1735, %v2008
    %v2376 = vmul.f32 %v1736, %v2010
    %v2377 = vmul.f32 %v1737, %v2012
    %v2378 = vmul.f32 %v1738, %v2014
    %v2379 = vmul.f32 %v1739, %v2016
    %v2380 = vmul.f32 %v1740, %v2018
    %v2381 = vmul.f32 %v1741, %v2020
    %v2382 = vmul.f32 %v1742, %v2022
    %v2383 = vmul.f32 %v1743, %v2024
    %v2384 = vmul.f32 %v1744, %v2026
    %v2385 = vmul.f32 %v1745, %v2028
    %v2386 = vmul.f32 %v1746, %v2030
    %v2387 = vmul.f32 %v1747, %v2032
    %v2388 = vmul.f32 %v1748, %v2034
    %v2389 = vmul.f32 %v1749, %v2036
    %v2390 = vmul.f32 %v1750, %v2038
    %v2391 = vmul.f32 %v1751, %v2040
    %v2392 = vmul.f32 %v1752, %v2042
    %v2393 = vmul.f32 %v1753, %v2044
    %v2394 = vmul.f32 %v1754, %v2046
    %v2395 = vmul.f32 %v1755, %v2048
    %v2396 = vmul.f32 %v1756, %v2050
    %v2397 = vmul.f32 %v1757, %v2052
    %v2398 = vmul.f32 %v1758, %v2054
    %v2399 = vmul.f32 %v1759, %v2056
    %v2400 = vmul.f32 %v1760, %v2058
    %v2401 = vmul.f32 %v1761, %v2060
    %v2402 = vmul.f32 %v1762, %v2062
    %v2403 = vmul.f32 %v1763, %v2064
    %v2404 = vmul.f32 %v1764, %v2066
    %v2405 = vmul.f32 %v1765, %v2068
    %v2406 = vmul.f32 %v1766, %v2070
    %v2407 = vmul.f32 %v1767, %v2072
    %v2408 = vmul.f32 %v1768, %v2074
    %v2409 = vmul.f32 %v1769, %v2076
    %v2410 = vmul.f32 %v1770, %v2078
    %v2411 = vmul.f32 %v1771, %v2080
    %v2412 = vmul.f32 %v1772, %v2082
    %v2413 = vmul.f32 %v1773, %v2084
    %v2414 = vmul.f32 %v1774, %v2086
    %v2415 = vmul.f32 %v1775, %v2088
    %v2416 = vmul.f32 %v1776, %v2090
    %v2417 = vmul.f32 %v1777, %v2092
    %v2418 = vmul.f32 %v1778, %v2094
    %v2419 = vmul.f32 %v1779, %v2096
    %v2420 = vmul.f32 %v1780, %v2098
    %v2421 = vmul.f32 %v1781, %v2100
    %v2422 = vmul.f32 %v1782, %v2102
    %v2423 = vmul.f32 %v1783, %v2104
    %v2424 = vmul.f32 %v1784, %v2106
    %v2425 = vmul.f32 %v1785, %v2108
    %v2426 = vmul.f32 %v1786, %v2110
    %v2427 = vmul.f32 %v1787, %v2112
    %v2428 = vmul.f32 %v1788, %v2114
    %v2429 = vmul.f32 %v1789, %v2116
    %v2430 = vmul.f32 %v1790, %v2118
    %v2431 = vmul.f32 %v1791, %v2120
    %v2432 = vmul.f32 %v1792, %v2122
    %v2433 = vmul.f32 %v1793, %v2124
    %v2434 = vmul.f32 %v1794, %v2126
    %v2435 = vmul.f32 %v1795, %v2128
    %v2436 = vmul.f32 %v1796, %v2130
    %v2437 = vmul.f32 %v1797, %v2132
    %v2438 = vmul.f32 %v1798, %v2134
    %v2439 = vmul.f32 %v1799, %v2136
    %v2440 = vmul.f32 %v1800, %v2138
    %v2441 = vmul.f32 %v1801, %v2140
    %v2442 = vmul.f32 %v1802, %v2142
    %v2443 = vmul.f32 %v1803, %v2144
    %v2444 = vmul.f32 %v1804, %v2146
    %v2445 = vmul.f32 %v1805, %v2148
    %v2446 = vmul.f32 %v1806, %v2150
    %v2447 = vmul.f32 %v1807, %v2152
    %v2448 = vmul.f32 %v1808, %v2154
    %v2449 = vmul.f32 %v1809, %v2156
    %v2450 = vmul.f32 %v1810, %v2158
    %v2451 = vmul.f32 %v1811, %v2160
    %v2452 = vmul.f32 %v1812, %v2162
    %v2453 = vmul.f32 %v1813, %v2164
    %v2454 = vmul.f32 %v1814, %v2166
    %v2455 = vmul.f32 %v1815, %v2168
    %v2456 = vmul.f32 %v1816, %v2170
    %v2457 = vmul.f32 %v1817, %v2172
    %v2458 = vmul.f32 %v1818, %v2174
    %v2459 = vmul.f32 %v1819, %v2176
    %v2460 = vmul.f32 %v1820, %v2178
    %v2461 = vmul.f32 %v1821, %v2180
    %v2462 = vmul.f32 %v1822, %v2182
    %v2463 = vmul.f32 %v1823, %v2184
    %v2464 = vmul.f32 %v1824, %v2186
    %v2465 = vmul.f32 %v1825, %v2188
    %v2466 = vmul.f32 %v1826, %v2190
    %v2467 = vmul.f32 %v1827, %v2192
    %v2468 = vmul.f32 %v1828, %v2194
    %v2469 = vmul.f32 %v1829, %v2196
    %v2470 = vmul.f32 %v1830, %v2198
    %v2471 = vmul.f32 %v1831, %v2200
    %v2472 = vmul.f32 %v1832, %v2202
    %v2473 = vmul.f32 %v1833, %v2204
    %v2474 = vmul.f32 %v1834, %v2206
    %v2475 = vmul.f32 %v1835, %v2208
    %v2476 = vmul.f32 %v1836, %v2210
    %v2477 = vmul.f32 %v1837, %v2212
    %v2478 = vmul.f32 %v1838, %v2214
    %v2479 = vmul.f32 %v1839, %v2216
    %v2480 = vmul.f32 %v1840, %v2218
    %v2481 = vmul.f32 %v1841, %v2220
    %v2482 = vmul.f32 %v1842, %v2222
    %v2483 = vmul.f32 %v1843, %v2224
    %v2484 = vmul.f32 %v1844, %v2226
    %v2485 = vmul.f32 %v1845, %v2228
    %v2486 = vmul.f32 %v1846, %v2230
    %v2487 = vadd.f32 %v1462, %v2359
    %v2488 = vadd.f32 %v1463, %v2360
    %v2489 = vadd.f32 %v1464, %v2361
    %v2490 = vadd.f32 %v1465, %v2362
    %v2491 = vadd.f32 %v1466, %v2363
    %v2492 = vadd.f32 %v1467, %v2364
    %v2493 = vadd.f32 %v1468, %v2365
    %v2494 = vadd.f32 %v1469, %v2366
    %v2495 = vadd.f32 %v1470, %v2367
    %v2496 = vadd.f32 %v1471, %v2368
    %v2497 = vadd.f32 %v1472, %v2369
    %v2498 = vadd.f32 %v1473, %v2370
    %v2499 = vadd.f32 %v1474, %v2371
    %v2500 = vadd.f32 %v1475, %v2372
    %v2501 = vadd.f32 %v1476, %v2373
    %v2502 = vadd.f32 %v1477, %v2374
    %v2503 = vadd.f32 %v1478, %v2375
    %v2504 = vadd.f32 %v1479, %v2376
    %v2505 = vadd.f32 %v1480, %v2377
    %v2506 = vadd.f32 %v1481, %v2378
    %v2507 = vadd.f32 %v1482, %v2379
    %v2508 = vadd.f32 %v1483, %v2380
    %v2509 = vadd.f32 %v1484, %v2381
    %v2510 = vadd.f32 %v1485, %v2382
    %v2511 = vadd.f32 %v1486, %v2383
    %v2512 = vadd.f32 %v1487, %v2384
    %v2513 = vadd.f32 %v1488, %v2385
    %v2514 = vadd.f32 %v1489, %v2386
    %v2515 = vadd.f32 %v1490, %v2387
    %v2516 = vadd.f32 %v1491, %v2388
    %v2517 = vadd.f32 %v1492, %v2389
    %v2518 = vadd.f32 %v1493, %v2390
    %v2519 = vadd.f32 %v1494, %v2391
    %v2520 = vadd.f32 %v1495, %v2392
    %v2521 = vadd.f32 %v1496, %v2393
    %v2522 = vadd.f32 %v1497, %v2394
    %v2523 = vadd.f32 %v1498, %v2395
    %v2524 = vadd.f32 %v1499, %v2396
    %v2525 = vadd.f32 %v1500, %v2397
    %v2526 = vadd.f32 %v1501, %v2398
    %v2527 = vadd.f32 %v1502, %v2399
    %v2528 = vadd.f32 %v1503, %v2400
    %v2529 = vadd.f32 %v1504, %v2401
    %v2530 = vadd.f32 %v1505, %v2402
    %v2531 = vadd.f32 %v1506, %v2403
    %v2532 = vadd.f32 %v1507, %v2404
    %v2533 = vadd.f32 %v1508, %v2405
    %v2534 = vadd.f32 %v1509, %v2406
    %v2535 = vadd.f32 %v1510, %v2407
    %v2536 = vadd.f32 %v1511, %v2408
    %v2537 = vadd.f32 %v1512, %v2409
    %v2538 = vadd.f32 %v1513, %v2410
    %v2539 = vadd.f32 %v1514, %v2411
    %v2540 = vadd.f32 %v1515, %v2412
    %v2541 = vadd.f32 %v1516, %v2413
    %v2542 = vadd.f32 %v1517, %v2414
    %v2543 = vadd.f32 %v1518, %v2415
    %v2544 = vadd.f32 %v1519, %v2416
    %v2545 = vadd.f32 %v1520, %v2417
    %v2546 = vadd.f32 %v1521, %v2418
    %v2547 = vadd.f32 %v1522, %v2419
    %v2548 = vadd.f32 %v1523, %v2420
    %v2549 = vadd.f32 %v1524, %v2421
    %v2550 = vadd.f32 %v1525, %v2422
    %v2551 = vadd.f32 %v1526, %v2423
    %v2552 = vadd.f32 %v1527, %v2424
    %v2553 = vadd.f32 %v1528, %v2425
    %v2554 = vadd.f32 %v1529, %v2426
    %v2555 = vadd.f32 %v1530, %v2427
    %v2556 = vadd.f32 %v1531, %v2428
    %v2557 = vadd.f32 %v1532, %v2429
    %v2558 = vadd.f32 %v1533, %v2430
    %v2559 = vadd.f32 %v1534, %v2431
    %v2560 = vadd.f32 %v1535, %v2432
    %v2561 = vadd.f32 %v1536, %v2433
    %v2562 = vadd.f32 %v1537, %v2434
    %v2563 = vadd.f32 %v1538, %v2435
    %v2564 = vadd.f32 %v1539, %v2436
    %v2565 = vadd.f32 %v1540, %v2437
    %v2566 = vadd.f32 %v1541, %v2438
    %v2567 = vadd.f32 %v1542, %v2439
    %v2568 = vadd.f32 %v1543, %v2440
    %v2569 = vadd.f32 %v1544, %v2441
    %v2570 = vadd.f32 %v1545, %v2442
    %v2571 = vadd.f32 %v1546, %v2443
    %v2572 = vadd.f32 %v1547, %v2444
    %v2573 = vadd.f32 %v1548, %v2445
    %v2574 = vadd.f32 %v1549, %v2446
    %v2575 = vadd.f32 %v1550, %v2447
    %v2576 = vadd.f32 %v1551, %v2448
    %v2577 = vadd.f32 %v1552, %v2449
    %v2578 = vadd.f32 %v1553, %v2450
    %v2579 = vadd.f32 %v1554, %v2451
    %v2580 = vadd.f32 %v1555, %v2452
    %v2581 = vadd.f32 %v1556, %v2453
    %v2582 = vadd.f32 %v1557, %v2454
    %v2583 = vadd.f32 %v1558, %v2455
    %v2584 = vadd.f32 %v1559, %v2456
    %v2585 = vadd.f32 %v1560, %v2457
    %v2586 = vadd.f32 %v1561, %v2458
    %v2587 = vadd.f32 %v1562, %v2459
    %v2588 = vadd.f32 %v1563, %v2460
    %v2589 = vadd.f32 %v1564, %v2461
    %v2590 = vadd.f32 %v1565, %v2462
    %v2591 = vadd.f32 %v1566, %v2463
    %v2592 = vadd.f32 %v1567, %v2464
    %v2593 = vadd.f32 %v1568, %v2465
    %v2594 = vadd.f32 %v1569, %v2466
    %v2595 = vadd.f32 %v1570, %v2467
    %v2596 = vadd.f32 %v1571, %v2468
    %v2597 = vadd.f32 %v1572, %v2469
    %v2598 = vadd.f32 %v1573, %v2470
    %v2599 = vadd.f32 %v1574, %v2471
    %v2600 = vadd.f32 %v1575, %v2472
    %v2601 = vadd.f32 %v1576, %v2473
    %v2602 = vadd.f32 %v1577, %v2474
    %v2603 = vadd.f32 %v1578, %v2475
    %v2604 = vadd.f32 %v1579, %v2476
    %v2605 = vadd.f32 %v1580, %v2477
    %v2606 = vadd.f32 %v1581, %v2478
    %v2607 = vadd.f32 %v1582, %v2479
    %v2608 = vadd.f32 %v1583, %v2480
    %v2609 = vadd.f32 %v1584, %v2481
    %v2610 = vadd.f32 %v1585, %v2482
    %v2611 = vadd.f32 %v1586, %v2483
    %v2612 = vadd.f32 %v1587, %v2484
    %v2613 = vadd.f32 %v1588, %v2485
    %v2614 = vadd.f32 %v1589, %v2486
    %v2615 = vrcp.pop 0.5
    %v2616 = vmul.f32 %v1205, %v2615
    %v2617 = vmul.f32 %v1206, %v2615
    %v2618 = vmul.f32 %v1207, %v2615
    %v2619 = vmul.f32 %v1208, %v2615
    %v2620 = vmul.f32 %v1209, %v2615
    %v2621 = vmul.f32 %v1210, %v2615
    %v2622 = vmul.f32 %v1211, %v2615
    %v2623 = vmul.f32 %v1212, %v2615
    %v2624 = vmul.f32 %v1213, %v2615
    %v2625 = vmul.f32 %v1214, %v2615
    %v2626 = vmul.f32 %v1215, %v2615
    %v2627 = vmul.f32 %v1216, %v2615
    %v2628 = vmul.f32 %v1217, %v2615
    %v2629 = vmul.f32 %v1218, %v2615
    %v2630 = vmul.f32 %v1219, %v2615
    %v2631 = vmul.f32 %v1220, %v2615
    %v2632 = vmul.f32 %v1221, %v2615
    %v2633 = vmul.f32 %v1222, %v2615
    %v2634 = vmul.f32 %v1223, %v2615
    %v2635 = vmul.f32 %v1224, %v2615
    %v2636 = vmul.f32 %v1225, %v2615
    %v2637 = vmul.f32 %v1226, %v2615
    %v2638 = vmul.f32 %v1227, %v2615
    %v2639 = vmul.f32 %v1228, %v2615
    %v2640 = vmul.f32 %v1229, %v2615
    %v2641 = vmul.f32 %v1230, %v2615
    %v2642 = vmul.f32 %v1231, %v2615
    %v2643 = vmul.f32 %v1232, %v2615
    %v2644 = vmul.f32 %v1233, %v2615
    %v2645 = vmul.f32 %v1234, %v2615
    %v2646 = vmul.f32 %v1235, %v2615
    %v2647 = vmul.f32 %v1236, %v2615
    %v2648 = vmul.f32 %v1237, %v2615
    %v2649 = vmul.f32 %v1238, %v2615
    %v2650 = vmul.f32 %v1239, %v2615
    %v2651 = vmul.f32 %v1240, %v2615
    %v2652 = vmul.f32 %v1241, %v2615
    %v2653 = vmul.f32 %v1242, %v2615
    %v2654 = vmul.f32 %v1243, %v2615
    %v2655 = vmul.f32 %v1244, %v2615
    %v2656 = vmul.f32 %v1245, %v2615
    %v2657 = vmul.f32 %v1246, %v2615
    %v2658 = vmul.f32 %v1247, %v2615
    %v2659 = vmul.f32 %v1248, %v2615
    %v2660 = vmul.f32 %v1249, %v2615
    %v2661 = vmul.f32 %v1250, %v2615
    %v2662 = vmul.f32 %v1251, %v2615
    %v2663 = vmul.f32 %v1252, %v2615
    %v2664 = vmul.f32 %v1253, %v2615
    %v2665 = vmul.f32 %v1254, %v2615
    %v2666 = vmul.f32 %v1255, %v2615
    %v2667 = vmul.f32 %v1256, %v2615
    %v2668 = vmul.f32 %v1257, %v2615
    %v2669 = vmul.f32 %v1258, %v2615
    %v2670 = vmul.f32 %v1259, %v2615
    %v2671 = vmul.f32 %v1260, %v2615
    %v2672 = vmul.f32 %v1261, %v2615
    %v2673 = vmul.f32 %v1262, %v2615
    %v2674 = vmul.f32 %v1263, %v2615
    %v2675 = vmul.f32 %v1264, %v2615
    %v2676 = vmul.f32 %v1265, %v2615
    %v2677 = vmul.f32 %v1266, %v2615
    %v2678 = vmul.f32 %v1267, %v2615
    %v2679 = vmul.f32 %v1268, %v2615
    %v2680 = vmul.f32 %v1269, %v2615
    %v2681 = vmul.f32 %v1270, %v2615
    %v2682 = vmul.f32 %v1271, %v2615
    %v2683 = vmul.f32 %v1272, %v2615
    %v2684 = vmul.f32 %v1273, %v2615
    %v2685 = vmul.f32 %v1274, %v2615
    %v2686 = vmul.f32 %v1275, %v2615
    %v2687 = vmul.f32 %v1276, %v2615
    %v2688 = vmul.f32 %v1277, %v2615
    %v2689 = vmul.f32 %v1278, %v2615
    %v2690 = vmul.f32 %v1279, %v2615
    %v2691 = vmul.f32 %v1280, %v2615
    %v2692 = vmul.f32 %v1281, %v2615
    %v2693 = vmul.f32 %v1282, %v2615
    %v2694 = vmul.f32 %v1283, %v2615
    %v2695 = vmul.f32 %v1284, %v2615
    %v2696 = vmul.f32 %v1285, %v2615
    %v2697 = vmul.f32 %v1286, %v2615
    %v2698 = vmul.f32 %v1287, %v2615
    %v2699 = vmul.f32 %v1288, %v2615
    %v2700 = vmul.f32 %v1289, %v2615
    %v2701 = vmul.f32 %v1290, %v2615
    %v2702 = vmul.f32 %v1291, %v2615
    %v2703 = vmul.f32 %v1292, %v2615
    %v2704 = vmul.f32 %v1293, %v2615
    %v2705 = vmul.f32 %v1294, %v2615
    %v2706 = vmul.f32 %v1295, %v2615
    %v2707 = vmul.f32 %v1296, %v2615
    %v2708 = vmul.f32 %v1297, %v2615
    %v2709 = vmul.f32 %v1298, %v2615
    %v2710 = vmul.f32 %v1299, %v2615
    %v2711 = vmul.f32 %v1300, %v2615
    %v2712 = vmul.f32 %v1301, %v2615
    %v2713 = vmul.f32 %v1302, %v2615
    %v2714 = vmul.f32 %v1303, %v2615
    %v2715 = vmul.f32 %v1304, %v2615
    %v2716 = vmul.f32 %v1305, %v2615
    %v2717 = vmul.f32 %v1306, %v2615
    %v2718 = vmul.f32 %v1307, %v2615
    %v2719 = vmul.f32 %v1308, %v2615
    %v2720 = vmul.f32 %v1309, %v2615
    %v2721 = vmul.f32 %v1310, %v2615
    %v2722 = vmul.f32 %v1311, %v2615
    %v2723 = vmul.f32 %v1312, %v2615
    %v2724 = vmul.f32 %v1313, %v2615
    %v2725 = vmul.f32 %v1314, %v2615
    %v2726 = vmul.f32 %v1315, %v2615
    %v2727 = vmul.f32 %v1316, %v2615
    %v2728 = vmul.f32 %v1317, %v2615
    %v2729 = vmul.f32 %v1318, %v2615
    %v2730 = vmul.f32 %v1319, %v2615
    %v2731 = vmul.f32 %v1320, %v2615
    %v2732 = vmul.f32 %v1321, %v2615
    %v2733 = vmul.f32 %v1322, %v2615
    %v2734 = vmul.f32 %v1323, %v2615
    %v2735 = vmul.f32 %v1324, %v2615
    %v2736 = vmul.f32 %v1325, %v2615
    %v2737 = vmul.f32 %v1326, %v2615
    %v2738 = vmul.f32 %v1327, %v2615
    %v2739 = vmul.f32 %v1328, %v2615
    %v2740 = vmul.f32 %v1329, %v2615
    %v2741 = vmul.f32 %v1330, %v2615
    %v2742 = vmul.f32 %v1331, %v2615
    %v2743 = vmul.f32 %v1332, %v2615
    %v2744 = vmul.f32 %v2616, %v2487
    %v2745 = vmul.f32 %v2617, %v2488
    %v2746 = vmul.f32 %v2618, %v2489
    %v2747 = vmul.f32 %v2619, %v2490
    %v2748 = vmul.f32 %v2620, %v2491
    %v2749 = vmul.f32 %v2621, %v2492
    %v2750 = vmul.f32 %v2622, %v2493
    %v2751 = vmul.f32 %v2623, %v2494
    %v2752 = vmul.f32 %v2624, %v2495
    %v2753 = vmul.f32 %v2625, %v2496
    %v2754 = vmul.f32 %v2626, %v2497
    %v2755 = vmul.f32 %v2627, %v2498
    %v2756 = vmul.f32 %v2628, %v2499
    %v2757 = vmul.f32 %v2629, %v2500
    %v2758 = vmul.f32 %v2630, %v2501
    %v2759 = vmul.f32 %v2631, %v2502
    %v2760 = vmul.f32 %v2632, %v2503
    %v2761 = vmul.f32 %v2633, %v2504
    %v2762 = vmul.f32 %v2634, %v2505
    %v2763 = vmul.f32 %v2635, %v2506
    %v2764 = vmul.f32 %v2636, %v2507
    %v2765 = vmul.f32 %v2637, %v2508
    %v2766 = vmul.f32 %v2638, %v2509
    %v2767 = vmul.f32 %v2639, %v2510
    %v2768 = vmul.f32 %v2640, %v2511
    %v2769 = vmul.f32 %v2641, %v2512
    %v2770 = vmul.f32 %v2642, %v2513
    %v2771 = vmul.f32 %v2643, %v2514
    %v2772 = vmul.f32 %v2644, %v2515
    %v2773 = vmul.f32 %v2645, %v2516
    %v2774 = vmul.f32 %v2646, %v2517
    %v2775 = vmul.f32 %v2647, %v2518
    %v2776 = vmul.f32 %v2648, %v2519
    %v2777 = vmul.f32 %v2649, %v2520
    %v2778 = vmul.f32 %v2650, %v2521
    %v2779 = vmul.f32 %v2651, %v2522
    %v2780 = vmul.f32 %v2652, %v2523
    %v2781 = vmul.f32 %v2653, %v2524
    %v2782 = vmul.f32 %v2654, %v2525
    %v2783 = vmul.f32 %v2655, %v2526
    %v2784 = vmul.f32 %v2656, %v2527
    %v2785 = vmul.f32 %v2657, %v2528
    %v2786 = vmul.f32 %v2658, %v2529
    %v2787 = vmul.f32 %v2659, %v2530
    %v2788 = vmul.f32 %v2660, %v2531
    %v2789 = vmul.f32 %v2661, %v2532
    %v2790 = vmul.f32 %v2662, %v2533
    %v2791 = vmul.f32 %v2663, %v2534
    %v2792 = vmul.f32 %v2664, %v2535
    %v2793 = vmul.f32 %v2665, %v2536
    %v2794 = vmul.f32 %v2666, %v2537
    %v2795 = vmul.f32 %v2667, %v2538
    %v2796 = vmul.f32 %v2668, %v2539
    %v2797 = vmul.f32 %v2669, %v2540
    %v2798 = vmul.f32 %v2670, %v2541
    %v2799 = vmul.f32 %v2671, %v2542
    %v2800 = vmul.f32 %v2672, %v2543
    %v2801 = vmul.f32 %v2673, %v2544
    %v2802 = vmul.f32 %v2674, %v2545
    %v2803 = vmul.f32 %v2675, %v2546
    %v2804 = vmul.f32 %v2676, %v2547
    %v2805 = vmul.f32 %v2677, %v2548
    %v2806 = vmul.f32 %v2678, %v2549
    %v2807 = vmul.f32 %v2679, %v2550
    %v2808 = vmul.f32 %v2680, %v2551
    %v2809 = vmul.f32 %v2681, %v2552
    %v2810 = vmul.f32 %v2682, %v2553
    %v2811 = vmul.f32 %v2683, %v2554
    %v2812 = vmul.f32 %v2684, %v2555
    %v2813 = vmul.f32 %v2685, %v2556
    %v2814 = vmul.f32 %v2686, %v2557
    %v2815 = vmul.f32 %v2687, %v2558
    %v2816 = vmul.f32 %v2688, %v2559
    %v2817 = vmul.f32 %v2689, %v2560
    %v2818 = vmul.f32 %v2690, %v2561
    %v2819 = vmul.f32 %v2691, %v2562
    %v2820 = vmul.f32 %v2692, %v2563
    %v2821 = vmul.f32 %v2693, %v2564
    %v2822 = vmul.f32 %v2694, %v2565
    %v2823 = vmul.f32 %v2695, %v2566
    %v2824 = vmul.f32 %v2696, %v2567
    %v2825 = vmul.f32 %v2697, %v2568
    %v2826 = vmul.f32 %v2698, %v2569
    %v2827 = vmul.f32 %v2699, %v2570
    %v2828 = vmul.f32 %v2700, %v2571
    %v2829 = vmul.f32 %v2701, %v2572
    %v2830 = vmul.f32 %v2702, %v2573
    %v2831 = vmul.f32 %v2703, %v2574
    %v2832 = vmul.f32 %v2704, %v2575
    %v2833 = vmul.f32 %v2705, %v2576
    %v2834 = vmul.f32 %v2706, %v2577
    %v2835 = vmul.f32 %v2707, %v2578
    %v2836 = vmul.f32 %v2708, %v2579
    %v2837 = vmul.f32 %v2709, %v2580
    %v2838 = vmul.f32 %v2710, %v2581
    %v2839 = vmul.f32 %v2711, %v2582
    %v2840 = vmul.f32 %v2712, %v2583
    %v2841 = vmul.f32 %v2713, %v2584
    %v2842 = vmul.f32 %v2714, %v2585
    %v2843 = vmul.f32 %v2715, %v2586
    %v2844 = vmul.f32 %v2716, %v2587
    %v2845 = vmul.f32 %v2717, %v2588
    %v2846 = vmul.f32 %v2718, %v2589
    %v2847 = vmul.f32 %v2719, %v2590
    %v2848 = vmul.f32 %v2720, %v2591
    %v2849 = vmul.f32 %v2721, %v2592
    %v2850 = vmul.f32 %v2722, %v2593
    %v2851 = vmul.f32 %v2723, %v2594
    %v2852 = vmul.f32 %v2724, %v2595
    %v2853 = vmul.f32 %v2725, %v2596
    %v2854 = vmul.f32 %v2726, %v2597
    %v2855 = vmul.f32 %v2727, %v2598
    %v2856 = vmul.f32 %v2728, %v2599
    %v2857 = vmul.f32 %v2729, %v2600
    %v2858 = vmul.f32 %v2730, %v2601
    %v2859 = vmul.f32 %v2731, %v2602
    %v2860 = vmul.f32 %v2732, %v2603
    %v2861 = vmul.f32 %v2733, %v2604
    %v2862 = vmul.f32 %v2734, %v2605
    %v2863 = vmul.f32 %v2735, %v2606
    %v2864 = vmul.f32 %v2736, %v2607
    %v2865 = vmul.f32 %v2737, %v2608
    %v2866 = vmul.f32 %v2738, %v2609
    %v2867 = vmul.f32 %v2739, %v2610
    %v2868 = vmul.f32 %v2740, %v2611
    %v2869 = vmul.f32 %v2741, %v2612
    %v2870 = vmul.f32 %v2742, %v2613
    %v2871 = vmul.f32 %v2743, %v2614
    %v2872 = vadd.f32 %v563, 0.75
    %v2873 = vsub.f32 %v2872, %v29
    %v2874 = vsub.f32 %v2872, %v33
    %v2875 = vsub.f32 %v2872, %v37
    %v2876 = vsub.f32 %v2872, %v41
    %v2877 = vsub.f32 %v2872, %v45
    %v2878 = vsub.f32 %v2872, %v49
    %v2879 = vsub.f32 %v2872, %v53
    %v2880 = vsub.f32 %v2872, %v57
    %v2881 = vsub.f32 %v2872, %v61
    %v2882 = vsub.f32 %v2872, %v65
    %v2883 = vsub.f32 %v2872, %v69
    %v2884 = vsub.f32 %v2872, %v73
    %v2885 = vsub.f32 %v2872, %v77
    %v2886 = vsub.f32 %v2872, %v81
    %v2887 = vsub.f32 %v2872, %v85
    %v2888 = vsub.f32 %v2872, %v89
    %v2889 = vsub.f32 %v2872, %v96
    %v2890 = vsub.f32 %v2872, %v100
    %v2891 = vsub.f32 %v2872, %v104
    %v2892 = vsub.f32 %v2872, %v108
    %v2893 = vsub.f32 %v2872, %v112
    %v2894 = vsub.f32 %v2872, %v116
    %v2895 = vsub.f32 %v2872, %v120
    %v2896 = vsub.f32 %v2872, %v124
    %v2897 = vsub.f32 %v2872, %v128
    %v2898 = vsub.f32 %v2872, %v132
    %v2899 = vsub.f32 %v2872, %v136
    %v2900 = vsub.f32 %v2872, %v140
    %v2901 = vsub.f32 %v2872, %v144
    %v2902 = vsub.f32 %v2872, %v148
    %v2903 = vsub.f32 %v2872, %v152
    %v2904 = vsub.f32 %v2872, %v156
    %v2905 = vsub.f32 %v2872, %v163
    %v2906 = vsub.f32 %v2872, %v167
    %v2907 = vsub.f32 %v2872, %v171
    %v2908 = vsub.f32 %v2872, %v175
    %v2909 = vsub.f32 %v2872, %v179
    %v2910 = vsub.f32 %v2872, %v183
    %v2911 = vsub.f32 %v2872, %v187
    %v2912 = vsub.f32 %v2872, %v191
    %v2913 = vsub.f32 %v2872, %v195
    %v2914 = vsub.f32 %v2872, %v199
    %v2915 = vsub.f32 %v2872, %v203
    %v2916 = vsub.f32 %v2872, %v207
    %v2917 = vsub.f32 %v2872, %v211
    %v2918 = vsub.f32 %v2872, %v215
    %v2919 = vsub.f32 %v2872, %v219
    %v2920 = vsub.f32 %v2872, %v223
    %v2921 = vsub.f32 %v2872, %v230
    %v2922 = vsub.f32 %v2872, %v234
    %v2923 = vsub.f32 %v2872, %v238
    %v2924 = vsub.f32 %v2872, %v242
    %v2925 = vsub.f32 %v2872, %v246
    %v2926 = vsub.f32 %v2872, %v250
    %v2927 = vsub.f32 %v2872, %v254
    %v2928 = vsub.f32 %v2872, %v258
    %v2929 = vsub.f32 %v2872, %v262
    %v2930 = vsub.f32 %v2872, %v266
    %v2931 = vsub.f32 %v2872, %v270
    %v2932 = vsub.f32 %v2872, %v274
    %v2933 = vsub.f32 %v2872, %v278
    %v2934 = vsub.f32 %v2872, %v282
    %v2935 = vsub.f32 %v2872, %v286
    %v2936 = vsub.f32 %v2872, %v290
    %v2937 = vsub.f32 %v2872, %v297
    %v2938 = vsub.f32 %v2872, %v301
    %v2939 = vsub.f32 %v2872, %v305
    %v2940 = vsub.f32 %v2872, %v309
    %v2941 = vsub.f32 %v2872, %v313
    %v2942 = vsub.f32 %v2872, %v317
    %v2943 = vsub.f32 %v2872, %v321
    %v2944 = vsub.f32 %v2872, %v325
    %v2945 = vsub.f32 %v2872, %v329
    %v2946 = vsub.f32 %v2872, %v333
    %v2947 = vsub.f32 %v2872, %v337
    %v2948 = vsub.f32 %v2872, %v341
    %v2949 = vsub.f32 %v2872, %v345
    %v2950 = vsub.f32 %v2872, %v349
    %v2951 = vsub.f32 %v2872, %v353
    %v2952 = vsub.f32 %v2872, %v357
    %v2953 = vsub.f32 %v2872, %v364
    %v2954 = vsub.f32 %v2872, %v368
    %v2955 = vsub.f32 %v2872, %v372
    %v2956 = vsub.f32 %v2872, %v376
    %v2957 = vsub.f32 %v2872, %v380
    %v2958 = vsub.f32 %v2872, %v384
    %v2959 = vsub.f32 %v2872, %v388
    %v2960 = vsub.f32 %v2872, %v392
    %v2961 = vsub.f32 %v2872, %v396
    %v2962 = vsub.f32 %v2872, %v400
    %v2963 = vsub.f32 %v2872, %v404
    %v2964 = vsub.f32 %v2872, %v408
    %v2965 = vsub.f32 %v2872, %v412
    %v2966 = vsub.f32 %v2872, %v416
    %v2967 = vsub.f32 %v2872, %v420
    %v2968 = vsub.f32 %v2872, %v424
    %v2969 = vsub.f32 %v2872, %v431
    %v2970 = vsub.f32 %v2872, %v435
    %v2971 = vsub.f32 %v2872, %v439
    %v2972 = vsub.f32 %v2872, %v443
    %v2973 = vsub.f32 %v2872, %v447
    %v2974 = vsub.f32 %v2872, %v451
    %v2975 = vsub.f32 %v2872, %v455
    %v2976 = vsub.f32 %v2872, %v459
    %v2977 = vsub.f32 %v2872, %v463
    %v2978 = vsub.f32 %v2872, %v467
    %v2979 = vsub.f32 %v2872, %v471
    %v2980 = vsub.f32 %v2872, %v475
    %v2981 = vsub.f32 %v2872, %v479
    %v2982 = vsub.f32 %v2872, %v483
    %v2983 = vsub.f32 %v2872, %v487
    %v2984 = vsub.f32 %v2872, %v491
    %v2985 = vsub.f32 %v2872, %v498
    %v2986 = vsub.f32 %v2872, %v502
    %v2987 = vsub.f32 %v2872, %v506
    %v2988 = vsub.f32 %v2872, %v510
    %v2989 = vsub.f32 %v2872, %v514
    %v2990 = vsub.f32 %v2872, %v518
    %v2991 = vsub.f32 %v2872, %v522
    %v2992 = vsub.f32 %v2872, %v526
    %v2993 = vsub.f32 %v2872, %v530
    %v2994 = vsub.f32 %v2872, %v534
    %v2995 = vsub.f32 %v2872, %v538
    %v2996 = vsub.f32 %v2872, %v542
    %v2997 = vsub.f32 %v2872, %v546
    %v2998 = vsub.f32 %v2872, %v550
    %v2999 = vsub.f32 %v2872, %v554
    %v3000 = vsub.f32 %v2872, %v558
    %v3001 = vmul.f32 %v2873, %v2615
    %v3002 = vmul.f32 %v2874, %v2615
    %v3003 = vmul.f32 %v2875, %v2615
    %v3004 = vmul.f32 %v2876, %v2615
    %v3005 = vmul.f32 %v2877, %v2615
    %v3006 = vmul.f32 %v2878, %v2615
    %v3007 = vmul.f32 %v2879, %v2615
    %v3008 = vmul.f32 %v2880, %v2615
    %v3009 = vmul.f32 %v2881, %v2615
    %v3010 = vmul.f32 %v2882, %v2615
    %v3011 = vmul.f32 %v2883, %v2615
    %v3012 = vmul.f32 %v2884, %v2615
    %v3013 = vmul.f32 %v2885, %v2615
    %v3014 = vmul.f32 %v2886, %v2615
    %v3015 = vmul.f32 %v2887, %v2615
    %v3016 = vmul.f32 %v2888, %v2615
    %v3017 = vmul.f32 %v2889, %v2615
    %v3018 = vmul.f32 %v2890, %v2615
    %v3019 = vmul.f32 %v2891, %v2615
    %v3020 = vmul.f32 %v2892, %v2615
    %v3021 = vmul.f32 %v2893, %v2615
    %v3022 = vmul.f32 %v2894, %v2615
    %v3023 = vmul.f32 %v2895, %v2615
    %v3024 = vmul.f32 %v2896, %v2615
    %v3025 = vmul.f32 %v2897, %v2615
    %v3026 = vmul.f32 %v2898, %v2615
    %v3027 = vmul.f32 %v2899, %v2615
    %v3028 = vmul.f32 %v2900, %v2615
    %v3029 = vmul.f32 %v2901, %v2615
    %v3030 = vmul.f32 %v2902, %v2615
    %v3031 = vmul.f32 %v2903, %v2615
    %v3032 = vmul.f32 %v2904, %v2615
    %v3033 = vmul.f32 %v2905, %v2615
    %v3034 = vmul.f32 %v2906, %v2615
    %v3035 = vmul.f32 %v2907, %v2615
    %v3036 = vmul.f32 %v2908, %v2615
    %v3037 = vmul.f32 %v2909, %v2615
    %v3038 = vmul.f32 %v2910, %v2615
    %v3039 = vmul.f32 %v2911, %v2615
    %v3040 = vmul.f32 %v2912, %v2615
    %v3041 = vmul.f32 %v2913, %v2615
    %v3042 = vmul.f32 %v2914, %v2615
    %v3043 = vmul.f32 %v2915, %v2615
    %v3044 = vmul.f32 %v2916, %v2615
    %v3045 = vmul.f32 %v2917, %v2615
    %v3046 = vmul.f32 %v2918, %v2615
    %v3047 = vmul.f32 %v2919, %v2615
    %v3048 = vmul.f32 %v2920, %v2615
    %v3049 = vmul.f32 %v2921, %v2615
    %v3050 = vmul.f32 %v2922, %v2615
    %v3051 = vmul.f32 %v2923, %v2615
    %v3052 = vmul.f32 %v2924, %v2615
    %v3053 = vmul.f32 %v2925, %v2615
    %v3054 = vmul.f32 %v2926, %v2615
    %v3055 = vmul.f32 %v2927, %v2615
    %v3056 = vmul.f32 %v2928, %v2615
    %v3057 = vmul.f32 %v2929, %v2615
    %v3058 = vmul.f32 %v2930, %v2615
    %v3059 = vmul.f32 %v2931, %v2615
    %v3060 = vmul.f32 %v2932, %v2615
    %v3061 = vmul.f32 %v2933, %v2615
    %v3062 = vmul.f32 %v2934, %v2615
    %v3063 = vmul.f32 %v2935, %v2615
    %v3064 = vmul.f32 %v2936, %v2615
    %v3065 = vmul.f32 %v2937, %v2615
    %v3066 = vmul.f32 %v2938, %v2615
    %v3067 = vmul.f32 %v2939, %v2615
    %v3068 = vmul.f32 %v2940, %v2615
    %v3069 = vmul.f32 %v2941, %v2615
    %v3070 = vmul.f32 %v2942, %v2615
    %v3071 = vmul.f32 %v2943, %v2615
    %v3072 = vmul.f32 %v2944, %v2615
    %v3073 = vmul.f32 %v2945, %v2615
    %v3074 = vmul.f32 %v2946, %v2615
    %v3075 = vmul.f32 %v2947, %v2615
    %v3076 = vmul.f32 %v2948, %v2615
    %v3077 = vmul.f32 %v2949, %v2615
    %v3078 = vmul.f32 %v2950, %v2615
    %v3079 = vmul.f32 %v2951, %v2615
    %v3080 = vmul.f32 %v2952, %v2615
    %v3081 = vmul.f32 %v2953, %v2615
    %v3082 = vmul.f32 %v2954, %v2615
    %v3083 = vmul.f32 %v2955, %v2615
    %v3084 = vmul.f32 %v2956, %v2615
    %v3085 = vmul.f32 %v2957, %v2615
    %v3086 = vmul.f32 %v2958, %v2615
    %v3087 = vmul.f32 %v2959, %v2615
    %v3088 = vmul.f32 %v2960, %v2615
    %v3089 = vmul.f32 %v2961, %v2615
    %v3090 = vmul.f32 %v2962, %v2615
    %v3091 = vmul.f32 %v2963, %v2615
    %v3092 = vmul.f32 %v2964, %v2615
    %v3093 = vmul.f32 %v2965, %v2615
    %v3094 = vmul.f32 %v2966, %v2615
    %v3095 = vmul.f32 %v2967, %v2615
    %v3096 = vmul.f32 %v2968, %v2615
    %v3097 = vmul.f32 %v2969, %v2615
    %v3098 = vmul.f32 %v2970, %v2615
    %v3099 = vmul.f32 %v2971, %v2615
    %v3100 = vmul.f32 %v2972, %v2615
    %v3101 = vmul.f32 %v2973, %v2615
    %v3102 = vmul.f32 %v2974, %v2615
    %v3103 = vmul.f32 %v2975, %v2615
    %v3104 = vmul.f32 %v2976, %v2615
    %v3105 = vmul.f32 %v2977, %v2615
    %v3106 = vmul.f32 %v2978, %v2615
    %v3107 = vmul.f32 %v2979, %v2615
    %v3108 = vmul.f32 %v2980, %v2615
    %v3109 = vmul.f32 %v2981, %v2615
    %v3110 = vmul.f32 %v2982, %v2615
    %v3111 = vmul.f32 %v2983, %v2615
    %v3112 = vmul.f32 %v2984, %v2615
    %v3113 = vmul.f32 %v2985, %v2615
    %v3114 = vmul.f32 %v2986, %v2615
    %v3115 = vmul.f32 %v2987, %v2615
    %v3116 = vmul.f32 %v2988, %v2615
    %v3117 = vmul.f32 %v2989, %v2615
    %v3118 = vmul.f32 %v2990, %v2615
    %v3119 = vmul.f32 %v2991, %v2615
    %v3120 = vmul.f32 %v2992, %v2615
    %v3121 = vmul.f32 %v2993, %v2615
    %v3122 = vmul.f32 %v2994, %v2615
    %v3123 = vmul.f32 %v2995, %v2615
    %v3124 = vmul.f32 %v2996, %v2615
    %v3125 = vmul.f32 %v2997, %v2615
    %v3126 = vmul.f32 %v2998, %v2615
    %v3127 = vmul.f32 %v2999, %v2615
    %v3128 = vmul.f32 %v3000, %v2615
    %3257 = vrot.lane.b32.xlu0 %v2487, 127
    %v3258 = vpop.permute.xlu0 %3257
    %3259 = vrot.lane.b32.xlu0 %v2488, 127
    %v3260 = vpop.permute.xlu0 %3259
    %3261 = vrot.lane.b32.xlu0 %v2489, 127
    %v3262 = vpop.permute.xlu0 %3261
    %3263 = vrot.lane.b32.xlu0 %v2490, 127
    %v3264 = vpop.permute.xlu0 %3263
    %3265 = vrot.lane.b32.xlu0 %v2491, 127
    %v3266 = vpop.permute.xlu0 %3265
    %3267 = vrot.lane.b32.xlu0 %v2492, 127
    %v3268 = vpop.permute.xlu0 %3267
    %3269 = vrot.lane.b32.xlu0 %v2493, 127
    %v3270 = vpop.permute.xlu0 %3269
    %3271 = vrot.lane.b32.xlu0 %v2494, 127
    %v3272 = vpop.permute.xlu0 %3271
    %3273 = vrot.lane.b32.xlu0 %v2495, 127
    %v3274 = vpop.permute.xlu0 %3273
    %3275 = vrot.lane.b32.xlu0 %v2496, 127
    %v3276 = vpop.permute.xlu0 %3275
    %3277 = vrot.lane.b32.xlu0 %v2497, 127
    %v3278 = vpop.permute.xlu0 %3277
    %3279 = vrot.lane.b32.xlu0 %v2498, 127
    %v3280 = vpop.permute.xlu0 %3279
    %3281 = vrot.lane.b32.xlu0 %v2499, 127
    %v3282 = vpop.permute.xlu0 %3281
    %3283 = vrot.lane.b32.xlu0 %v2500, 127
    %v3284 = vpop.permute.xlu0 %3283
    %3285 = vrot.lane.b32.xlu0 %v2501, 127
    %v3286 = vpop.permute.xlu0 %3285
    %3287 = vrot.lane.b32.xlu0 %v2502, 127
    %v3288 = vpop.permute.xlu0 %3287
    %3289 = vrot.lane.b32.xlu0 %v2503, 127
    %v3290 = vpop.permute.xlu0 %3289
    %3291 = vrot.lane.b32.xlu0 %v2504, 127
    %v3292 = vpop.permute.xlu0 %3291
    %3293 = vrot.lane.b32.xlu0 %v2505, 127
    %v3294 = vpop.permute.xlu0 %3293
    %3295 = vrot.lane.b32.xlu0 %v2506, 127
    %v3296 = vpop.permute.xlu0 %3295
    %3297 = vrot.lane.b32.xlu0 %v2507, 127
    %v3298 = vpop.permute.xlu0 %3297
    %3299 = vrot.lane.b32.xlu0 %v2508, 127
    %v3300 = vpop.permute.xlu0 %3299
    %3301 = vrot.lane.b32.xlu0 %v2509, 127
    %v3302 = vpop.permute.xlu0 %3301
    %3303 = vrot.lane.b32.xlu0 %v2510, 127
    %v3304 = vpop.permute.xlu0 %3303
    %3305 = vrot.lane.b32.xlu0 %v2511, 127
    %v3306 = vpop.permute.xlu0 %3305
    %3307 = vrot.lane.b32.xlu0 %v2512, 127
    %v3308 = vpop.permute.xlu0 %3307
    %3309 = vrot.lane.b32.xlu0 %v2513, 127
    %v3310 = vpop.permute.xlu0 %3309
    %3311 = vrot.lane.b32.xlu0 %v2514, 127
    %v3312 = vpop.permute.xlu0 %3311
    %3313 = vrot.lane.b32.xlu0 %v2515, 127
    %v3314 = vpop.permute.xlu0 %3313
    %3315 = vrot.lane.b32.xlu0 %v2516, 127
    %v3316 = vpop.permute.xlu0 %3315
    %3317 = vrot.lane.b32.xlu0 %v2517, 127
    %v3318 = vpop.permute.xlu0 %3317
    %3319 = vrot.lane.b32.xlu0 %v2518, 127
    %v3320 = vpop.permute.xlu0 %3319
    %3321 = vrot.lane.b32.xlu0 %v2519, 127
    %v3322 = vpop.permute.xlu0 %3321
    %3323 = vrot.lane.b32.xlu0 %v2520, 127
    %v3324 = vpop.permute.xlu0 %3323
    %3325 = vrot.lane.b32.xlu0 %v2521, 127
    %v3326 = vpop.permute.xlu0 %3325
    %3327 = vrot.lane.b32.xlu0 %v2522, 127
    %v3328 = vpop.permute.xlu0 %3327
    %3329 = vrot.lane.b32.xlu0 %v2523, 127
    %v3330 = vpop.permute.xlu0 %3329
    %3331 = vrot.lane.b32.xlu0 %v2524, 127
    %v3332 = vpop.permute.xlu0 %3331
    %3333 = vrot.lane.b32.xlu0 %v2525, 127
    %v3334 = vpop.permute.xlu0 %3333
    %3335 = vrot.lane.b32.xlu0 %v2526, 127
    %v3336 = vpop.permute.xlu0 %3335
    %3337 = vrot.lane.b32.xlu0 %v2527, 127
    %v3338 = vpop.permute.xlu0 %3337
    %3339 = vrot.lane.b32.xlu0 %v2528, 127
    %v3340 = vpop.permute.xlu0 %3339
    %3341 = vrot.lane.b32.xlu0 %v2529, 127
    %v3342 = vpop.permute.xlu0 %3341
    %3343 = vrot.lane.b32.xlu0 %v2530, 127
    %v3344 = vpop.permute.xlu0 %3343
    %3345 = vrot.lane.b32.xlu0 %v2531, 127
    %v3346 = vpop.permute.xlu0 %3345
    %3347 = vrot.lane.b32.xlu0 %v2532, 127
    %v3348 = vpop.permute.xlu0 %3347
    %3349 = vrot.lane.b32.xlu0 %v2533, 127
    %v3350 = vpop.permute.xlu0 %3349
    %3351 = vrot.lane.b32.xlu0 %v2534, 127
    %v3352 = vpop.permute.xlu0 %3351
    %3353 = vrot.lane.b32.xlu0 %v2535, 127
    %v3354 = vpop.permute.xlu0 %3353
    %3355 = vrot.lane.b32.xlu0 %v2536, 127
    %v3356 = vpop.permute.xlu0 %3355
    %3357 = vrot.lane.b32.xlu0 %v2537, 127
    %v3358 = vpop.permute.xlu0 %3357
    %3359 = vrot.lane.b32.xlu0 %v2538, 127
    %v3360 = vpop.permute.xlu0 %3359
    %3361 = vrot.lane.b32.xlu0 %v2539, 127
    %v3362 = vpop.permute.xlu0 %3361
    %3363 = vrot.lane.b32.xlu0 %v2540, 127
    %v3364 = vpop.permute.xlu0 %3363
    %3365 = vrot.lane.b32.xlu0 %v2541, 127
    %v3366 = vpop.permute.xlu0 %3365
    %3367 = vrot.lane.b32.xlu0 %v2542, 127
    %v3368 = vpop.permute.xlu0 %3367
    %3369 = vrot.lane.b32.xlu0 %v2543, 127
    %v3370 = vpop.permute.xlu0 %3369
    %3371 = vrot.lane.b32.xlu0 %v2544, 127
    %v3372 = vpop.permute.xlu0 %3371
    %3373 = vrot.lane.b32.xlu0 %v2545, 127
    %v3374 = vpop.permute.xlu0 %3373
    %3375 = vrot.lane.b32.xlu0 %v2546, 127
    %v3376 = vpop.permute.xlu0 %3375
    %3377 = vrot.lane.b32.xlu0 %v2547, 127
    %v3378 = vpop.permute.xlu0 %3377
    %3379 = vrot.lane.b32.xlu0 %v2548, 127
    %v3380 = vpop.permute.xlu0 %3379
    %3381 = vrot.lane.b32.xlu0 %v2549, 127
    %v3382 = vpop.permute.xlu0 %3381
    %3383 = vrot.lane.b32.xlu0 %v2550, 127
    %v3384 = vpop.permute.xlu0 %3383
    %3385 = vrot.lane.b32.xlu0 %v2551, 127
    %v3386 = vpop.permute.xlu0 %3385
    %3387 = vrot.lane.b32.xlu0 %v2552, 127
    %v3388 = vpop.permute.xlu0 %3387
    %3389 = vrot.lane.b32.xlu0 %v2553, 127
    %v3390 = vpop.permute.xlu0 %3389
    %3391 = vrot.lane.b32.xlu0 %v2554, 127
    %v3392 = vpop.permute.xlu0 %3391
    %3393 = vrot.lane.b32.xlu0 %v2555, 127
    %v3394 = vpop.permute.xlu0 %3393
    %3395 = vrot.lane.b32.xlu0 %v2556, 127
    %v3396 = vpop.permute.xlu0 %3395
    %3397 = vrot.lane.b32.xlu0 %v2557, 127
    %v3398 = vpop.permute.xlu0 %3397
    %3399 = vrot.lane.b32.xlu0 %v2558, 127
    %v3400 = vpop.permute.xlu0 %3399
    %3401 = vrot.lane.b32.xlu0 %v2559, 127
    %v3402 = vpop.permute.xlu0 %3401
    %3403 = vrot.lane.b32.xlu0 %v2560, 127
    %v3404 = vpop.permute.xlu0 %3403
    %3405 = vrot.lane.b32.xlu0 %v2561, 127
    %v3406 = vpop.permute.xlu0 %3405
    %3407 = vrot.lane.b32.xlu0 %v2562, 127
    %v3408 = vpop.permute.xlu0 %3407
    %3409 = vrot.lane.b32.xlu0 %v2563, 127
    %v3410 = vpop.permute.xlu0 %3409
    %3411 = vrot.lane.b32.xlu0 %v2564, 127
    %v3412 = vpop.permute.xlu0 %3411
    %3413 = vrot.lane.b32.xlu0 %v2565, 127
    %v3414 = vpop.permute.xlu0 %3413
    %3415 = vrot.lane.b32.xlu0 %v2566, 127
    %v3416 = vpop.permute.xlu0 %3415
    %3417 = vrot.lane.b32.xlu0 %v2567, 127
    %v3418 = vpop.permute.xlu0 %3417
    %3419 = vrot.lane.b32.xlu0 %v2568, 127
    %v3420 = vpop.permute.xlu0 %3419
    %3421 = vrot.lane.b32.xlu0 %v2569, 127
    %v3422 = vpop.permute.xlu0 %3421
    %3423 = vrot.lane.b32.xlu0 %v2570, 127
    %v3424 = vpop.permute.xlu0 %3423
    %3425 = vrot.lane.b32.xlu0 %v2571, 127
    %v3426 = vpop.permute.xlu0 %3425
    %3427 = vrot.lane.b32.xlu0 %v2572, 127
    %v3428 = vpop.permute.xlu0 %3427
    %3429 = vrot.lane.b32.xlu0 %v2573, 127
    %v3430 = vpop.permute.xlu0 %3429
    %3431 = vrot.lane.b32.xlu0 %v2574, 127
    %v3432 = vpop.permute.xlu0 %3431
    %3433 = vrot.lane.b32.xlu0 %v2575, 127
    %v3434 = vpop.permute.xlu0 %3433
    %3435 = vrot.lane.b32.xlu0 %v2576, 127
    %v3436 = vpop.permute.xlu0 %3435
    %3437 = vrot.lane.b32.xlu0 %v2577, 127
    %v3438 = vpop.permute.xlu0 %3437
    %3439 = vrot.lane.b32.xlu0 %v2578, 127
    %v3440 = vpop.permute.xlu0 %3439
    %3441 = vrot.lane.b32.xlu0 %v2579, 127
    %v3442 = vpop.permute.xlu0 %3441
    %3443 = vrot.lane.b32.xlu0 %v2580, 127
    %v3444 = vpop.permute.xlu0 %3443
    %3445 = vrot.lane.b32.xlu0 %v2581, 127
    %v3446 = vpop.permute.xlu0 %3445
    %3447 = vrot.lane.b32.xlu0 %v2582, 127
    %v3448 = vpop.permute.xlu0 %3447
    %3449 = vrot.lane.b32.xlu0 %v2583, 127
    %v3450 = vpop.permute.xlu0 %3449
    %3451 = vrot.lane.b32.xlu0 %v2584, 127
    %v3452 = vpop.permute.xlu0 %3451
    %3453 = vrot.lane.b32.xlu0 %v2585, 127
    %v3454 = vpop.permute.xlu0 %3453
    %3455 = vrot.lane.b32.xlu0 %v2586, 127
    %v3456 = vpop.permute.xlu0 %3455
    %3457 = vrot.lane.b32.xlu0 %v2587, 127
    %v3458 = vpop.permute.xlu0 %3457
    %3459 = vrot.lane.b32.xlu0 %v2588, 127
    %v3460 = vpop.permute.xlu0 %3459
    %3461 = vrot.lane.b32.xlu0 %v2589, 127
    %v3462 = vpop.permute.xlu0 %3461
    %3463 = vrot.lane.b32.xlu0 %v2590, 127
    %v3464 = vpop.permute.xlu0 %3463
    %3465 = vrot.lane.b32.xlu0 %v2591, 127
    %v3466 = vpop.permute.xlu0 %3465
    %3467 = vrot.lane.b32.xlu0 %v2592, 127
    %v3468 = vpop.permute.xlu0 %3467
    %3469 = vrot.lane.b32.xlu0 %v2593, 127
    %v3470 = vpop.permute.xlu0 %3469
    %3471 = vrot.lane.b32.xlu0 %v2594, 127
    %v3472 = vpop.permute.xlu0 %3471
    %3473 = vrot.lane.b32.xlu0 %v2595, 127
    %v3474 = vpop.permute.xlu0 %3473
    %3475 = vrot.lane.b32.xlu0 %v2596, 127
    %v3476 = vpop.permute.xlu0 %3475
    %3477 = vrot.lane.b32.xlu0 %v2597, 127
    %v3478 = vpop.permute.xlu0 %3477
    %3479 = vrot.lane.b32.xlu0 %v2598, 127
    %v3480 = vpop.permute.xlu0 %3479
    %3481 = vrot.lane.b32.xlu0 %v2599, 127
    %v3482 = vpop.permute.xlu0 %3481
    %3483 = vrot.lane.b32.xlu0 %v2600, 127
    %v3484 = vpop.permute.xlu0 %3483
    %3485 = vrot.lane.b32.xlu0 %v2601, 127
    %v3486 = vpop.permute.xlu0 %3485
    %3487 = vrot.lane.b32.xlu0 %v2602, 127
    %v3488 = vpop.permute.xlu0 %3487
    %3489 = vrot.lane.b32.xlu0 %v2603, 127
    %v3490 = vpop.permute.xlu0 %3489
    %3491 = vrot.lane.b32.xlu0 %v2604, 127
    %v3492 = vpop.permute.xlu0 %3491
    %3493 = vrot.lane.b32.xlu0 %v2605, 127
    %v3494 = vpop.permute.xlu0 %3493
    %3495 = vrot.lane.b32.xlu0 %v2606, 127
    %v3496 = vpop.permute.xlu0 %3495
    %3497 = vrot.lane.b32.xlu0 %v2607, 127
    %v3498 = vpop.permute.xlu0 %3497
    %3499 = vrot.lane.b32.xlu0 %v2608, 127
    %v3500 = vpop.permute.xlu0 %3499
    %3501 = vrot.lane.b32.xlu0 %v2609, 127
    %v3502 = vpop.permute.xlu0 %3501
    %3503 = vrot.lane.b32.xlu0 %v2610, 127
    %v3504 = vpop.permute.xlu0 %3503
    %3505 = vrot.lane.b32.xlu0 %v2611, 127
    %v3506 = vpop.permute.xlu0 %3505
    %3507 = vrot.lane.b32.xlu0 %v2612, 127
    %v3508 = vpop.permute.xlu0 %3507
    %3509 = vrot.lane.b32.xlu0 %v2613, 127
    %v3510 = vpop.permute.xlu0 %3509
    %3511 = vrot.lane.b32.xlu0 %v2614, 127
    %v3512 = vpop.permute.xlu0 %3511
    %v3641 = vmul.f32 %v3001, %v3258
    %v3642 = vmul.f32 %v3002, %v3260
    %v3643 = vmul.f32 %v3003, %v3262
    %v3644 = vmul.f32 %v3004, %v3264
    %v3645 = vmul.f32 %v3005, %v3266
    %v3646 = vmul.f32 %v3006, %v3268
    %v3647 = vmul.f32 %v3007, %v3270
    %v3648 = vmul.f32 %v3008, %v3272
    %v3649 = vmul.f32 %v3009, %v3274
    %v3650 = vmul.f32 %v3010, %v3276
    %v3651 = vmul.f32 %v3011, %v3278
    %v3652 = vmul.f32 %v3012, %v3280
    %v3653 = vmul.f32 %v3013, %v3282
    %v3654 = vmul.f32 %v3014, %v3284
    %v3655 = vmul.f32 %v3015, %v3286
    %v3656 = vmul.f32 %v3016, %v3288
    %v3657 = vmul.f32 %v3017, %v3290
    %v3658 = vmul.f32 %v3018, %v3292
    %v3659 = vmul.f32 %v3019, %v3294
    %v3660 = vmul.f32 %v3020, %v3296
    %v3661 = vmul.f32 %v3021, %v3298
    %v3662 = vmul.f32 %v3022, %v3300
    %v3663 = vmul.f32 %v3023, %v3302
    %v3664 = vmul.f32 %v3024, %v3304
    %v3665 = vmul.f32 %v3025, %v3306
    %v3666 = vmul.f32 %v3026, %v3308
    %v3667 = vmul.f32 %v3027, %v3310
    %v3668 = vmul.f32 %v3028, %v3312
    %v3669 = vmul.f32 %v3029, %v3314
    %v3670 = vmul.f32 %v3030, %v3316
    %v3671 = vmul.f32 %v3031, %v3318
    %v3672 = vmul.f32 %v3032, %v3320
    %v3673 = vmul.f32 %v3033, %v3322
    %v3674 = vmul.f32 %v3034, %v3324
    %v3675 = vmul.f32 %v3035, %v3326
    %v3676 = vmul.f32 %v3036, %v3328
    %v3677 = vmul.f32 %v3037, %v3330
    %v3678 = vmul.f32 %v3038, %v3332
    %v3679 = vmul.f32 %v3039, %v3334
    %v3680 = vmul.f32 %v3040, %v3336
    %v3681 = vmul.f32 %v3041, %v3338
    %v3682 = vmul.f32 %v3042, %v3340
    %v3683 = vmul.f32 %v3043, %v3342
    %v3684 = vmul.f32 %v3044, %v3344
    %v3685 = vmul.f32 %v3045, %v3346
    %v3686 = vmul.f32 %v3046, %v3348
    %v3687 = vmul.f32 %v3047, %v3350
    %v3688 = vmul.f32 %v3048, %v3352
    %v3689 = vmul.f32 %v3049, %v3354
    %v3690 = vmul.f32 %v3050, %v3356
    %v3691 = vmul.f32 %v3051, %v3358
    %v3692 = vmul.f32 %v3052, %v3360
    %v3693 = vmul.f32 %v3053, %v3362
    %v3694 = vmul.f32 %v3054, %v3364
    %v3695 = vmul.f32 %v3055, %v3366
    %v3696 = vmul.f32 %v3056, %v3368
    %v3697 = vmul.f32 %v3057, %v3370
    %v3698 = vmul.f32 %v3058, %v3372
    %v3699 = vmul.f32 %v3059, %v3374
    %v3700 = vmul.f32 %v3060, %v3376
    %v3701 = vmul.f32 %v3061, %v3378
    %v3702 = vmul.f32 %v3062, %v3380
    %v3703 = vmul.f32 %v3063, %v3382
    %v3704 = vmul.f32 %v3064, %v3384
    %v3705 = vmul.f32 %v3065, %v3386
    %v3706 = vmul.f32 %v3066, %v3388
    %v3707 = vmul.f32 %v3067, %v3390
    %v3708 = vmul.f32 %v3068, %v3392
    %v3709 = vmul.f32 %v3069, %v3394
    %v3710 = vmul.f32 %v3070, %v3396
    %v3711 = vmul.f32 %v3071, %v3398
    %v3712 = vmul.f32 %v3072, %v3400
    %v3713 = vmul.f32 %v3073, %v3402
    %v3714 = vmul.f32 %v3074, %v3404
    %v3715 = vmul.f32 %v3075, %v3406
    %v3716 = vmul.f32 %v3076, %v3408
    %v3717 = vmul.f32 %v3077, %v3410
    %v3718 = vmul.f32 %v3078, %v3412
    %v3719 = vmul.f32 %v3079, %v3414
    %v3720 = vmul.f32 %v3080, %v3416
    %v3721 = vmul.f32 %v3081, %v3418
    %v3722 = vmul.f32 %v3082, %v3420
    %v3723 = vmul.f32 %v3083, %v3422
    %v3724 = vmul.f32 %v3084, %v3424
    %v3725 = vmul.f32 %v3085, %v3426
    %v3726 = vmul.f32 %v3086, %v3428
    %v3727 = vmul.f32 %v3087, %v3430
    %v3728 = vmul.f32 %v3088, %v3432
    %v3729 = vmul.f32 %v3089, %v3434
    %v3730 = vmul.f32 %v3090, %v3436
    %v3731 = vmul.f32 %v3091, %v3438
    %v3732 = vmul.f32 %v3092, %v3440
    %v3733 = vmul.f32 %v3093, %v3442
    %v3734 = vmul.f32 %v3094, %v3444
    %v3735 = vmul.f32 %v3095, %v3446
    %v3736 = vmul.f32 %v3096, %v3448
    %v3737 = vmul.f32 %v3097, %v3450
    %v3738 = vmul.f32 %v3098, %v3452
    %v3739 = vmul.f32 %v3099, %v3454
    %v3740 = vmul.f32 %v3100, %v3456
    %v3741 = vmul.f32 %v3101, %v3458
    %v3742 = vmul.f32 %v3102, %v3460
    %v3743 = vmul.f32 %v3103, %v3462
    %v3744 = vmul.f32 %v3104, %v3464
    %v3745 = vmul.f32 %v3105, %v3466
    %v3746 = vmul.f32 %v3106, %v3468
    %v3747 = vmul.f32 %v3107, %v3470
    %v3748 = vmul.f32 %v3108, %v3472
    %v3749 = vmul.f32 %v3109, %v3474
    %v3750 = vmul.f32 %v3110, %v3476
    %v3751 = vmul.f32 %v3111, %v3478
    %v3752 = vmul.f32 %v3112, %v3480
    %v3753 = vmul.f32 %v3113, %v3482
    %v3754 = vmul.f32 %v3114, %v3484
    %v3755 = vmul.f32 %v3115, %v3486
    %v3756 = vmul.f32 %v3116, %v3488
    %v3757 = vmul.f32 %v3117, %v3490
    %v3758 = vmul.f32 %v3118, %v3492
    %v3759 = vmul.f32 %v3119, %v3494
    %v3760 = vmul.f32 %v3120, %v3496
    %v3761 = vmul.f32 %v3121, %v3498
    %v3762 = vmul.f32 %v3122, %v3500
    %v3763 = vmul.f32 %v3123, %v3502
    %v3764 = vmul.f32 %v3124, %v3504
    %v3765 = vmul.f32 %v3125, %v3506
    %v3766 = vmul.f32 %v3126, %v3508
    %v3767 = vmul.f32 %v3127, %v3510
    %v3768 = vmul.f32 %v3128, %v3512
    %v3769 = vadd.f32 %v2744, %v3641
    %v3770 = vadd.f32 %v2745, %v3642
    %v3771 = vadd.f32 %v2746, %v3643
    %v3772 = vadd.f32 %v2747, %v3644
    %v3773 = vadd.f32 %v2748, %v3645
    %v3774 = vadd.f32 %v2749, %v3646
    %v3775 = vadd.f32 %v2750, %v3647
    %v3776 = vadd.f32 %v2751, %v3648
    %v3777 = vadd.f32 %v2752, %v3649
    %v3778 = vadd.f32 %v2753, %v3650
    %v3779 = vadd.f32 %v2754, %v3651
    %v3780 = vadd.f32 %v2755, %v3652
    %v3781 = vadd.f32 %v2756, %v3653
    %v3782 = vadd.f32 %v2757, %v3654
    %v3783 = vadd.f32 %v2758, %v3655
    %v3784 = vadd.f32 %v2759, %v3656
    %v3785 = vadd.f32 %v2760, %v3657
    %v3786 = vadd.f32 %v2761, %v3658
    %v3787 = vadd.f32 %v2762, %v3659
    %v3788 = vadd.f32 %v2763, %v3660
    %v3789 = vadd.f32 %v2764, %v3661
    %v3790 = vadd.f32 %v2765, %v3662
    %v3791 = vadd.f32 %v2766, %v3663
    %v3792 = vadd.f32 %v2767, %v3664
    %v3793 = vadd.f32 %v2768, %v3665
    %v3794 = vadd.f32 %v2769, %v3666
    %v3795 = vadd.f32 %v2770, %v3667
    %v3796 = vadd.f32 %v2771, %v3668
    %v3797 = vadd.f32 %v2772, %v3669
    %v3798 = vadd.f32 %v2773, %v3670
    %v3799 = vadd.f32 %v2774, %v3671
    %v3800 = vadd.f32 %v2775, %v3672
    %v3801 = vadd.f32 %v2776, %v3673
    %v3802 = vadd.f32 %v2777, %v3674
    %v3803 = vadd.f32 %v2778, %v3675
    %v3804 = vadd.f32 %v2779, %v3676
    %v3805 = vadd.f32 %v2780, %v3677
    %v3806 = vadd.f32 %v2781, %v3678
    %v3807 = vadd.f32 %v2782, %v3679
    %v3808 = vadd.f32 %v2783, %v3680
    %v3809 = vadd.f32 %v2784, %v3681
    %v3810 = vadd.f32 %v2785, %v3682
    %v3811 = vadd.f32 %v2786, %v3683
    %v3812 = vadd.f32 %v2787, %v3684
    %v3813 = vadd.f32 %v2788, %v3685
    %v3814 = vadd.f32 %v2789, %v3686
    %v3815 = vadd.f32 %v2790, %v3687
    %v3816 = vadd.f32 %v2791, %v3688
    %v3817 = vadd.f32 %v2792, %v3689
    %v3818 = vadd.f32 %v2793, %v3690
    %v3819 = vadd.f32 %v2794, %v3691
    %v3820 = vadd.f32 %v2795, %v3692
    %v3821 = vadd.f32 %v2796, %v3693
    %v3822 = vadd.f32 %v2797, %v3694
    %v3823 = vadd.f32 %v2798, %v3695
    %v3824 = vadd.f32 %v2799, %v3696
    %v3825 = vadd.f32 %v2800, %v3697
    %v3826 = vadd.f32 %v2801, %v3698
    %v3827 = vadd.f32 %v2802, %v3699
    %v3828 = vadd.f32 %v2803, %v3700
    %v3829 = vadd.f32 %v2804, %v3701
    %v3830 = vadd.f32 %v2805, %v3702
    %v3831 = vadd.f32 %v2806, %v3703
    %v3832 = vadd.f32 %v2807, %v3704
    %v3833 = vadd.f32 %v2808, %v3705
    %v3834 = vadd.f32 %v2809, %v3706
    %v3835 = vadd.f32 %v2810, %v3707
    %v3836 = vadd.f32 %v2811, %v3708
    %v3837 = vadd.f32 %v2812, %v3709
    %v3838 = vadd.f32 %v2813, %v3710
    %v3839 = vadd.f32 %v2814, %v3711
    %v3840 = vadd.f32 %v2815, %v3712
    %v3841 = vadd.f32 %v2816, %v3713
    %v3842 = vadd.f32 %v2817, %v3714
    %v3843 = vadd.f32 %v2818, %v3715
    %v3844 = vadd.f32 %v2819, %v3716
    %v3845 = vadd.f32 %v2820, %v3717
    %v3846 = vadd.f32 %v2821, %v3718
    %v3847 = vadd.f32 %v2822, %v3719
    %v3848 = vadd.f32 %v2823, %v3720
    %v3849 = vadd.f32 %v2824, %v3721
    %v3850 = vadd.f32 %v2825, %v3722
    %v3851 = vadd.f32 %v2826, %v3723
    %v3852 = vadd.f32 %v2827, %v3724
    %v3853 = vadd.f32 %v2828, %v3725
    %v3854 = vadd.f32 %v2829, %v3726
    %v3855 = vadd.f32 %v2830, %v3727
    %v3856 = vadd.f32 %v2831, %v3728
    %v3857 = vadd.f32 %v2832, %v3729
    %v3858 = vadd.f32 %v2833, %v3730
    %v3859 = vadd.f32 %v2834, %v3731
    %v3860 = vadd.f32 %v2835, %v3732
    %v3861 = vadd.f32 %v2836, %v3733
    %v3862 = vadd.f32 %v2837, %v3734
    %v3863 = vadd.f32 %v2838, %v3735
    %v3864 = vadd.f32 %v2839, %v3736
    %v3865 = vadd.f32 %v2840, %v3737
    %v3866 = vadd.f32 %v2841, %v3738
    %v3867 = vadd.f32 %v2842, %v3739
    %v3868 = vadd.f32 %v2843, %v3740
    %v3869 = vadd.f32 %v2844, %v3741
    %v3870 = vadd.f32 %v2845, %v3742
    %v3871 = vadd.f32 %v2846, %v3743
    %v3872 = vadd.f32 %v2847, %v3744
    %v3873 = vadd.f32 %v2848, %v3745
    %v3874 = vadd.f32 %v2849, %v3746
    %v3875 = vadd.f32 %v2850, %v3747
    %v3876 = vadd.f32 %v2851, %v3748
    %v3877 = vadd.f32 %v2852, %v3749
    %v3878 = vadd.f32 %v2853, %v3750
    %v3879 = vadd.f32 %v2854, %v3751
    %v3880 = vadd.f32 %v2855, %v3752
    %v3881 = vadd.f32 %v2856, %v3753
    %v3882 = vadd.f32 %v2857, %v3754
    %v3883 = vadd.f32 %v2858, %v3755
    %v3884 = vadd.f32 %v2859, %v3756
    %v3885 = vadd.f32 %v2860, %v3757
    %v3886 = vadd.f32 %v2861, %v3758
    %v3887 = vadd.f32 %v2862, %v3759
    %v3888 = vadd.f32 %v2863, %v3760
    %v3889 = vadd.f32 %v2864, %v3761
    %v3890 = vadd.f32 %v2865, %v3762
    %v3891 = vadd.f32 %v2866, %v3763
    %v3892 = vadd.f32 %v2867, %v3764
    %v3893 = vadd.f32 %v2868, %v3765
    %v3894 = vadd.f32 %v2869, %v3766
    %v3895 = vadd.f32 %v2870, %v3767
    %v3896 = vadd.f32 %v2871, %v3768
    %v3897 = vrcp.pop 0.75
    %v3898 = vmul.f32 %v1205, %v3897
    %v3899 = vmul.f32 %v1206, %v3897
    %v3900 = vmul.f32 %v1207, %v3897
    %v3901 = vmul.f32 %v1208, %v3897
    %v3902 = vmul.f32 %v1209, %v3897
    %v3903 = vmul.f32 %v1210, %v3897
    %v3904 = vmul.f32 %v1211, %v3897
    %v3905 = vmul.f32 %v1212, %v3897
    %v3906 = vmul.f32 %v1213, %v3897
    %v3907 = vmul.f32 %v1214, %v3897
    %v3908 = vmul.f32 %v1215, %v3897
    %v3909 = vmul.f32 %v1216, %v3897
    %v3910 = vmul.f32 %v1217, %v3897
    %v3911 = vmul.f32 %v1218, %v3897
    %v3912 = vmul.f32 %v1219, %v3897
    %v3913 = vmul.f32 %v1220, %v3897
    %v3914 = vmul.f32 %v1221, %v3897
    %v3915 = vmul.f32 %v1222, %v3897
    %v3916 = vmul.f32 %v1223, %v3897
    %v3917 = vmul.f32 %v1224, %v3897
    %v3918 = vmul.f32 %v1225, %v3897
    %v3919 = vmul.f32 %v1226, %v3897
    %v3920 = vmul.f32 %v1227, %v3897
    %v3921 = vmul.f32 %v1228, %v3897
    %v3922 = vmul.f32 %v1229, %v3897
    %v3923 = vmul.f32 %v1230, %v3897
    %v3924 = vmul.f32 %v1231, %v3897
    %v3925 = vmul.f32 %v1232, %v3897
    %v3926 = vmul.f32 %v1233, %v3897
    %v3927 = vmul.f32 %v1234, %v3897
    %v3928 = vmul.f32 %v1235, %v3897
    %v3929 = vmul.f32 %v1236, %v3897
    %v3930 = vmul.f32 %v1237, %v3897
    %v3931 = vmul.f32 %v1238, %v3897
    %v3932 = vmul.f32 %v1239, %v3897
    %v3933 = vmul.f32 %v1240, %v3897
    %v3934 = vmul.f32 %v1241, %v3897
    %v3935 = vmul.f32 %v1242, %v3897
    %v3936 = vmul.f32 %v1243, %v3897
    %v3937 = vmul.f32 %v1244, %v3897
    %v3938 = vmul.f32 %v1245, %v3897
    %v3939 = vmul.f32 %v1246, %v3897
    %v3940 = vmul.f32 %v1247, %v3897
    %v3941 = vmul.f32 %v1248, %v3897
    %v3942 = vmul.f32 %v1249, %v3897
    %v3943 = vmul.f32 %v1250, %v3897
    %v3944 = vmul.f32 %v1251, %v3897
    %v3945 = vmul.f32 %v1252, %v3897
    %v3946 = vmul.f32 %v1253, %v3897
    %v3947 = vmul.f32 %v1254, %v3897
    %v3948 = vmul.f32 %v1255, %v3897
    %v3949 = vmul.f32 %v1256, %v3897
    %v3950 = vmul.f32 %v1257, %v3897
    %v3951 = vmul.f32 %v1258, %v3897
    %v3952 = vmul.f32 %v1259, %v3897
    %v3953 = vmul.f32 %v1260, %v3897
    %v3954 = vmul.f32 %v1261, %v3897
    %v3955 = vmul.f32 %v1262, %v3897
    %v3956 = vmul.f32 %v1263, %v3897
    %v3957 = vmul.f32 %v1264, %v3897
    %v3958 = vmul.f32 %v1265, %v3897
    %v3959 = vmul.f32 %v1266, %v3897
    %v3960 = vmul.f32 %v1267, %v3897
    %v3961 = vmul.f32 %v1268, %v3897
    %v3962 = vmul.f32 %v1269, %v3897
    %v3963 = vmul.f32 %v1270, %v3897
    %v3964 = vmul.f32 %v1271, %v3897
    %v3965 = vmul.f32 %v1272, %v3897
    %v3966 = vmul.f32 %v1273, %v3897
    %v3967 = vmul.f32 %v1274, %v3897
    %v3968 = vmul.f32 %v1275, %v3897
    %v3969 = vmul.f32 %v1276, %v3897
    %v3970 = vmul.f32 %v1277, %v3897
    %v3971 = vmul.f32 %v1278, %v3897
    %v3972 = vmul.f32 %v1279, %v3897
    %v3973 = vmul.f32 %v1280, %v3897
    %v3974 = vmul.f32 %v1281, %v3897
    %v3975 = vmul.f32 %v1282, %v3897
    %v3976 = vmul.f32 %v1283, %v3897
    %v3977 = vmul.f32 %v1284, %v3897
    %v3978 = vmul.f32 %v1285, %v3897
    %v3979 = vmul.f32 %v1286, %v3897
    %v3980 = vmul.f32 %v1287, %v3897
    %v3981 = vmul.f32 %v1288, %v3897
    %v3982 = vmul.f32 %v1289, %v3897
    %v3983 = vmul.f32 %v1290, %v3897
    %v3984 = vmul.f32 %v1291, %v3897
    %v3985 = vmul.f32 %v1292, %v3897
    %v3986 = vmul.f32 %v1293, %v3897
    %v3987 = vmul.f32 %v1294, %v3897
    %v3988 = vmul.f32 %v1295, %v3897
    %v3989 = vmul.f32 %v1296, %v3897
    %v3990 = vmul.f32 %v1297, %v3897
    %v3991 = vmul.f32 %v1298, %v3897
    %v3992 = vmul.f32 %v1299, %v3897
    %v3993 = vmul.f32 %v1300, %v3897
    %v3994 = vmul.f32 %v1301, %v3897
    %v3995 = vmul.f32 %v1302, %v3897
    %v3996 = vmul.f32 %v1303, %v3897
    %v3997 = vmul.f32 %v1304, %v3897
    %v3998 = vmul.f32 %v1305, %v3897
    %v3999 = vmul.f32 %v1306, %v3897
    %v4000 = vmul.f32 %v1307, %v3897
    %v4001 = vmul.f32 %v1308, %v3897
    %v4002 = vmul.f32 %v1309, %v3897
    %v4003 = vmul.f32 %v1310, %v3897
    %v4004 = vmul.f32 %v1311, %v3897
    %v4005 = vmul.f32 %v1312, %v3897
    %v4006 = vmul.f32 %v1313, %v3897
    %v4007 = vmul.f32 %v1314, %v3897
    %v4008 = vmul.f32 %v1315, %v3897
    %v4009 = vmul.f32 %v1316, %v3897
    %v4010 = vmul.f32 %v1317, %v3897
    %v4011 = vmul.f32 %v1318, %v3897
    %v4012 = vmul.f32 %v1319, %v3897
    %v4013 = vmul.f32 %v1320, %v3897
    %v4014 = vmul.f32 %v1321, %v3897
    %v4015 = vmul.f32 %v1322, %v3897
    %v4016 = vmul.f32 %v1323, %v3897
    %v4017 = vmul.f32 %v1324, %v3897
    %v4018 = vmul.f32 %v1325, %v3897
    %v4019 = vmul.f32 %v1326, %v3897
    %v4020 = vmul.f32 %v1327, %v3897
    %v4021 = vmul.f32 %v1328, %v3897
    %v4022 = vmul.f32 %v1329, %v3897
    %v4023 = vmul.f32 %v1330, %v3897
    %v4024 = vmul.f32 %v1331, %v3897
    %v4025 = vmul.f32 %v1332, %v3897
    %v4026 = vmul.f32 %v3898, %v3769
    %v4027 = vmul.f32 %v3899, %v3770
    %v4028 = vmul.f32 %v3900, %v3771
    %v4029 = vmul.f32 %v3901, %v3772
    %v4030 = vmul.f32 %v3902, %v3773
    %v4031 = vmul.f32 %v3903, %v3774
    %v4032 = vmul.f32 %v3904, %v3775
    %v4033 = vmul.f32 %v3905, %v3776
    %v4034 = vmul.f32 %v3906, %v3777
    %v4035 = vmul.f32 %v3907, %v3778
    %v4036 = vmul.f32 %v3908, %v3779
    %v4037 = vmul.f32 %v3909, %v3780
    %v4038 = vmul.f32 %v3910, %v3781
    %v4039 = vmul.f32 %v3911, %v3782
    %v4040 = vmul.f32 %v3912, %v3783
    %v4041 = vmul.f32 %v3913, %v3784
    %v4042 = vmul.f32 %v3914, %v3785
    %v4043 = vmul.f32 %v3915, %v3786
    %v4044 = vmul.f32 %v3916, %v3787
    %v4045 = vmul.f32 %v3917, %v3788
    %v4046 = vmul.f32 %v3918, %v3789
    %v4047 = vmul.f32 %v3919, %v3790
    %v4048 = vmul.f32 %v3920, %v3791
    %v4049 = vmul.f32 %v3921, %v3792
    %v4050 = vmul.f32 %v3922, %v3793
    %v4051 = vmul.f32 %v3923, %v3794
    %v4052 = vmul.f32 %v3924, %v3795
    %v4053 = vmul.f32 %v3925, %v3796
    %v4054 = vmul.f32 %v3926, %v3797
    %v4055 = vmul.f32 %v3927, %v3798
    %v4056 = vmul.f32 %v3928, %v3799
    %v4057 = vmul.f32 %v3929, %v3800
    %v4058 = vmul.f32 %v3930, %v3801
    %v4059 = vmul.f32 %v3931, %v3802
    %v4060 = vmul.f32 %v3932, %v3803
    %v4061 = vmul.f32 %v3933, %v3804
    %v4062 = vmul.f32 %v3934, %v3805
    %v4063 = vmul.f32 %v3935, %v3806
    %v4064 = vmul.f32 %v3936, %v3807
    %v4065 = vmul.f32 %v3937, %v3808
    %v4066 = vmul.f32 %v3938, %v3809
    %v4067 = vmul.f32 %v3939, %v3810
    %v4068 = vmul.f32 %v3940, %v3811
    %v4069 = vmul.f32 %v3941, %v3812
    %v4070 = vmul.f32 %v3942, %v3813
    %v4071 = vmul.f32 %v3943, %v3814
    %v4072 = vmul.f32 %v3944, %v3815
    %v4073 = vmul.f32 %v3945, %v3816
    %v4074 = vmul.f32 %v3946, %v3817
    %v4075 = vmul.f32 %v3947, %v3818
    %v4076 = vmul.f32 %v3948, %v3819
    %v4077 = vmul.f32 %v3949, %v3820
    %v4078 = vmul.f32 %v3950, %v3821
    %v4079 = vmul.f32 %v3951, %v3822
    %v4080 = vmul.f32 %v3952, %v3823
    %v4081 = vmul.f32 %v3953, %v3824
    %v4082 = vmul.f32 %v3954, %v3825
    %v4083 = vmul.f32 %v3955, %v3826
    %v4084 = vmul.f32 %v3956, %v3827
    %v4085 = vmul.f32 %v3957, %v3828
    %v4086 = vmul.f32 %v3958, %v3829
    %v4087 = vmul.f32 %v3959, %v3830
    %v4088 = vmul.f32 %v3960, %v3831
    %v4089 = vmul.f32 %v3961, %v3832
    %v4090 = vmul.f32 %v3962, %v3833
    %v4091 = vmul.f32 %v3963, %v3834
    %v4092 = vmul.f32 %v3964, %v3835
    %v4093 = vmul.f32 %v3965, %v3836
    %v4094 = vmul.f32 %v3966, %v3837
    %v4095 = vmul.f32 %v3967, %v3838
    %v4096 = vmul.f32 %v3968, %v3839
    %v4097 = vmul.f32 %v3969, %v3840
    %v4098 = vmul.f32 %v3970, %v3841
    %v4099 = vmul.f32 %v3971, %v3842
    %v4100 = vmul.f32 %v3972, %v3843
    %v4101 = vmul.f32 %v3973, %v3844
    %v4102 = vmul.f32 %v3974, %v3845
    %v4103 = vmul.f32 %v3975, %v3846
    %v4104 = vmul.f32 %v3976, %v3847
    %v4105 = vmul.f32 %v3977, %v3848
    %v4106 = vmul.f32 %v3978, %v3849
    %v4107 = vmul.f32 %v3979, %v3850
    %v4108 = vmul.f32 %v3980, %v3851
    %v4109 = vmul.f32 %v3981, %v3852
    %v4110 = vmul.f32 %v3982, %v3853
    %v4111 = vmul.f32 %v3983, %v3854
    %v4112 = vmul.f32 %v3984, %v3855
    %v4113 = vmul.f32 %v3985, %v3856
    %v4114 = vmul.f32 %v3986, %v3857
    %v4115 = vmul.f32 %v3987, %v3858
    %v4116 = vmul.f32 %v3988, %v3859
    %v4117 = vmul.f32 %v3989, %v3860
    %v4118 = vmul.f32 %v3990, %v3861
    %v4119 = vmul.f32 %v3991, %v3862
    %v4120 = vmul.f32 %v3992, %v3863
    %v4121 = vmul.f32 %v3993, %v3864
    %v4122 = vmul.f32 %v3994, %v3865
    %v4123 = vmul.f32 %v3995, %v3866
    %v4124 = vmul.f32 %v3996, %v3867
    %v4125 = vmul.f32 %v3997, %v3868
    %v4126 = vmul.f32 %v3998, %v3869
    %v4127 = vmul.f32 %v3999, %v3870
    %v4128 = vmul.f32 %v4000, %v3871
    %v4129 = vmul.f32 %v4001, %v3872
    %v4130 = vmul.f32 %v4002, %v3873
    %v4131 = vmul.f32 %v4003, %v3874
    %v4132 = vmul.f32 %v4004, %v3875
    %v4133 = vmul.f32 %v4005, %v3876
    %v4134 = vmul.f32 %v4006, %v3877
    %v4135 = vmul.f32 %v4007, %v3878
    %v4136 = vmul.f32 %v4008, %v3879
    %v4137 = vmul.f32 %v4009, %v3880
    %v4138 = vmul.f32 %v4010, %v3881
    %v4139 = vmul.f32 %v4011, %v3882
    %v4140 = vmul.f32 %v4012, %v3883
    %v4141 = vmul.f32 %v4013, %v3884
    %v4142 = vmul.f32 %v4014, %v3885
    %v4143 = vmul.f32 %v4015, %v3886
    %v4144 = vmul.f32 %v4016, %v3887
    %v4145 = vmul.f32 %v4017, %v3888
    %v4146 = vmul.f32 %v4018, %v3889
    %v4147 = vmul.f32 %v4019, %v3890
    %v4148 = vmul.f32 %v4020, %v3891
    %v4149 = vmul.f32 %v4021, %v3892
    %v4150 = vmul.f32 %v4022, %v3893
    %v4151 = vmul.f32 %v4023, %v3894
    %v4152 = vmul.f32 %v4024, %v3895
    %v4153 = vmul.f32 %v4025, %v3896
    %v4154 = vadd.f32 %v563, 1.0
    %v4155 = vsub.f32 %v4154, %v29
    %v4156 = vsub.f32 %v4154, %v33
    %v4157 = vsub.f32 %v4154, %v37
    %v4158 = vsub.f32 %v4154, %v41
    %v4159 = vsub.f32 %v4154, %v45
    %v4160 = vsub.f32 %v4154, %v49
    %v4161 = vsub.f32 %v4154, %v53
    %v4162 = vsub.f32 %v4154, %v57
    %v4163 = vsub.f32 %v4154, %v61
    %v4164 = vsub.f32 %v4154, %v65
    %v4165 = vsub.f32 %v4154, %v69
    %v4166 = vsub.f32 %v4154, %v73
    %v4167 = vsub.f32 %v4154, %v77
    %v4168 = vsub.f32 %v4154, %v81
    %v4169 = vsub.f32 %v4154, %v85
    %v4170 = vsub.f32 %v4154, %v89
    %v4171 = vsub.f32 %v4154, %v96
    %v4172 = vsub.f32 %v4154, %v100
    %v4173 = vsub.f32 %v4154, %v104
    %v4174 = vsub.f32 %v4154, %v108
    %v4175 = vsub.f32 %v4154, %v112
    %v4176 = vsub.f32 %v4154, %v116
    %v4177 = vsub.f32 %v4154, %v120
    %v4178 = vsub.f32 %v4154, %v124
    %v4179 = vsub.f32 %v4154, %v128
    %v4180 = vsub.f32 %v4154, %v132
    %v4181 = vsub.f32 %v4154, %v136
    %v4182 = vsub.f32 %v4154, %v140
    %v4183 = vsub.f32 %v4154, %v144
    %v4184 = vsub.f32 %v4154, %v148
    %v4185 = vsub.f32 %v4154, %v152
    %v4186 = vsub.f32 %v4154, %v156
    %v4187 = vsub.f32 %v4154, %v163
    %v4188 = vsub.f32 %v4154, %v167
    %v4189 = vsub.f32 %v4154, %v171
    %v4190 = vsub.f32 %v4154, %v175
    %v4191 = vsub.f32 %v4154, %v179
    %v4192 = vsub.f32 %v4154, %v183
    %v4193 = vsub.f32 %v4154, %v187
    %v4194 = vsub.f32 %v4154, %v191
    %v4195 = vsub.f32 %v4154, %v195
    %v4196 = vsub.f32 %v4154, %v199
    %v4197 = vsub.f32 %v4154, %v203
    %v4198 = vsub.f32 %v4154, %v207
    %v4199 = vsub.f32 %v4154, %v211
    %v4200 = vsub.f32 %v4154, %v215
    %v4201 = vsub.f32 %v4154, %v219
    %v4202 = vsub.f32 %v4154, %v223
    %v4203 = vsub.f32 %v4154, %v230
    %v4204 = vsub.f32 %v4154, %v234
    %v4205 = vsub.f32 %v4154, %v238
    %v4206 = vsub.f32 %v4154, %v242
    %v4207 = vsub.f32 %v4154, %v246
    %v4208 = vsub.f32 %v4154, %v250
    %v4209 = vsub.f32 %v4154, %v254
    %v4210 = vsub.f32 %v4154, %v258
    %v4211 = vsub.f32 %v4154, %v262
    %v4212 = vsub.f32 %v4154, %v266
    %v4213 = vsub.f32 %v4154, %v270
    %v4214 = vsub.f32 %v4154, %v274
    %v4215 = vsub.f32 %v4154, %v278
    %v4216 = vsub.f32 %v4154, %v282
    %v4217 = vsub.f32 %v4154, %v286
    %v4218 = vsub.f32 %v4154, %v290
    %v4219 = vsub.f32 %v4154, %v297
    %v4220 = vsub.f32 %v4154, %v301
    %v4221 = vsub.f32 %v4154, %v305
    %v4222 = vsub.f32 %v4154, %v309
    %v4223 = vsub.f32 %v4154, %v313
    %v4224 = vsub.f32 %v4154, %v317
    %v4225 = vsub.f32 %v4154, %v321
    %v4226 = vsub.f32 %v4154, %v325
    %v4227 = vsub.f32 %v4154, %v329
    %v4228 = vsub.f32 %v4154, %v333
    %v4229 = vsub.f32 %v4154, %v337
    %v4230 = vsub.f32 %v4154, %v341
    %v4231 = vsub.f32 %v4154, %v345
    %v4232 = vsub.f32 %v4154, %v349
    %v4233 = vsub.f32 %v4154, %v353
    %v4234 = vsub.f32 %v4154, %v357
    %v4235 = vsub.f32 %v4154, %v364
    %v4236 = vsub.f32 %v4154, %v368
    %v4237 = vsub.f32 %v4154, %v372
    %v4238 = vsub.f32 %v4154, %v376
    %v4239 = vsub.f32 %v4154, %v380
    %v4240 = vsub.f32 %v4154, %v384
    %v4241 = vsub.f32 %v4154, %v388
    %v4242 = vsub.f32 %v4154, %v392
    %v4243 = vsub.f32 %v4154, %v396
    %v4244 = vsub.f32 %v4154, %v400
    %v4245 = vsub.f32 %v4154, %v404
    %v4246 = vsub.f32 %v4154, %v408
    %v4247 = vsub.f32 %v4154, %v412
    %v4248 = vsub.f32 %v4154, %v416
    %v4249 = vsub.f32 %v4154, %v420
    %v4250 = vsub.f32 %v4154, %v424
    %v4251 = vsub.f32 %v4154, %v431
    %v4252 = vsub.f32 %v4154, %v435
    %v4253 = vsub.f32 %v4154, %v439
    %v4254 = vsub.f32 %v4154, %v443
    %v4255 = vsub.f32 %v4154, %v447
    %v4256 = vsub.f32 %v4154, %v451
    %v4257 = vsub.f32 %v4154, %v455
    %v4258 = vsub.f32 %v4154, %v459
    %v4259 = vsub.f32 %v4154, %v463
    %v4260 = vsub.f32 %v4154, %v467
    %v4261 = vsub.f32 %v4154, %v471
    %v4262 = vsub.f32 %v4154, %v475
    %v4263 = vsub.f32 %v4154, %v479
    %v4264 = vsub.f32 %v4154, %v483
    %v4265 = vsub.f32 %v4154, %v487
    %v4266 = vsub.f32 %v4154, %v491
    %v4267 = vsub.f32 %v4154, %v498
    %v4268 = vsub.f32 %v4154, %v502
    %v4269 = vsub.f32 %v4154, %v506
    %v4270 = vsub.f32 %v4154, %v510
    %v4271 = vsub.f32 %v4154, %v514
    %v4272 = vsub.f32 %v4154, %v518
    %v4273 = vsub.f32 %v4154, %v522
    %v4274 = vsub.f32 %v4154, %v526
    %v4275 = vsub.f32 %v4154, %v530
    %v4276 = vsub.f32 %v4154, %v534
    %v4277 = vsub.f32 %v4154, %v538
    %v4278 = vsub.f32 %v4154, %v542
    %v4279 = vsub.f32 %v4154, %v546
    %v4280 = vsub.f32 %v4154, %v550
    %v4281 = vsub.f32 %v4154, %v554
    %v4282 = vsub.f32 %v4154, %v558
    %v4283 = vmul.f32 %v4155, %v3897
    %v4284 = vmul.f32 %v4156, %v3897
    %v4285 = vmul.f32 %v4157, %v3897
    %v4286 = vmul.f32 %v4158, %v3897
    %v4287 = vmul.f32 %v4159, %v3897
    %v4288 = vmul.f32 %v4160, %v3897
    %v4289 = vmul.f32 %v4161, %v3897
    %v4290 = vmul.f32 %v4162, %v3897
    %v4291 = vmul.f32 %v4163, %v3897
    %v4292 = vmul.f32 %v4164, %v3897
    %v4293 = vmul.f32 %v4165, %v3897
    %v4294 = vmul.f32 %v4166, %v3897
    %v4295 = vmul.f32 %v4167, %v3897
    %v4296 = vmul.f32 %v4168, %v3897
    %v4297 = vmul.f32 %v4169, %v3897
    %v4298 = vmul.f32 %v4170, %v3897
    %v4299 = vmul.f32 %v4171, %v3897
    %v4300 = vmul.f32 %v4172, %v3897
    %v4301 = vmul.f32 %v4173, %v3897
    %v4302 = vmul.f32 %v4174, %v3897
    %v4303 = vmul.f32 %v4175, %v3897
    %v4304 = vmul.f32 %v4176, %v3897
    %v4305 = vmul.f32 %v4177, %v3897
    %v4306 = vmul.f32 %v4178, %v3897
    %v4307 = vmul.f32 %v4179, %v3897
    %v4308 = vmul.f32 %v4180, %v3897
    %v4309 = vmul.f32 %v4181, %v3897
    %v4310 = vmul.f32 %v4182, %v3897
    %v4311 = vmul.f32 %v4183, %v3897
    %v4312 = vmul.f32 %v4184, %v3897
    %v4313 = vmul.f32 %v4185, %v3897
    %v4314 = vmul.f32 %v4186, %v3897
    %v4315 = vmul.f32 %v4187, %v3897
    %v4316 = vmul.f32 %v4188, %v3897
    %v4317 = vmul.f32 %v4189, %v3897
    %v4318 = vmul.f32 %v4190, %v3897
    %v4319 = vmul.f32 %v4191, %v3897
    %v4320 = vmul.f32 %v4192, %v3897
    %v4321 = vmul.f32 %v4193, %v3897
    %v4322 = vmul.f32 %v4194, %v3897
    %v4323 = vmul.f32 %v4195, %v3897
    %v4324 = vmul.f32 %v4196, %v3897
    %v4325 = vmul.f32 %v4197, %v3897
    %v4326 = vmul.f32 %v4198, %v3897
    %v4327 = vmul.f32 %v4199, %v3897
    %v4328 = vmul.f32 %v4200, %v3897
    %v4329 = vmul.f32 %v4201, %v3897
    %v4330 = vmul.f32 %v4202, %v3897
    %v4331 = vmul.f32 %v4203, %v3897
    %v4332 = vmul.f32 %v4204, %v3897
    %v4333 = vmul.f32 %v4205, %v3897
    %v4334 = vmul.f32 %v4206, %v3897
    %v4335 = vmul.f32 %v4207, %v3897
    %v4336 = vmul.f32 %v4208, %v3897
    %v4337 = vmul.f32 %v4209, %v3897
    %v4338 = vmul.f32 %v4210, %v3897
    %v4339 = vmul.f32 %v4211, %v3897
    %v4340 = vmul.f32 %v4212, %v3897
    %v4341 = vmul.f32 %v4213, %v3897
    %v4342 = vmul.f32 %v4214, %v3897
    %v4343 = vmul.f32 %v4215, %v3897
    %v4344 = vmul.f32 %v4216, %v3897
    %v4345 = vmul.f32 %v4217, %v3897
    %v4346 = vmul.f32 %v4218, %v3897
    %v4347 = vmul.f32 %v4219, %v3897
    %v4348 = vmul.f32 %v4220, %v3897
    %v4349 = vmul.f32 %v4221, %v3897
    %v4350 = vmul.f32 %v4222, %v3897
    %v4351 = vmul.f32 %v4223, %v3897
    %v4352 = vmul.f32 %v4224, %v3897
    %v4353 = vmul.f32 %v4225, %v3897
    %v4354 = vmul.f32 %v4226, %v3897
    %v4355 = vmul.f32 %v4227, %v3897
    %v4356 = vmul.f32 %v4228, %v3897
    %v4357 = vmul.f32 %v4229, %v3897
    %v4358 = vmul.f32 %v4230, %v3897
    %v4359 = vmul.f32 %v4231, %v3897
    %v4360 = vmul.f32 %v4232, %v3897
    %v4361 = vmul.f32 %v4233, %v3897
    %v4362 = vmul.f32 %v4234, %v3897
    %v4363 = vmul.f32 %v4235, %v3897
    %v4364 = vmul.f32 %v4236, %v3897
    %v4365 = vmul.f32 %v4237, %v3897
    %v4366 = vmul.f32 %v4238, %v3897
    %v4367 = vmul.f32 %v4239, %v3897
    %v4368 = vmul.f32 %v4240, %v3897
    %v4369 = vmul.f32 %v4241, %v3897
    %v4370 = vmul.f32 %v4242, %v3897
    %v4371 = vmul.f32 %v4243, %v3897
    %v4372 = vmul.f32 %v4244, %v3897
    %v4373 = vmul.f32 %v4245, %v3897
    %v4374 = vmul.f32 %v4246, %v3897
    %v4375 = vmul.f32 %v4247, %v3897
    %v4376 = vmul.f32 %v4248, %v3897
    %v4377 = vmul.f32 %v4249, %v3897
    %v4378 = vmul.f32 %v4250, %v3897
    %v4379 = vmul.f32 %v4251, %v3897
    %v4380 = vmul.f32 %v4252, %v3897
    %v4381 = vmul.f32 %v4253, %v3897
    %v4382 = vmul.f32 %v4254, %v3897
    %v4383 = vmul.f32 %v4255, %v3897
    %v4384 = vmul.f32 %v4256, %v3897
    %v4385 = vmul.f32 %v4257, %v3897
    %v4386 = vmul.f32 %v4258, %v3897
    %v4387 = vmul.f32 %v4259, %v3897
    %v4388 = vmul.f32 %v4260, %v3897
    %v4389 = vmul.f32 %v4261, %v3897
    %v4390 = vmul.f32 %v4262, %v3897
    %v4391 = vmul.f32 %v4263, %v3897
    %v4392 = vmul.f32 %v4264, %v3897
    %v4393 = vmul.f32 %v4265, %v3897
    %v4394 = vmul.f32 %v4266, %v3897
    %v4395 = vmul.f32 %v4267, %v3897
    %v4396 = vmul.f32 %v4268, %v3897
    %v4397 = vmul.f32 %v4269, %v3897
    %v4398 = vmul.f32 %v4270, %v3897
    %v4399 = vmul.f32 %v4271, %v3897
    %v4400 = vmul.f32 %v4272, %v3897
    %v4401 = vmul.f32 %v4273, %v3897
    %v4402 = vmul.f32 %v4274, %v3897
    %v4403 = vmul.f32 %v4275, %v3897
    %v4404 = vmul.f32 %v4276, %v3897
    %v4405 = vmul.f32 %v4277, %v3897
    %v4406 = vmul.f32 %v4278, %v3897
    %v4407 = vmul.f32 %v4279, %v3897
    %v4408 = vmul.f32 %v4280, %v3897
    %v4409 = vmul.f32 %v4281, %v3897
    %v4410 = vmul.f32 %v4282, %v3897
    %4539 = vrot.lane.b32.xlu0 %v3769, 127
    %v4540 = vpop.permute.xlu0 %4539
    %4541 = vrot.lane.b32.xlu0 %v3770, 127
    %v4542 = vpop.permute.xlu0 %4541
    %4543 = vrot.lane.b32.xlu0 %v3771, 127
    %v4544 = vpop.permute.xlu0 %4543
    %4545 = vrot.lane.b32.xlu0 %v3772, 127
    %v4546 = vpop.permute.xlu0 %4545
    %4547 = vrot.lane.b32.xlu0 %v3773, 127
    %v4548 = vpop.permute.xlu0 %4547
    %4549 = vrot.lane.b32.xlu0 %v3774, 127
    %v4550 = vpop.permute.xlu0 %4549
    %4551 = vrot.lane.b32.xlu0 %v3775, 127
    %v4552 = vpop.permute.xlu0 %4551
    %4553 = vrot.lane.b32.xlu0 %v3776, 127
    %v4554 = vpop.permute.xlu0 %4553
    %4555 = vrot.lane.b32.xlu0 %v3777, 127
    %v4556 = vpop.permute.xlu0 %4555
    %4557 = vrot.lane.b32.xlu0 %v3778, 127
    %v4558 = vpop.permute.xlu0 %4557
    %4559 = vrot.lane.b32.xlu0 %v3779, 127
    %v4560 = vpop.permute.xlu0 %4559
    %4561 = vrot.lane.b32.xlu0 %v3780, 127
    %v4562 = vpop.permute.xlu0 %4561
    %4563 = vrot.lane.b32.xlu0 %v3781, 127
    %v4564 = vpop.permute.xlu0 %4563
    %4565 = vrot.lane.b32.xlu0 %v3782, 127
    %v4566 = vpop.permute.xlu0 %4565
    %4567 = vrot.lane.b32.xlu0 %v3783, 127
    %v4568 = vpop.permute.xlu0 %4567
    %4569 = vrot.lane.b32.xlu0 %v3784, 127
    %v4570 = vpop.permute.xlu0 %4569
    %4571 = vrot.lane.b32.xlu0 %v3785, 127
    %v4572 = vpop.permute.xlu0 %4571
    %4573 = vrot.lane.b32.xlu0 %v3786, 127
    %v4574 = vpop.permute.xlu0 %4573
    %4575 = vrot.lane.b32.xlu0 %v3787, 127
    %v4576 = vpop.permute.xlu0 %4575
    %4577 = vrot.lane.b32.xlu0 %v3788, 127
    %v4578 = vpop.permute.xlu0 %4577
    %4579 = vrot.lane.b32.xlu0 %v3789, 127
    %v4580 = vpop.permute.xlu0 %4579
    %4581 = vrot.lane.b32.xlu0 %v3790, 127
    %v4582 = vpop.permute.xlu0 %4581
    %4583 = vrot.lane.b32.xlu0 %v3791, 127
    %v4584 = vpop.permute.xlu0 %4583
    %4585 = vrot.lane.b32.xlu0 %v3792, 127
    %v4586 = vpop.permute.xlu0 %4585
    %4587 = vrot.lane.b32.xlu0 %v3793, 127
    %v4588 = vpop.permute.xlu0 %4587
    %4589 = vrot.lane.b32.xlu0 %v3794, 127
    %v4590 = vpop.permute.xlu0 %4589
    %4591 = vrot.lane.b32.xlu0 %v3795, 127
    %v4592 = vpop.permute.xlu0 %4591
    %4593 = vrot.lane.b32.xlu0 %v3796, 127
    %v4594 = vpop.permute.xlu0 %4593
    %4595 = vrot.lane.b32.xlu0 %v3797, 127
    %v4596 = vpop.permute.xlu0 %4595
    %4597 = vrot.lane.b32.xlu0 %v3798, 127
    %v4598 = vpop.permute.xlu0 %4597
    %4599 = vrot.lane.b32.xlu0 %v3799, 127
    %v4600 = vpop.permute.xlu0 %4599
    %4601 = vrot.lane.b32.xlu0 %v3800, 127
    %v4602 = vpop.permute.xlu0 %4601
    %4603 = vrot.lane.b32.xlu0 %v3801, 127
    %v4604 = vpop.permute.xlu0 %4603
    %4605 = vrot.lane.b32.xlu0 %v3802, 127
    %v4606 = vpop.permute.xlu0 %4605
    %4607 = vrot.lane.b32.xlu0 %v3803, 127
    %v4608 = vpop.permute.xlu0 %4607
    %4609 = vrot.lane.b32.xlu0 %v3804, 127
    %v4610 = vpop.permute.xlu0 %4609
    %4611 = vrot.lane.b32.xlu0 %v3805, 127
    %v4612 = vpop.permute.xlu0 %4611
    %4613 = vrot.lane.b32.xlu0 %v3806, 127
    %v4614 = vpop.permute.xlu0 %4613
    %4615 = vrot.lane.b32.xlu0 %v3807, 127
    %v4616 = vpop.permute.xlu0 %4615
    %4617 = vrot.lane.b32.xlu0 %v3808, 127
    %v4618 = vpop.permute.xlu0 %4617
    %4619 = vrot.lane.b32.xlu0 %v3809, 127
    %v4620 = vpop.permute.xlu0 %4619
    %4621 = vrot.lane.b32.xlu0 %v3810, 127
    %v4622 = vpop.permute.xlu0 %4621
    %4623 = vrot.lane.b32.xlu0 %v3811, 127
    %v4624 = vpop.permute.xlu0 %4623
    %4625 = vrot.lane.b32.xlu0 %v3812, 127
    %v4626 = vpop.permute.xlu0 %4625
    %4627 = vrot.lane.b32.xlu0 %v3813, 127
    %v4628 = vpop.permute.xlu0 %4627
    %4629 = vrot.lane.b32.xlu0 %v3814, 127
    %v4630 = vpop.permute.xlu0 %4629
    %4631 = vrot.lane.b32.xlu0 %v3815, 127
    %v4632 = vpop.permute.xlu0 %4631
    %4633 = vrot.lane.b32.xlu0 %v3816, 127
    %v4634 = vpop.permute.xlu0 %4633
    %4635 = vrot.lane.b32.xlu0 %v3817, 127
    %v4636 = vpop.permute.xlu0 %4635
    %4637 = vrot.lane.b32.xlu0 %v3818, 127
    %v4638 = vpop.permute.xlu0 %4637
    %4639 = vrot.lane.b32.xlu0 %v3819, 127
    %v4640 = vpop.permute.xlu0 %4639
    %4641 = vrot.lane.b32.xlu0 %v3820, 127
    %v4642 = vpop.permute.xlu0 %4641
    %4643 = vrot.lane.b32.xlu0 %v3821, 127
    %v4644 = vpop.permute.xlu0 %4643
    %4645 = vrot.lane.b32.xlu0 %v3822, 127
    %v4646 = vpop.permute.xlu0 %4645
    %4647 = vrot.lane.b32.xlu0 %v3823, 127
    %v4648 = vpop.permute.xlu0 %4647
    %4649 = vrot.lane.b32.xlu0 %v3824, 127
    %v4650 = vpop.permute.xlu0 %4649
    %4651 = vrot.lane.b32.xlu0 %v3825, 127
    %v4652 = vpop.permute.xlu0 %4651
    %4653 = vrot.lane.b32.xlu0 %v3826, 127
    %v4654 = vpop.permute.xlu0 %4653
    %4655 = vrot.lane.b32.xlu0 %v3827, 127
    %v4656 = vpop.permute.xlu0 %4655
    %4657 = vrot.lane.b32.xlu0 %v3828, 127
    %v4658 = vpop.permute.xlu0 %4657
    %4659 = vrot.lane.b32.xlu0 %v3829, 127
    %v4660 = vpop.permute.xlu0 %4659
    %4661 = vrot.lane.b32.xlu0 %v3830, 127
    %v4662 = vpop.permute.xlu0 %4661
    %4663 = vrot.lane.b32.xlu0 %v3831, 127
    %v4664 = vpop.permute.xlu0 %4663
    %4665 = vrot.lane.b32.xlu0 %v3832, 127
    %v4666 = vpop.permute.xlu0 %4665
    %4667 = vrot.lane.b32.xlu0 %v3833, 127
    %v4668 = vpop.permute.xlu0 %4667
    %4669 = vrot.lane.b32.xlu0 %v3834, 127
    %v4670 = vpop.permute.xlu0 %4669
    %4671 = vrot.lane.b32.xlu0 %v3835, 127
    %v4672 = vpop.permute.xlu0 %4671
    %4673 = vrot.lane.b32.xlu0 %v3836, 127
    %v4674 = vpop.permute.xlu0 %4673
    %4675 = vrot.lane.b32.xlu0 %v3837, 127
    %v4676 = vpop.permute.xlu0 %4675
    %4677 = vrot.lane.b32.xlu0 %v3838, 127
    %v4678 = vpop.permute.xlu0 %4677
    %4679 = vrot.lane.b32.xlu0 %v3839, 127
    %v4680 = vpop.permute.xlu0 %4679
    %4681 = vrot.lane.b32.xlu0 %v3840, 127
    %v4682 = vpop.permute.xlu0 %4681
    %4683 = vrot.lane.b32.xlu0 %v3841, 127
    %v4684 = vpop.permute.xlu0 %4683
    %4685 = vrot.lane.b32.xlu0 %v3842, 127
    %v4686 = vpop.permute.xlu0 %4685
    %4687 = vrot.lane.b32.xlu0 %v3843, 127
    %v4688 = vpop.permute.xlu0 %4687
    %4689 = vrot.lane.b32.xlu0 %v3844, 127
    %v4690 = vpop.permute.xlu0 %4689
    %4691 = vrot.lane.b32.xlu0 %v3845, 127
    %v4692 = vpop.permute.xlu0 %4691
    %4693 = vrot.lane.b32.xlu0 %v3846, 127
    %v4694 = vpop.permute.xlu0 %4693
    %4695 = vrot.lane.b32.xlu0 %v3847, 127
    %v4696 = vpop.permute.xlu0 %4695
    %4697 = vrot.lane.b32.xlu0 %v3848, 127
    %v4698 = vpop.permute.xlu0 %4697
    %4699 = vrot.lane.b32.xlu0 %v3849, 127
    %v4700 = vpop.permute.xlu0 %4699
    %4701 = vrot.lane.b32.xlu0 %v3850, 127
    %v4702 = vpop.permute.xlu0 %4701
    %4703 = vrot.lane.b32.xlu0 %v3851, 127
    %v4704 = vpop.permute.xlu0 %4703
    %4705 = vrot.lane.b32.xlu0 %v3852, 127
    %v4706 = vpop.permute.xlu0 %4705
    %4707 = vrot.lane.b32.xlu0 %v3853, 127
    %v4708 = vpop.permute.xlu0 %4707
    %4709 = vrot.lane.b32.xlu0 %v3854, 127
    %v4710 = vpop.permute.xlu0 %4709
    %4711 = vrot.lane.b32.xlu0 %v3855, 127
    %v4712 = vpop.permute.xlu0 %4711
    %4713 = vrot.lane.b32.xlu0 %v3856, 127
    %v4714 = vpop.permute.xlu0 %4713
    %4715 = vrot.lane.b32.xlu0 %v3857, 127
    %v4716 = vpop.permute.xlu0 %4715
    %4717 = vrot.lane.b32.xlu0 %v3858, 127
    %v4718 = vpop.permute.xlu0 %4717
    %4719 = vrot.lane.b32.xlu0 %v3859, 127
    %v4720 = vpop.permute.xlu0 %4719
    %4721 = vrot.lane.b32.xlu0 %v3860, 127
    %v4722 = vpop.permute.xlu0 %4721
    %4723 = vrot.lane.b32.xlu0 %v3861, 127
    %v4724 = vpop.permute.xlu0 %4723
    %4725 = vrot.lane.b32.xlu0 %v3862, 127
    %v4726 = vpop.permute.xlu0 %4725
    %4727 = vrot.lane.b32.xlu0 %v3863, 127
    %v4728 = vpop.permute.xlu0 %4727
    %4729 = vrot.lane.b32.xlu0 %v3864, 127
    %v4730 = vpop.permute.xlu0 %4729
    %4731 = vrot.lane.b32.xlu0 %v3865, 127
    %v4732 = vpop.permute.xlu0 %4731
    %4733 = vrot.lane.b32.xlu0 %v3866, 127
    %v4734 = vpop.permute.xlu0 %4733
    %4735 = vrot.lane.b32.xlu0 %v3867, 127
    %v4736 = vpop.permute.xlu0 %4735
    %4737 = vrot.lane.b32.xlu0 %v3868, 127
    %v4738 = vpop.permute.xlu0 %4737
    %4739 = vrot.lane.b32.xlu0 %v3869, 127
    %v4740 = vpop.permute.xlu0 %4739
    %4741 = vrot.lane.b32.xlu0 %v3870, 127
    %v4742 = vpop.permute.xlu0 %4741
    %4743 = vrot.lane.b32.xlu0 %v3871, 127
    %v4744 = vpop.permute.xlu0 %4743
    %4745 = vrot.lane.b32.xlu0 %v3872, 127
    %v4746 = vpop.permute.xlu0 %4745
    %4747 = vrot.lane.b32.xlu0 %v3873, 127
    %v4748 = vpop.permute.xlu0 %4747
    %4749 = vrot.lane.b32.xlu0 %v3874, 127
    %v4750 = vpop.permute.xlu0 %4749
    %4751 = vrot.lane.b32.xlu0 %v3875, 127
    %v4752 = vpop.permute.xlu0 %4751
    %4753 = vrot.lane.b32.xlu0 %v3876, 127
    %v4754 = vpop.permute.xlu0 %4753
    %4755 = vrot.lane.b32.xlu0 %v3877, 127
    %v4756 = vpop.permute.xlu0 %4755
    %4757 = vrot.lane.b32.xlu0 %v3878, 127
    %v4758 = vpop.permute.xlu0 %4757
    %4759 = vrot.lane.b32.xlu0 %v3879, 127
    %v4760 = vpop.permute.xlu0 %4759
    %4761 = vrot.lane.b32.xlu0 %v3880, 127
    %v4762 = vpop.permute.xlu0 %4761
    %4763 = vrot.lane.b32.xlu0 %v3881, 127
    %v4764 = vpop.permute.xlu0 %4763
    %4765 = vrot.lane.b32.xlu0 %v3882, 127
    %v4766 = vpop.permute.xlu0 %4765
    %4767 = vrot.lane.b32.xlu0 %v3883, 127
    %v4768 = vpop.permute.xlu0 %4767
    %4769 = vrot.lane.b32.xlu0 %v3884, 127
    %v4770 = vpop.permute.xlu0 %4769
    %4771 = vrot.lane.b32.xlu0 %v3885, 127
    %v4772 = vpop.permute.xlu0 %4771
    %4773 = vrot.lane.b32.xlu0 %v3886, 127
    %v4774 = vpop.permute.xlu0 %4773
    %4775 = vrot.lane.b32.xlu0 %v3887, 127
    %v4776 = vpop.permute.xlu0 %4775
    %4777 = vrot.lane.b32.xlu0 %v3888, 127
    %v4778 = vpop.permute.xlu0 %4777
    %4779 = vrot.lane.b32.xlu0 %v3889, 127
    %v4780 = vpop.permute.xlu0 %4779
    %4781 = vrot.lane.b32.xlu0 %v3890, 127
    %v4782 = vpop.permute.xlu0 %4781
    %4783 = vrot.lane.b32.xlu0 %v3891, 127
    %v4784 = vpop.permute.xlu0 %4783
    %4785 = vrot.lane.b32.xlu0 %v3892, 127
    %v4786 = vpop.permute.xlu0 %4785
    %4787 = vrot.lane.b32.xlu0 %v3893, 127
    %v4788 = vpop.permute.xlu0 %4787
    %4789 = vrot.lane.b32.xlu0 %v3894, 127
    %v4790 = vpop.permute.xlu0 %4789
    %4791 = vrot.lane.b32.xlu0 %v3895, 127
    %v4792 = vpop.permute.xlu0 %4791
    %4793 = vrot.lane.b32.xlu0 %v3896, 127
    %v4794 = vpop.permute.xlu0 %4793
    %v4923 = vmul.f32 %v4283, %v4540
    %v4924 = vmul.f32 %v4284, %v4542
    %v4925 = vmul.f32 %v4285, %v4544
    %v4926 = vmul.f32 %v4286, %v4546
    %v4927 = vmul.f32 %v4287, %v4548
    %v4928 = vmul.f32 %v4288, %v4550
    %v4929 = vmul.f32 %v4289, %v4552
    %v4930 = vmul.f32 %v4290, %v4554
    %v4931 = vmul.f32 %v4291, %v4556
    %v4932 = vmul.f32 %v4292, %v4558
    %v4933 = vmul.f32 %v4293, %v4560
    %v4934 = vmul.f32 %v4294, %v4562
    %v4935 = vmul.f32 %v4295, %v4564
    %v4936 = vmul.f32 %v4296, %v4566
    %v4937 = vmul.f32 %v4297, %v4568
    %v4938 = vmul.f32 %v4298, %v4570
    %v4939 = vmul.f32 %v4299, %v4572
    %v4940 = vmul.f32 %v4300, %v4574
    %v4941 = vmul.f32 %v4301, %v4576
    %v4942 = vmul.f32 %v4302, %v4578
    %v4943 = vmul.f32 %v4303, %v4580
    %v4944 = vmul.f32 %v4304, %v4582
    %v4945 = vmul.f32 %v4305, %v4584
    %v4946 = vmul.f32 %v4306, %v4586
    %v4947 = vmul.f32 %v4307, %v4588
    %v4948 = vmul.f32 %v4308, %v4590
    %v4949 = vmul.f32 %v4309, %v4592
    %v4950 = vmul.f32 %v4310, %v4594
    %v4951 = vmul.f32 %v4311, %v4596
    %v4952 = vmul.f32 %v4312, %v4598
    %v4953 = vmul.f32 %v4313, %v4600
    %v4954 = vmul.f32 %v4314, %v4602
    %v4955 = vmul.f32 %v4315, %v4604
    %v4956 = vmul.f32 %v4316, %v4606
    %v4957 = vmul.f32 %v4317, %v4608
    %v4958 = vmul.f32 %v4318, %v4610
    %v4959 = vmul.f32 %v4319, %v4612
    %v4960 = vmul.f32 %v4320, %v4614
    %v4961 = vmul.f32 %v4321, %v4616
    %v4962 = vmul.f32 %v4322, %v4618
    %v4963 = vmul.f32 %v4323, %v4620
    %v4964 = vmul.f32 %v4324, %v4622
    %v4965 = vmul.f32 %v4325, %v4624
    %v4966 = vmul.f32 %v4326, %v4626
    %v4967 = vmul.f32 %v4327, %v4628
    %v4968 = vmul.f32 %v4328, %v4630
    %v4969 = vmul.f32 %v4329, %v4632
    %v4970 = vmul.f32 %v4330, %v4634
    %v4971 = vmul.f32 %v4331, %v4636
    %v4972 = vmul.f32 %v4332, %v4638
    %v4973 = vmul.f32 %v4333, %v4640
    %v4974 = vmul.f32 %v4334, %v4642
    %v4975 = vmul.f32 %v4335, %v4644
    %v4976 = vmul.f32 %v4336, %v4646
    %v4977 = vmul.f32 %v4337, %v4648
    %v4978 = vmul.f32 %v4338, %v4650
    %v4979 = vmul.f32 %v4339, %v4652
    %v4980 = vmul.f32 %v4340, %v4654
    %v4981 = vmul.f32 %v4341, %v4656
    %v4982 = vmul.f32 %v4342, %v4658
    %v4983 = vmul.f32 %v4343, %v4660
    %v4984 = vmul.f32 %v4344, %v4662
    %v4985 = vmul.f32 %v4345, %v4664
    %v4986 = vmul.f32 %v4346, %v4666
    %v4987 = vmul.f32 %v4347, %v4668
    %v4988 = vmul.f32 %v4348, %v4670
    %v4989 = vmul.f32 %v4349, %v4672
    %v4990 = vmul.f32 %v4350, %v4674
    %v4991 = vmul.f32 %v4351, %v4676
    %v4992 = vmul.f32 %v4352, %v4678
    %v4993 = vmul.f32 %v4353, %v4680
    %v4994 = vmul.f32 %v4354, %v4682
    %v4995 = vmul.f32 %v4355, %v4684
    %v4996 = vmul.f32 %v4356, %v4686
    %v4997 = vmul.f32 %v4357, %v4688
    %v4998 = vmul.f32 %v4358, %v4690
    %v4999 = vmul.f32 %v4359, %v4692
    %v5000 = vmul.f32 %v4360, %v4694
    %v5001 = vmul.f32 %v4361, %v4696
    %v5002 = vmul.f32 %v4362, %v4698
    %v5003 = vmul.f32 %v4363, %v4700
    %v5004 = vmul.f32 %v4364, %v4702
    %v5005 = vmul.f32 %v4365, %v4704
    %v5006 = vmul.f32 %v4366, %v4706
    %v5007 = vmul.f32 %v4367, %v4708
    %v5008 = vmul.f32 %v4368, %v4710
    %v5009 = vmul.f32 %v4369, %v4712
    %v5010 = vmul.f32 %v4370, %v4714
    %v5011 = vmul.f32 %v4371, %v4716
    %v5012 = vmul.f32 %v4372, %v4718
    %v5013 = vmul.f32 %v4373, %v4720
    %v5014 = vmul.f32 %v4374, %v4722
    %v5015 = vmul.f32 %v4375, %v4724
    %v5016 = vmul.f32 %v4376, %v4726
    %v5017 = vmul.f32 %v4377, %v4728
    %v5018 = vmul.f32 %v4378, %v4730
    %v5019 = vmul.f32 %v4379, %v4732
    %v5020 = vmul.f32 %v4380, %v4734
    %v5021 = vmul.f32 %v4381, %v4736
    %v5022 = vmul.f32 %v4382, %v4738
    %v5023 = vmul.f32 %v4383, %v4740
    %v5024 = vmul.f32 %v4384, %v4742
    %v5025 = vmul.f32 %v4385, %v4744
    %v5026 = vmul.f32 %v4386, %v4746
    %v5027 = vmul.f32 %v4387, %v4748
    %v5028 = vmul.f32 %v4388, %v4750
    %v5029 = vmul.f32 %v4389, %v4752
    %v5030 = vmul.f32 %v4390, %v4754
    %v5031 = vmul.f32 %v4391, %v4756
    %v5032 = vmul.f32 %v4392, %v4758
    %v5033 = vmul.f32 %v4393, %v4760
    %v5034 = vmul.f32 %v4394, %v4762
    %v5035 = vmul.f32 %v4395, %v4764
    %v5036 = vmul.f32 %v4396, %v4766
    %v5037 = vmul.f32 %v4397, %v4768
    %v5038 = vmul.f32 %v4398, %v4770
    %v5039 = vmul.f32 %v4399, %v4772
    %v5040 = vmul.f32 %v4400, %v4774
    %v5041 = vmul.f32 %v4401, %v4776
    %v5042 = vmul.f32 %v4402, %v4778
    %v5043 = vmul.f32 %v4403, %v4780
    %v5044 = vmul.f32 %v4404, %v4782
    %v5045 = vmul.f32 %v4405, %v4784
    %v5046 = vmul.f32 %v4406, %v4786
    %v5047 = vmul.f32 %v4407, %v4788
    %v5048 = vmul.f32 %v4408, %v4790
    %v5049 = vmul.f32 %v4409, %v4792
    %v5050 = vmul.f32 %v4410, %v4794
    %v5051 = vadd.f32 %v4026, %v4923
    %v5052 = vadd.f32 %v4027, %v4924
    %v5053 = vadd.f32 %v4028, %v4925
    %v5054 = vadd.f32 %v4029, %v4926
    %v5055 = vadd.f32 %v4030, %v4927
    %v5056 = vadd.f32 %v4031, %v4928
    %v5057 = vadd.f32 %v4032, %v4929
    %v5058 = vadd.f32 %v4033, %v4930
    %v5059 = vadd.f32 %v4034, %v4931
    %v5060 = vadd.f32 %v4035, %v4932
    %v5061 = vadd.f32 %v4036, %v4933
    %v5062 = vadd.f32 %v4037, %v4934
    %v5063 = vadd.f32 %v4038, %v4935
    %v5064 = vadd.f32 %v4039, %v4936
    %v5065 = vadd.f32 %v4040, %v4937
    %v5066 = vadd.f32 %v4041, %v4938
    %v5067 = vadd.f32 %v4042, %v4939
    %v5068 = vadd.f32 %v4043, %v4940
    %v5069 = vadd.f32 %v4044, %v4941
    %v5070 = vadd.f32 %v4045, %v4942
    %v5071 = vadd.f32 %v4046, %v4943
    %v5072 = vadd.f32 %v4047, %v4944
    %v5073 = vadd.f32 %v4048, %v4945
    %v5074 = vadd.f32 %v4049, %v4946
    %v5075 = vadd.f32 %v4050, %v4947
    %v5076 = vadd.f32 %v4051, %v4948
    %v5077 = vadd.f32 %v4052, %v4949
    %v5078 = vadd.f32 %v4053, %v4950
    %v5079 = vadd.f32 %v4054, %v4951
    %v5080 = vadd.f32 %v4055, %v4952
    %v5081 = vadd.f32 %v4056, %v4953
    %v5082 = vadd.f32 %v4057, %v4954
    %v5083 = vadd.f32 %v4058, %v4955
    %v5084 = vadd.f32 %v4059, %v4956
    %v5085 = vadd.f32 %v4060, %v4957
    %v5086 = vadd.f32 %v4061, %v4958
    %v5087 = vadd.f32 %v4062, %v4959
    %v5088 = vadd.f32 %v4063, %v4960
    %v5089 = vadd.f32 %v4064, %v4961
    %v5090 = vadd.f32 %v4065, %v4962
    %v5091 = vadd.f32 %v4066, %v4963
    %v5092 = vadd.f32 %v4067, %v4964
    %v5093 = vadd.f32 %v4068, %v4965
    %v5094 = vadd.f32 %v4069, %v4966
    %v5095 = vadd.f32 %v4070, %v4967
    %v5096 = vadd.f32 %v4071, %v4968
    %v5097 = vadd.f32 %v4072, %v4969
    %v5098 = vadd.f32 %v4073, %v4970
    %v5099 = vadd.f32 %v4074, %v4971
    %v5100 = vadd.f32 %v4075, %v4972
    %v5101 = vadd.f32 %v4076, %v4973
    %v5102 = vadd.f32 %v4077, %v4974
    %v5103 = vadd.f32 %v4078, %v4975
    %v5104 = vadd.f32 %v4079, %v4976
    %v5105 = vadd.f32 %v4080, %v4977
    %v5106 = vadd.f32 %v4081, %v4978
    %v5107 = vadd.f32 %v4082, %v4979
    %v5108 = vadd.f32 %v4083, %v4980
    %v5109 = vadd.f32 %v4084, %v4981
    %v5110 = vadd.f32 %v4085, %v4982
    %v5111 = vadd.f32 %v4086, %v4983
    %v5112 = vadd.f32 %v4087, %v4984
    %v5113 = vadd.f32 %v4088, %v4985
    %v5114 = vadd.f32 %v4089, %v4986
    %v5115 = vadd.f32 %v4090, %v4987
    %v5116 = vadd.f32 %v4091, %v4988
    %v5117 = vadd.f32 %v4092, %v4989
    %v5118 = vadd.f32 %v4093, %v4990
    %v5119 = vadd.f32 %v4094, %v4991
    %v5120 = vadd.f32 %v4095, %v4992
    %v5121 = vadd.f32 %v4096, %v4993
    %v5122 = vadd.f32 %v4097, %v4994
    %v5123 = vadd.f32 %v4098, %v4995
    %v5124 = vadd.f32 %v4099, %v4996
    %v5125 = vadd.f32 %v4100, %v4997
    %v5126 = vadd.f32 %v4101, %v4998
    %v5127 = vadd.f32 %v4102, %v4999
    %v5128 = vadd.f32 %v4103, %v5000
    %v5129 = vadd.f32 %v4104, %v5001
    %v5130 = vadd.f32 %v4105, %v5002
    %v5131 = vadd.f32 %v4106, %v5003
    %v5132 = vadd.f32 %v4107, %v5004
    %v5133 = vadd.f32 %v4108, %v5005
    %v5134 = vadd.f32 %v4109, %v5006
    %v5135 = vadd.f32 %v4110, %v5007
    %v5136 = vadd.f32 %v4111, %v5008
    %v5137 = vadd.f32 %v4112, %v5009
    %v5138 = vadd.f32 %v4113, %v5010
    %v5139 = vadd.f32 %v4114, %v5011
    %v5140 = vadd.f32 %v4115, %v5012
    %v5141 = vadd.f32 %v4116, %v5013
    %v5142 = vadd.f32 %v4117, %v5014
    %v5143 = vadd.f32 %v4118, %v5015
    %v5144 = vadd.f32 %v4119, %v5016
    %v5145 = vadd.f32 %v4120, %v5017
    %v5146 = vadd.f32 %v4121, %v5018
    %v5147 = vadd.f32 %v4122, %v5019
    %v5148 = vadd.f32 %v4123, %v5020
    %v5149 = vadd.f32 %v4124, %v5021
    %v5150 = vadd.f32 %v4125, %v5022
    %v5151 = vadd.f32 %v4126, %v5023
    %v5152 = vadd.f32 %v4127, %v5024
    %v5153 = vadd.f32 %v4128, %v5025
    %v5154 = vadd.f32 %v4129, %v5026
    %v5155 = vadd.f32 %v4130, %v5027
    %v5156 = vadd.f32 %v4131, %v5028
    %v5157 = vadd.f32 %v4132, %v5029
    %v5158 = vadd.f32 %v4133, %v5030
    %v5159 = vadd.f32 %v4134, %v5031
    %v5160 = vadd.f32 %v4135, %v5032
    %v5161 = vadd.f32 %v4136, %v5033
    %v5162 = vadd.f32 %v4137, %v5034
    %v5163 = vadd.f32 %v4138, %v5035
    %v5164 = vadd.f32 %v4139, %v5036
    %v5165 = vadd.f32 %v4140, %v5037
    %v5166 = vadd.f32 %v4141, %v5038
    %v5167 = vadd.f32 %v4142, %v5039
    %v5168 = vadd.f32 %v4143, %v5040
    %v5169 = vadd.f32 %v4144, %v5041
    %v5170 = vadd.f32 %v4145, %v5042
    %v5171 = vadd.f32 %v4146, %v5043
    %v5172 = vadd.f32 %v4147, %v5044
    %v5173 = vadd.f32 %v4148, %v5045
    %v5174 = vadd.f32 %v4149, %v5046
    %v5175 = vadd.f32 %v4150, %v5047
    %v5176 = vadd.f32 %v4151, %v5048
    %v5177 = vadd.f32 %v4152, %v5049
    %v5178 = vadd.f32 %v4153, %v5050
    %vm5179 = vcmask 89088
    %5180 = vst.msk [vmem:[%s1] sm:$0xff] %vm5179, %v5051
    %5181 = vst.msk [vmem:[%s1 + $0x8] sm:$0xff] %vm5179, %v5052
    %5182 = vst.msk [vmem:[%s1 + $0x10] sm:$0xff] %vm5179, %v5053
    %5183 = vst.msk [vmem:[%s1 + $0x18] sm:$0xff] %vm5179, %v5054
    %5184 = vst.msk [vmem:[%s1 + $0x20] sm:$0xff] %vm5179, %v5055
    %5185 = vst.msk [vmem:[%s1 + $0x28] sm:$0xff] %vm5179, %v5056
    %5186 = vst.msk [vmem:[%s1 + $0x30] sm:$0xff] %vm5179, %v5057
    %5187 = vst.msk [vmem:[%s1 + $0x38] sm:$0xff] %vm5179, %v5058
    %5188 = vst.msk [vmem:[%s1 + $0x40] sm:$0xff] %vm5179, %v5059
    %5189 = vst.msk [vmem:[%s1 + $0x48] sm:$0xff] %vm5179, %v5060
    %5190 = vst.msk [vmem:[%s1 + $0x50] sm:$0xff] %vm5179, %v5061
    %5191 = vst.msk [vmem:[%s1 + $0x58] sm:$0xff] %vm5179, %v5062
    %5192 = vst.msk [vmem:[%s1 + $0x60] sm:$0xff] %vm5179, %v5063
    %5193 = vst.msk [vmem:[%s1 + $0x68] sm:$0xff] %vm5179, %v5064
    %5194 = vst.msk [vmem:[%s1 + $0x70] sm:$0xff] %vm5179, %v5065
    %5195 = vst.msk [vmem:[%s1 + $0x78] sm:$0xff] %vm5179, %v5066
    %5196 = vst.msk [vmem:[%s1 + $0x80] sm:$0xff] %vm5179, %v5067
    %5197 = vst.msk [vmem:[%s1 + $0x88] sm:$0xff] %vm5179, %v5068
    %5198 = vst.msk [vmem:[%s1 + $0x90] sm:$0xff] %vm5179, %v5069
    %5199 = vst.msk [vmem:[%s1 + $0x98] sm:$0xff] %vm5179, %v5070
    %5200 = vst.msk [vmem:[%s1 + $0xa0] sm:$0xff] %vm5179, %v5071
    %5201 = vst.msk [vmem:[%s1 + $0xa8] sm:$0xff] %vm5179, %v5072
    %5202 = vst.msk [vmem:[%s1 + $0xb0] sm:$0xff] %vm5179, %v5073
    %5203 = vst.msk [vmem:[%s1 + $0xb8] sm:$0xff] %vm5179, %v5074
    %5204 = vst.msk [vmem:[%s1 + $0xc0] sm:$0xff] %vm5179, %v5075
    %5205 = vst.msk [vmem:[%s1 + $0xc8] sm:$0xff] %vm5179, %v5076
    %5206 = vst.msk [vmem:[%s1 + $0xd0] sm:$0xff] %vm5179, %v5077
    %5207 = vst.msk [vmem:[%s1 + $0xd8] sm:$0xff] %vm5179, %v5078
    %5208 = vst.msk [vmem:[%s1 + $0xe0] sm:$0xff] %vm5179, %v5079
    %5209 = vst.msk [vmem:[%s1 + $0xe8] sm:$0xff] %vm5179, %v5080
    %5210 = vst.msk [vmem:[%s1 + $0xf0] sm:$0xff] %vm5179, %v5081
    %5211 = vst.msk [vmem:[%s1 + $0xf8] sm:$0xff] %vm5179, %v5082
    %5212 = vst.msk [vmem:[%s1 + $0x100] sm:$0xff] %vm5179, %v5083
    %5213 = vst.msk [vmem:[%s1 + $0x108] sm:$0xff] %vm5179, %v5084
    %5214 = vst.msk [vmem:[%s1 + $0x110] sm:$0xff] %vm5179, %v5085
    %5215 = vst.msk [vmem:[%s1 + $0x118] sm:$0xff] %vm5179, %v5086
    %5216 = vst.msk [vmem:[%s1 + $0x120] sm:$0xff] %vm5179, %v5087
    %5217 = vst.msk [vmem:[%s1 + $0x128] sm:$0xff] %vm5179, %v5088
    %5218 = vst.msk [vmem:[%s1 + $0x130] sm:$0xff] %vm5179, %v5089
    %5219 = vst.msk [vmem:[%s1 + $0x138] sm:$0xff] %vm5179, %v5090
    %5220 = vst.msk [vmem:[%s1 + $0x140] sm:$0xff] %vm5179, %v5091
    %5221 = vst.msk [vmem:[%s1 + $0x148] sm:$0xff] %vm5179, %v5092
    %5222 = vst.msk [vmem:[%s1 + $0x150] sm:$0xff] %vm5179, %v5093
    %5223 = vst.msk [vmem:[%s1 + $0x158] sm:$0xff] %vm5179, %v5094
    %5224 = vst.msk [vmem:[%s1 + $0x160] sm:$0xff] %vm5179, %v5095
    %5225 = vst.msk [vmem:[%s1 + $0x168] sm:$0xff] %vm5179, %v5096
    %5226 = vst.msk [vmem:[%s1 + $0x170] sm:$0xff] %vm5179, %v5097
    %5227 = vst.msk [vmem:[%s1 + $0x178] sm:$0xff] %vm5179, %v5098
    %5228 = vst.msk [vmem:[%s1 + $0x180] sm:$0xff] %vm5179, %v5099
    %5229 = vst.msk [vmem:[%s1 + $0x188] sm:$0xff] %vm5179, %v5100
    %5230 = vst.msk [vmem:[%s1 + $0x190] sm:$0xff] %vm5179, %v5101
    %5231 = vst.msk [vmem:[%s1 + $0x198] sm:$0xff] %vm5179, %v5102
    %5232 = vst.msk [vmem:[%s1 + $0x1a0] sm:$0xff] %vm5179, %v5103
    %5233 = vst.msk [vmem:[%s1 + $0x1a8] sm:$0xff] %vm5179, %v5104
    %5234 = vst.msk [vmem:[%s1 + $0x1b0] sm:$0xff] %vm5179, %v5105
    %5235 = vst.msk [vmem:[%s1 + $0x1b8] sm:$0xff] %vm5179, %v5106
    %5236 = vst.msk [vmem:[%s1 + $0x1c0] sm:$0xff] %vm5179, %v5107
    %5237 = vst.msk [vmem:[%s1 + $0x1c8] sm:$0xff] %vm5179, %v5108
    %5238 = vst.msk [vmem:[%s1 + $0x1d0] sm:$0xff] %vm5179, %v5109
    %5239 = vst.msk [vmem:[%s1 + $0x1d8] sm:$0xff] %vm5179, %v5110
    %5240 = vst.msk [vmem:[%s1 + $0x1e0] sm:$0xff] %vm5179, %v5111
    %5241 = vst.msk [vmem:[%s1 + $0x1e8] sm:$0xff] %vm5179, %v5112
    %5242 = vst.msk [vmem:[%s1 + $0x1f0] sm:$0xff] %vm5179, %v5113
    %5243 = vst.msk [vmem:[%s1 + $0x1f8] sm:$0xff] %vm5179, %v5114
    %5244 = vst.msk [vmem:[%s1 + $0x200] sm:$0xff] %vm5179, %v5115
    %5245 = vst.msk [vmem:[%s1 + $0x208] sm:$0xff] %vm5179, %v5116
    %5246 = vst.msk [vmem:[%s1 + $0x210] sm:$0xff] %vm5179, %v5117
    %5247 = vst.msk [vmem:[%s1 + $0x218] sm:$0xff] %vm5179, %v5118
    %5248 = vst.msk [vmem:[%s1 + $0x220] sm:$0xff] %vm5179, %v5119
    %5249 = vst.msk [vmem:[%s1 + $0x228] sm:$0xff] %vm5179, %v5120
    %5250 = vst.msk [vmem:[%s1 + $0x230] sm:$0xff] %vm5179, %v5121
    %5251 = vst.msk [vmem:[%s1 + $0x238] sm:$0xff] %vm5179, %v5122
    %5252 = vst.msk [vmem:[%s1 + $0x240] sm:$0xff] %vm5179, %v5123
    %5253 = vst.msk [vmem:[%s1 + $0x248] sm:$0xff] %vm5179, %v5124
    %5254 = vst.msk [vmem:[%s1 + $0x250] sm:$0xff] %vm5179, %v5125
    %5255 = vst.msk [vmem:[%s1 + $0x258] sm:$0xff] %vm5179, %v5126
    %5256 = vst.msk [vmem:[%s1 + $0x260] sm:$0xff] %vm5179, %v5127
    %5257 = vst.msk [vmem:[%s1 + $0x268] sm:$0xff] %vm5179, %v5128
    %5258 = vst.msk [vmem:[%s1 + $0x270] sm:$0xff] %vm5179, %v5129
    %5259 = vst.msk [vmem:[%s1 + $0x278] sm:$0xff] %vm5179, %v5130
    %5260 = vst.msk [vmem:[%s1 + $0x280] sm:$0xff] %vm5179, %v5131
    %5261 = vst.msk [vmem:[%s1 + $0x288] sm:$0xff] %vm5179, %v5132
    %5262 = vst.msk [vmem:[%s1 + $0x290] sm:$0xff] %vm5179, %v5133
    %5263 = vst.msk [vmem:[%s1 + $0x298] sm:$0xff] %vm5179, %v5134
    %5264 = vst.msk [vmem:[%s1 + $0x2a0] sm:$0xff] %vm5179, %v5135
    %5265 = vst.msk [vmem:[%s1 + $0x2a8] sm:$0xff] %vm5179, %v5136
    %5266 = vst.msk [vmem:[%s1 + $0x2b0] sm:$0xff] %vm5179, %v5137
    %5267 = vst.msk [vmem:[%s1 + $0x2b8] sm:$0xff] %vm5179, %v5138
    %5268 = vst.msk [vmem:[%s1 + $0x2c0] sm:$0xff] %vm5179, %v5139
    %5269 = vst.msk [vmem:[%s1 + $0x2c8] sm:$0xff] %vm5179, %v5140
    %5270 = vst.msk [vmem:[%s1 + $0x2d0] sm:$0xff] %vm5179, %v5141
    %5271 = vst.msk [vmem:[%s1 + $0x2d8] sm:$0xff] %vm5179, %v5142
    %5272 = vst.msk [vmem:[%s1 + $0x2e0] sm:$0xff] %vm5179, %v5143
    %5273 = vst.msk [vmem:[%s1 + $0x2e8] sm:$0xff] %vm5179, %v5144
    %5274 = vst.msk [vmem:[%s1 + $0x2f0] sm:$0xff] %vm5179, %v5145
    %5275 = vst.msk [vmem:[%s1 + $0x2f8] sm:$0xff] %vm5179, %v5146
    %5276 = vst.msk [vmem:[%s1 + $0x300] sm:$0xff] %vm5179, %v5147
    %5277 = vst.msk [vmem:[%s1 + $0x308] sm:$0xff] %vm5179, %v5148
    %5278 = vst.msk [vmem:[%s1 + $0x310] sm:$0xff] %vm5179, %v5149
    %5279 = vst.msk [vmem:[%s1 + $0x318] sm:$0xff] %vm5179, %v5150
    %5280 = vst.msk [vmem:[%s1 + $0x320] sm:$0xff] %vm5179, %v5151
    %5281 = vst.msk [vmem:[%s1 + $0x328] sm:$0xff] %vm5179, %v5152
    %5282 = vst.msk [vmem:[%s1 + $0x330] sm:$0xff] %vm5179, %v5153
    %5283 = vst.msk [vmem:[%s1 + $0x338] sm:$0xff] %vm5179, %v5154
    %5284 = vst.msk [vmem:[%s1 + $0x340] sm:$0xff] %vm5179, %v5155
    %5285 = vst.msk [vmem:[%s1 + $0x348] sm:$0xff] %vm5179, %v5156
    %5286 = vst.msk [vmem:[%s1 + $0x350] sm:$0xff] %vm5179, %v5157
    %5287 = vst.msk [vmem:[%s1 + $0x358] sm:$0xff] %vm5179, %v5158
    %5288 = vst.msk [vmem:[%s1 + $0x360] sm:$0xff] %vm5179, %v5159
    %5289 = vst.msk [vmem:[%s1 + $0x368] sm:$0xff] %vm5179, %v5160
    %5290 = vst.msk [vmem:[%s1 + $0x370] sm:$0xff] %vm5179, %v5161
    %5291 = vst.msk [vmem:[%s1 + $0x378] sm:$0xff] %vm5179, %v5162
    %5292 = vst.msk [vmem:[%s1 + $0x380] sm:$0xff] %vm5179, %v5163
    %5293 = vst.msk [vmem:[%s1 + $0x388] sm:$0xff] %vm5179, %v5164
    %5294 = vst.msk [vmem:[%s1 + $0x390] sm:$0xff] %vm5179, %v5165
    %5295 = vst.msk [vmem:[%s1 + $0x398] sm:$0xff] %vm5179, %v5166
    %5296 = vst.msk [vmem:[%s1 + $0x3a0] sm:$0xff] %vm5179, %v5167
    %5297 = vst.msk [vmem:[%s1 + $0x3a8] sm:$0xff] %vm5179, %v5168
    %5298 = vst.msk [vmem:[%s1 + $0x3b0] sm:$0xff] %vm5179, %v5169
    %5299 = vst.msk [vmem:[%s1 + $0x3b8] sm:$0xff] %vm5179, %v5170
    %5300 = vst.msk [vmem:[%s1 + $0x3c0] sm:$0xff] %vm5179, %v5171
    %5301 = vst.msk [vmem:[%s1 + $0x3c8] sm:$0xff] %vm5179, %v5172
    %5302 = vst.msk [vmem:[%s1 + $0x3d0] sm:$0xff] %vm5179, %v5173
    %5303 = vst.msk [vmem:[%s1 + $0x3d8] sm:$0xff] %vm5179, %v5174
    %5304 = vst.msk [vmem:[%s1 + $0x3e0] sm:$0xff] %vm5179, %v5175
    %5305 = vst.msk [vmem:[%s1 + $0x3e8] sm:$0xff] %vm5179, %v5176
    %5306 = vst.msk [vmem:[%s1 + $0x3f0] sm:$0xff] %vm5179, %v5177
    %5307 = vst.msk [vmem:[%s1 + $0x3f8] sm:$0xff] %vm5179, %v5178
    // Predicated region
    $region10: #{tpu_custom_call.1} parent=1 // pred_check
      _
    $region11: #{tpu_custom_call.1} parent=1 // pred_check_branch
      %5309 = sbr.rel (0) target = $region13
    $region12: #{tpu_custom_call.1} parent=1 // pred_region
      _
    $region13: #{tpu_custom_call.1} parent=1 // pred_fallthru
      _
    // Predicated region
    $region14: #{tpu_custom_call.1} parent=1 // pred_check
      _
    $region15: #{tpu_custom_call.1} parent=1 // pred_check_branch
      %5311 = sbr.rel (0) target = $region17
    $region16: #{tpu_custom_call.1} parent=1 // pred_region
      _
    $region17: #{tpu_custom_call.1} parent=1 // pred_fallthru
      _
    %5312 = vsyncpa [#allocation3], 1

</llo_original>
